<compile_context>
chip_gen: v6e
topology: v6e:2x2x1
jax: 0.10.0
libtpu: 0.0.40
codegen_flags: <defaults>
</compile_context>

<pallas_src>
import functools

import jax
import jax.numpy as jnp
from jax.experimental import pallas as pl
from jax.experimental.pallas import tpu as pltpu


# ----------------------------------------------------------------------------
# Pallas kernel 1: fused matmul + bias + ReLU (used for both convs after
# im2col).  M is tiled on a parallel grid axis; K and N are full-array blocks.
# ----------------------------------------------------------------------------
def _matmul_bias_act_kernel(x_ref, w_ref, b_ref, o_ref, *, relu: bool):
    acc = jnp.dot(x_ref[...], w_ref[...], preferred_element_type=jnp.float32)
    acc = acc + b_ref[...]                      # (1, N) broadcast over rows
    if relu:
        acc = jnp.maximum(acc, 0.0)
    o_ref[...] = acc.astype(o_ref.dtype)


def matmul_bias_act(x, w, b_row, *, relu: bool, m_block: int = 392):
    """y = relu?(x @ w + b); x:(M,K) w:(K,N) b_row:(1,N) -> (M,N)."""
    M, K = x.shape
    K2, N = w.shape
    assert K == K2 and b_row.shape == (1, N)
    if M % m_block != 0 or m_block % 8 != 0:
        m_block = M                              # safe single-block fallback
    return pl.pallas_call(
        functools.partial(_matmul_bias_act_kernel, relu=relu),
        out_shape=jax.ShapeDtypeStruct((M, N), jnp.float32),
        grid_spec=pltpu.PrefetchScalarGridSpec(
            num_scalar_prefetch=0,
            grid=(M // m_block,),
            in_specs=[
                pl.BlockSpec((m_block, K), lambda i: (i, 0)),
                pl.BlockSpec((K, N), lambda i: (0, 0)),
                pl.BlockSpec((1, N), lambda i: (0, 0)),
            ],
            out_specs=pl.BlockSpec((m_block, N), lambda i: (i, 0)),
        ),
        compiler_params=pltpu.CompilerParams(
            dimension_semantics=("parallel",)),
    )(x, w, b_row)


# ----------------------------------------------------------------------------
# Pallas kernel 2: fused fc1 + ReLU + fc2, K-tiled over fc1's 25088 reduction
# dim (tk=6272 -> 4 steps).  The (M, 90) fc1 result lives only in the VMEM
# accumulator; fc2's tiny weight stays resident (constant block index), and
# only the (M, 10) logits are written to HBM.  w1 streams as bf16.
# ----------------------------------------------------------------------------
def _fc_fused_kernel(x_ref, w1_ref, b1_ref, w2_ref, b2_ref, o_ref, acc_ref):
    k = pl.program_id(0)

    @pl.when(k == 0)
    def _():
        acc_ref[...] = jnp.zeros_like(acc_ref)

    acc_ref[...] += jnp.dot(x_ref[...], w1_ref[...],
                            preferred_element_type=jnp.float32)

    @pl.when(k == pl.num_programs(0) - 1)
    def _():
        h = jnp.maximum(acc_ref[...] + b1_ref[...], 0.0)          # (M, 90) f32
        out = jnp.dot(h, w2_ref[...],
                      preferred_element_type=jnp.float32) + b2_ref[...]
        o_ref[...] = out.astype(o_ref.dtype)


def fc_fused(x, w1, b1_row, w2, b2_row, *, tk=6272):
    """logits = relu(x @ w1 + b1) @ w2 + b2, K-tiled over w1's rows."""
    M, K = x.shape
    K1, N1 = w1.shape
    N1b, N2 = w2.shape
    assert K == K1 and N1 == N1b
    assert K % tk == 0 and tk % 128 == 0
    if w1.dtype != x.dtype:          # bf16 weight streaming (default path)
        x = x.astype(w1.dtype)
    return pl.pallas_call(
        _fc_fused_kernel,
        out_shape=jax.ShapeDtypeStruct((M, N2), jnp.float32),
        grid_spec=pltpu.PrefetchScalarGridSpec(
            num_scalar_prefetch=0,
            grid=(K // tk,),
            in_specs=[
                pl.BlockSpec((M, tk), lambda k: (0, k)),
                pl.BlockSpec((tk, N1), lambda k: (k, 0)),
                pl.BlockSpec((1, N1), lambda k: (0, 0)),
                pl.BlockSpec((N1, N2), lambda k: (0, 0)),
                pl.BlockSpec((1, N2), lambda k: (0, 0)),
            ],
            out_specs=pl.BlockSpec((M, N2), lambda k: (0, 0)),
            scratch_shapes=[pltpu.VMEM((M, N1), jnp.float32)],
        ),
        compiler_params=pltpu.CompilerParams(
            dimension_semantics=("arbitrary",)),
    )(x, w1, b1_row, w2, b2_row)


# ----------------------------------------------------------------------------
# JAX glue: transpose-free NHWC im2col for 3x3 / stride 1 / pad 1.
# ----------------------------------------------------------------------------
def im2col_3x3_pad1_nhwc(x_nhwc):
    B, H, W, C = x_nhwc.shape
    xp = jnp.pad(x_nhwc, ((0, 0), (1, 1), (1, 1), (0, 0)))
    cols = [xp[:, dy:dy + H, dx:dx + W, :] for dy in range(3) for dx in range(3)]
    patches = jnp.concatenate(cols, axis=-1)        # (B,H,W,9C), cols=(dy,dx,c)
    return patches.reshape(B * H * W, 9 * C)        # contiguous -> free reshape


def conv3x3_relu_nhwc(x_nhwc, w_mat, b_row):
    """3x3 / stride 1 / pad 1 conv + ReLU; NHWC in, NHWC out."""
    B, H, W, _ = x_nhwc.shape
    C_out = w_mat.shape[1]
    patches = im2col_3x3_pad1_nhwc(x_nhwc)                   # (B*H*W, 9*C_in)
    out = matmul_bias_act(patches, w_mat, b_row, relu=True)  # (B*H*W, C_out)
    return out.reshape(B, H, W, C_out)                       # free reshape


# ----------------------------------------------------------------------------
# Parameter prep (one-time): reshape conv weights for im2col column order
# (dy, dx, c_in), fold the NCHW `.view(batch,-1)` permutation into fc1_w so the
# forward pass can flatten NHWC directly, reshape biases to (1, N), and cast
# fc1_w to bf16 (default) for weight streaming.
# ----------------------------------------------------------------------------
def prepare_params(p, *, fc1_weight_dtype=jnp.bfloat16):
    c1 = p["conv1_w"]     # (16, 1, 3, 3)
    c2 = p["conv2_w"]     # (32, 16, 3, 3)
    fc1_w = p["fc1_w"]    # (25088, 90), rows in NCHW flatten order (c,h,w)
    # conv weights: (Cout,Cin,3,3) -> ((dy,dx,cin), Cout)
    c1m = c1.transpose(2, 3, 1, 0).reshape(9 * c1.shape[1], c1.shape[0])
    c2m = c2.transpose(2, 3, 1, 0).reshape(9 * c2.shape[1], c2.shape[0])
    # fc1: permute rows from NCHW (c*784 + h*28 + w) to NHWC ((h*28 + w)*32 + c)
    fc1m = fc1_w.reshape(32, 28, 28, 90).transpose(1, 2, 0, 3).reshape(25088, 90)
    fc1m = fc1m.astype(fc1_weight_dtype)
    return {
        "conv1_wm": c1m, "conv1_b": p["conv1_b"].reshape(1, -1),
        "conv2_wm": c2m, "conv2_b": p["conv2_b"].reshape(1, -1),
        "fc1_wm": fc1m, "fc1_b": p["fc1_b"].reshape(1, -1),
        "fc2_wm": p["fc2_w"], "fc2_b": p["fc2_b"].reshape(1, -1),
    }


# ----------------------------------------------------------------------------
# Full CNN forward (matches the PyTorch module semantics).
# ----------------------------------------------------------------------------
def cnn_forward(x_nchw, prep):
    B, C, H, W = x_nchw.shape
    # NCHW -> NHWC once at entry (C_in = 1, so this is layout-trivial).
    x = jnp.transpose(x_nchw, (0, 2, 3, 1))
    x = conv3x3_relu_nhwc(x, prep["conv1_wm"], prep["conv1_b"])   # (B,28,28,16)
    x = conv3x3_relu_nhwc(x, prep["conv2_wm"], prep["conv2_b"])   # (B,28,28,32)
    # NHWC flatten (fc1_wm rows were pre-permuted to match) -- free reshape.
    x = x.reshape(B, H * W * 32)
    # Fused fc1+ReLU+fc2; activation is cast to bf16 inside fc_fused to match
    # the streamed bf16 weight, accumulation stays f32.
    return fc_fused(x, prep["fc1_wm"], prep["fc1_b"],
                    prep["fc2_wm"], prep["fc2_b"])                 # (B, 10)


def init_params(key):
    ks = jax.random.split(key, 8)

    def u(k, shape, fan_in):
        bound = 1.0 / jnp.sqrt(fan_in)
        return jax.random.uniform(k, shape, jnp.float32, -bound, bound)

    return {
        "conv1_w": u(ks[0], (16, 1, 3, 3), 1 * 9),
        "conv1_b": u(ks[1], (16,), 1 * 9),
        "conv2_w": u(ks[2], (32, 16, 3, 3), 16 * 9),
        "conv2_b": u(ks[3], (32,), 16 * 9),
        # fc weights stored as (in, out); fc1 rows follow torch's NCHW flatten.
        "fc1_w": u(ks[4], (32 * 28 * 28, 90), 32 * 28 * 28),
        "fc1_b": u(ks[5], (90,), 32 * 28 * 28),
        "fc2_w": u(ks[6], (90, 10), 90),
        "fc2_b": u(ks[7], (10,), 90),
    }


if __name__ == "__main__":
    key = jax.random.PRNGKey(0)
    k_x, k_p = jax.random.split(key)
    batch = 2
    # MNIST-style input implied by fc1 = Linear(32*28*28, 90): (B, 1, 28, 28)
    x = jax.random.normal(k_x, (batch, 1, 28, 28), jnp.float32)
    params = init_params(k_p)
    prep = prepare_params(params)        # bf16 fc1_w streaming by default;
                                         # pass fc1_weight_dtype=jnp.float32
                                         # for bit-exact f32 fc1.
    fwd = jax.jit(cnn_forward)
    out = jax.block_until_ready(fwd(x, prep))
    assert out.shape == (batch, 10) and out.dtype == jnp.float32
    print("KERNEL_OK")
</pallas_src>

<mosaic_0001>
module attributes {stable_mosaic.version = 11 : i64} {
  func.func @_matmul_bias_act_kernel(%arg0: i32, %arg1: memref<392x9xf32, #tpu.memory_space<vmem>>, %arg2: memref<9x16xf32, #tpu.memory_space<vmem>>, %arg3: memref<1x16xf32, #tpu.memory_space<vmem>>, %arg4: memref<392x16xf32, #tpu.memory_space<vmem>>) attributes {dimension_semantics = [#tpu.dimension_semantics<parallel>], iteration_bounds = array<i64: 4>, scalar_prefetch = 0 : i64, scratch_operands = 0 : i64, tpu.core_type = #tpu.core_type<tc>, window_params = [{transform_indices = @transform_0, window_bounds = array<i64: 392, 9>}, {pipeline_mode = #tpu.pipeline_mode<synchronous>, transform_indices = @transform_1, window_bounds = array<i64: 9, 16>}, {pipeline_mode = #tpu.pipeline_mode<synchronous>, transform_indices = @transform_2, window_bounds = array<i64: 1, 16>}, {transform_indices = @transform_3, window_bounds = array<i64: 392, 16>}]} {
    %c0 = arith.constant 0 : index
    %c0_0 = arith.constant 0 : index
    %0 = vector.load %arg1[%c0, %c0_0] : memref<392x9xf32, #tpu.memory_space<vmem>>, vector<392x9xf32>
    %c0_1 = arith.constant 0 : index
    %c0_2 = arith.constant 0 : index
    %1 = vector.load %arg2[%c0_1, %c0_2] : memref<9x16xf32, #tpu.memory_space<vmem>>, vector<9x16xf32>
    %cst = arith.constant dense<0.000000e+00> : vector<392x16xf32>
    %2 = tpu.matmul %0, %1, %cst {dimension_numbers = #tpu.dot_dimension_numbers<[1], [0], [0], [1], [0, 0, 1, 1], [], []>} : vector<392x9xf32>, vector<9x16xf32>, vector<392x16xf32> -> vector<392x16xf32>
    %c0_3 = arith.constant 0 : index
    %c0_4 = arith.constant 0 : index
    %3 = vector.load %arg3[%c0_3, %c0_4] : memref<1x16xf32, #tpu.memory_space<vmem>>, vector<1x16xf32>
    %4 = vector.broadcast %3 : vector<1x16xf32> to vector<392x16xf32>
    %5 = arith.addf %2, %4 : vector<392x16xf32>
    %cst_5 = arith.constant 0.000000e+00 : f32
    %6 = vector.broadcast %cst_5 : f32 to vector<392x16xf32>
    %7 = arith.maximumf %5, %6 : vector<392x16xf32>
    %c0_6 = arith.constant 0 : index
    %c0_7 = arith.constant 0 : index
    %8 = vector.load %arg4[%c0_6, %c0_7] : memref<392x16xf32, #tpu.memory_space<vmem>>, vector<392x16xf32>
    tpu.vector_store %arg4[%c0_6, %c0_7], %7 {strides = array<i32>} : memref<392x16xf32, #tpu.memory_space<vmem>>, vector<392x16xf32>,
    return
  }
  func.func @transform_0(%arg0: i32) -> (i32, i32) {
    %c0_i32 = arith.constant 0 : i32
    %c0_i32_0 = arith.constant 0 : i32
    return %arg0, %c0_i32 : i32, i32
  }
  func.func @transform_1(%arg0: i32) -> (i32, i32) {
    %c0_i32 = arith.constant 0 : i32
    %c0_i32_0 = arith.constant 0 : i32
    %c0_i32_1 = arith.constant 0 : i32
    return %c0_i32, %c0_i32_0 : i32, i32
  }
  func.func @transform_2(%arg0: i32) -> (i32, i32) {
    %c0_i32 = arith.constant 0 : i32
    %c0_i32_0 = arith.constant 0 : i32
    %c0_i32_1 = arith.constant 0 : i32
    return %c0_i32, %c0_i32_0 : i32, i32
  }
  func.func @transform_3(%arg0: i32) -> (i32, i32) {
    %c0_i32 = arith.constant 0 : i32
    %c0_i32_0 = arith.constant 0 : i32
    return %arg0, %c0_i32 : i32, i32
  }
}

module attributes {stable_mosaic.version = 11 : i64} {
  func.func @_matmul_bias_act_kernel(%arg0: i32, %arg1: memref<392x144xf32, #tpu.memory_space<vmem>>, %arg2: memref<144x32xf32, #tpu.memory_space<vmem>>, %arg3: memref<1x32xf32, #tpu.memory_space<vmem>>, %arg4: memref<392x32xf32, #tpu.memory_space<vmem>>) attributes {dimension_semantics = [#tpu.dimension_semantics<parallel>], iteration_bounds = array<i64: 4>, scalar_prefetch = 0 : i64, scratch_operands = 0 : i64, tpu.core_type = #tpu.core_type<tc>, window_params = [{transform_indices = @transform_0, window_bounds = array<i64: 392, 144>}, {pipeline_mode = #tpu.pipeline_mode<synchronous>, transform_indices = @transform_1, window_bounds = array<i64: 144, 32>}, {pipeline_mode = #tpu.pipeline_mode<synchronous>, transform_indices = @transform_2, window_bounds = array<i64: 1, 32>}, {transform_indices = @transform_3, window_bounds = array<i64: 392, 32>}]} {
    %c0 = arith.constant 0 : index
    %c0_0 = arith.constant 0 : index
    %0 = vector.load %arg1[%c0, %c0_0] : memref<392x144xf32, #tpu.memory_space<vmem>>, vector<392x144xf32>
    %c0_1 = arith.constant 0 : index
    %c0_2 = arith.constant 0 : index
    %1 = vector.load %arg2[%c0_1, %c0_2] : memref<144x32xf32, #tpu.memory_space<vmem>>, vector<144x32xf32>
    %cst = arith.constant dense<0.000000e+00> : vector<392x32xf32>
    %2 = tpu.matmul %0, %1, %cst {dimension_numbers = #tpu.dot_dimension_numbers<[1], [0], [0], [1], [0, 0, 1, 1], [], []>} : vector<392x144xf32>, vector<144x32xf32>, vector<392x32xf32> -> vector<392x32xf32>
    %c0_3 = arith.constant 0 : index
    %c0_4 = arith.constant 0 : index
    %3 = vector.load %arg3[%c0_3, %c0_4] : memref<1x32xf32, #tpu.memory_space<vmem>>, vector<1x32xf32>
    %4 = vector.broadcast %3 : vector<1x32xf32> to vector<392x32xf32>
    %5 = arith.addf %2, %4 : vector<392x32xf32>
    %cst_5 = arith.constant 0.000000e+00 : f32
    %6 = vector.broadcast %cst_5 : f32 to vector<392x32xf32>
    %7 = arith.maximumf %5, %6 : vector<392x32xf32>
    %c0_6 = arith.constant 0 : index
    %c0_7 = arith.constant 0 : index
    %8 = vector.load %arg4[%c0_6, %c0_7] : memref<392x32xf32, #tpu.memory_space<vmem>>, vector<392x32xf32>
    tpu.vector_store %arg4[%c0_6, %c0_7], %7 {strides = array<i32>} : memref<392x32xf32, #tpu.memory_space<vmem>>, vector<392x32xf32>,
    return
  }
  func.func @transform_0(%arg0: i32) -> (i32, i32) {
    %c0_i32 = arith.constant 0 : i32
    %c0_i32_0 = arith.constant 0 : i32
    return %arg0, %c0_i32 : i32, i32
  }
  func.func @transform_1(%arg0: i32) -> (i32, i32) {
    %c0_i32 = arith.constant 0 : i32
    %c0_i32_0 = arith.constant 0 : i32
    %c0_i32_1 = arith.constant 0 : i32
    return %c0_i32, %c0_i32_0 : i32, i32
  }
  func.func @transform_2(%arg0: i32) -> (i32, i32) {
    %c0_i32 = arith.constant 0 : i32
    %c0_i32_0 = arith.constant 0 : i32
    %c0_i32_1 = arith.constant 0 : i32
    return %c0_i32, %c0_i32_0 : i32, i32
  }
  func.func @transform_3(%arg0: i32) -> (i32, i32) {
    %c0_i32 = arith.constant 0 : i32
    %c0_i32_0 = arith.constant 0 : i32
    return %arg0, %c0_i32 : i32, i32
  }
}

module attributes {stable_mosaic.version = 11 : i64} {
  func.func @_fc_fused_kernel(%arg0: i32, %arg1: memref<2x6272xbf16, #tpu.memory_space<vmem>>, %arg2: memref<6272x90xbf16, #tpu.memory_space<vmem>>, %arg3: memref<1x90xf32, #tpu.memory_space<vmem>>, %arg4: memref<90x10xf32, #tpu.memory_space<vmem>>, %arg5: memref<1x10xf32, #tpu.memory_space<vmem>>, %arg6: memref<2x10xf32, #tpu.memory_space<vmem>>, %arg7: memref<2x90xf32, #tpu.memory_space<vmem>>) attributes {dimension_semantics = [#tpu.dimension_semantics<arbitrary>], iteration_bounds = array<i64: 4>, scalar_prefetch = 0 : i64, scratch_operands = 1 : i64, tpu.core_type = #tpu.core_type<tc>, window_params = [{transform_indices = @transform_0, window_bounds = array<i64: 2, 6272>}, {transform_indices = @transform_1, window_bounds = array<i64: 6272, 90>}, {pipeline_mode = #tpu.pipeline_mode<synchronous>, transform_indices = @transform_2, window_bounds = array<i64: 1, 90>}, {pipeline_mode = #tpu.pipeline_mode<synchronous>, transform_indices = @transform_3, window_bounds = array<i64: 90, 10>}, {pipeline_mode = #tpu.pipeline_mode<synchronous>, transform_indices = @transform_4, window_bounds = array<i64: 1, 10>}, {pipeline_mode = #tpu.pipeline_mode<synchronous>, transform_indices = @transform_5, window_bounds = array<i64: 2, 10>}]} {
    %c0_i32 = arith.constant 0 : i32
    %0 = arith.cmpi eq, %arg0, %c0_i32 : i32
    %1 = arith.extui %0 : i1 to i32
    %c0_i32_0 = arith.constant 0 : i32
    %2 = arith.cmpi ne, %1, %c0_i32_0 : i32
    scf.if %2 {
      %cst_9 = arith.constant 0.000000e+00 : f32
      %12 = vector.broadcast %cst_9 : f32 to vector<2x90xf32>
      %c0_10 = arith.constant 0 : index
      %c0_11 = arith.constant 0 : index
      %13 = vector.load %arg7[%c0_10, %c0_11] : memref<2x90xf32, #tpu.memory_space<vmem>>, vector<2x90xf32>
      tpu.vector_store %arg7[%c0_10, %c0_11], %12 {strides = array<i32>} : memref<2x90xf32, #tpu.memory_space<vmem>>, vector<2x90xf32>,
    } else {
    }
    %c0 = arith.constant 0 : index
    %c0_1 = arith.constant 0 : index
    %3 = vector.load %arg7[%c0, %c0_1] : memref<2x90xf32, #tpu.memory_space<vmem>>, vector<2x90xf32>
    %c0_2 = arith.constant 0 : index
    %c0_3 = arith.constant 0 : index
    %4 = vector.load %arg1[%c0_2, %c0_3] : memref<2x6272xbf16, #tpu.memory_space<vmem>>, vector<2x6272xbf16>
    %c0_4 = arith.constant 0 : index
    %c0_5 = arith.constant 0 : index
    %5 = vector.load %arg2[%c0_4, %c0_5] : memref<6272x90xbf16, #tpu.memory_space<vmem>>, vector<6272x90xbf16>
    %cst = arith.constant dense<0.000000e+00> : vector<2x90xf32>
    %6 = tpu.matmul %4, %5, %cst {dimension_numbers = #tpu.dot_dimension_numbers<[1], [0], [0], [1], [0, 0, 1, 1], [], []>} : vector<2x6272xbf16>, vector<6272x90xbf16>, vector<2x90xf32> -> vector<2x90xf32>
    %7 = arith.addf %3, %6 : vector<2x90xf32>
    %c0_6 = arith.constant 0 : index
    %c0_7 = arith.constant 0 : index
    %8 = vector.load %arg7[%c0_6, %c0_7] : memref<2x90xf32, #tpu.memory_space<vmem>>, vector<2x90xf32>
    tpu.vector_store %arg7[%c0_6, %c0_7], %7 {strides = array<i32>} : memref<2x90xf32, #tpu.memory_space<vmem>>, vector<2x90xf32>,
    %c3_i32 = arith.constant 3 : i32
    %9 = arith.cmpi eq, %arg0, %c3_i32 : i32
    %10 = arith.extui %9 : i1 to i32
    %c0_i32_8 = arith.constant 0 : i32
    %11 = arith.cmpi ne, %10, %c0_i32_8 : i32
    scf.if %11 {
      %c0_9 = arith.constant 0 : index
      %c0_10 = arith.constant 0 : index
      %12 = vector.load %arg7[%c0_9, %c0_10] : memref<2x90xf32, #tpu.memory_space<vmem>>, vector<2x90xf32>
      %c0_11 = arith.constant 0 : index
      %c0_12 = arith.constant 0 : index
      %13 = vector.load %arg3[%c0_11, %c0_12] : memref<1x90xf32, #tpu.memory_space<vmem>>, vector<1x90xf32>
      %14 = vector.broadcast %13 : vector<1x90xf32> to vector<2x90xf32>
      %15 = arith.addf %12, %14 : vector<2x90xf32>
      %cst_13 = arith.constant 0.000000e+00 : f32
      %16 = vector.broadcast %cst_13 : f32 to vector<2x90xf32>
      %17 = arith.maximumf %15, %16 : vector<2x90xf32>
      %c0_14 = arith.constant 0 : index
      %c0_15 = arith.constant 0 : index
      %18 = vector.load %arg4[%c0_14, %c0_15] : memref<90x10xf32, #tpu.memory_space<vmem>>, vector<90x10xf32>
      %cst_16 = arith.constant dense<0.000000e+00> : vector<2x10xf32>
      %19 = tpu.matmul %17, %18, %cst_16 {dimension_numbers = #tpu.dot_dimension_numbers<[1], [0], [0], [1], [0, 0, 1, 1], [], []>} : vector<2x90xf32>, vector<90x10xf32>, vector<2x10xf32> -> vector<2x10xf32>
      %c0_17 = arith.constant 0 : index
      %c0_18 = arith.constant 0 : index
      %20 = vector.load %arg5[%c0_17, %c0_18] : memref<1x10xf32, #tpu.memory_space<vmem>>, vector<1x10xf32>
      %21 = vector.broadcast %20 : vector<1x10xf32> to vector<2x10xf32>
      %22 = arith.addf %19, %21 : vector<2x10xf32>
      %c0_19 = arith.constant 0 : index
      %c0_20 = arith.constant 0 : index
      %23 = vector.load %arg6[%c0_19, %c0_20] : memref<2x10xf32, #tpu.memory_space<vmem>>, vector<2x10xf32>
      tpu.vector_store %arg6[%c0_19, %c0_20], %22 {strides = array<i32>} : memref<2x10xf32, #tpu.memory_space<vmem>>, vector<2x10xf32>,
    } else {
    }
    return
  }
  func.func @transform_0(%arg0: i32) -> (i32, i32) {
    %c0_i32 = arith.constant 0 : i32
    %c0_i32_0 = arith.constant 0 : i32
    return %c0_i32, %arg0 : i32, i32
  }
  func.func @transform_1(%arg0: i32) -> (i32, i32) {
    %c0_i32 = arith.constant 0 : i32
    %c0_i32_0 = arith.constant 0 : i32
    return %arg0, %c0_i32 : i32, i32
  }
  func.func @transform_2(%arg0: i32) -> (i32, i32) {
    %c0_i32 = arith.constant 0 : i32
    %c0_i32_0 = arith.constant 0 : i32
    %c0_i32_1 = arith.constant 0 : i32
    return %c0_i32, %c0_i32_0 : i32, i32
  }
  func.func @transform_3(%arg0: i32) -> (i32, i32) {
    %c0_i32 = arith.constant 0 : i32
    %c0_i32_0 = arith.constant 0 : i32
    %c0_i32_1 = arith.constant 0 : i32
    return %c0_i32, %c0_i32_0 : i32, i32
  }
  func.func @transform_4(%arg0: i32) -> (i32, i32) {
    %c0_i32 = arith.constant 0 : i32
    %c0_i32_0 = arith.constant 0 : i32
    %c0_i32_1 = arith.constant 0 : i32
    return %c0_i32, %c0_i32_0 : i32, i32
  }
  func.func @transform_5(%arg0: i32) -> (i32, i32) {
    %c0_i32 = arith.constant 0 : i32
    %c0_i32_0 = arith.constant 0 : i32
    %c0_i32_1 = arith.constant 0 : i32
    return %c0_i32, %c0_i32_0 : i32, i32
  }
}

</mosaic_0001>

<llo_original>
// kernel: cnn_forward.3
$region0: #{cnn_forward.3}
  #allocation0 [shape = 'u32[]', space=smem, size = 0x4, offset = 0x4, fixed_abs, tag = 'smem constant byte address 0x4 - core index']
  #allocation1 [shape = 'u32[144,128]{1,0:T(1,128)}', space=vmem, size = 0x12000, scoped, tag = 'internal scratch']
  %s0 = inlined_call_operand.vmem [shape: f32[1568,9], index: 0, kind: input, shape index: {}]
  %s1 = inlined_call_operand.hbm [shape: f32[9,16], index: 1, kind: input, shape index: {}]
  %s2 = inlined_call_operand.hbm [shape: f32[1,16], index: 2, kind: input, shape index: {}]
  %s3 = inlined_call_operand.vmem [shape: f32[1568,16], index: 3, kind: output, shape index: {}]
  %s4 = sld [smem:[#allocation0]]
  $region53: #{cnn_forward.3} parent=0
    _
  %s6 = ssub.s32 1, %s4
  %s7 = scalar_select 0, %s6, %s4
  $region1: #{cnn_forward.3} parent=0
    #allocation2 [shape = 'u8[8192]{0}', space=vmem, size = 0x2000, scoped, tag = 'input window, operand 1, single buffered']
    #allocation3 [shape = 's32[2]{0}', space=sflag, size = 0x8, scoped, tag = 'scoped memory for cnn_forward.3']
    #allocation4 [shape = 'u8[512]{0}', space=vmem, size = 0x400, scoped, tag = 'input window, operand 2, single buffered']
    #allocation5 [shape = 's32[1]{0}', space=sflag, size = 0x4, scoped, tag = 'scoped memory for cnn_forward.3']
    %8 = vsyncpa [#allocation3], 0
    %9 = vsyncpa [#allocation5], 0
    loop: start=0, step=1, limit=6
    $region2: #{cnn_forward.3} parent=1 // loop_pre_header
      _
    $region3: #{cnn_forward.3} parent=1 // loop_header
      %s11 = sphi 0, %s15
      %p12 = scmp.ge.s32.totalorder %s11, 6
      %s21 = sphi 0, %s23
      %s24 = sphi 0, %s21
      %s25 = sphi 0, %s24
      %s41 = sphi 0, %s25
      %s45 = sphi 0, %s45
      %s47 = sphi 0, %s45
      %s48 = sphi 0, %s47
      %s62 = sphi 0, %s48
      %s66 = sphi 0, %s66
      %s68 = sphi 0, %s66
      %s69 = sphi 0, %s68
      %s83 = sphi 0, %s69
      %s89 = sphi 0, %s91
      %s92 = sphi 0, %s89
      %s93 = sphi 0, %s92
      %s109 = sphi 0, %s93
    $region4: #{cnn_forward.3} parent=1 // loop_header_branch
      %14 = sbr.rel (%p12) target = $region8
    $region5: #{cnn_forward.3} parent=1 // loop_body
      %s16 = ssub.s32 %s11, 1
      %s17 = ssub.s32 %s11, 2
      %s18 = sadd.s32 %s11, 1
      %s19 = ssub.s32 %s11, %s18
      %p20 = scmp.eq.s32.totalorder %s19, 0
      %s22 = sadd.s32 %s21, 1
      %s23 = scalar_select %p20, %s21, %s22
      %p26 = pneg %p20
      %p27 = scmp.eq.s32.totalorder %s11, 3
      %p28 = por %p26, %p27
      %p29 = scmp.ne.s32.totalorder %s21, %s24
      %p30 = scmp.eq.s32.totalorder %s11, 0
      %p31 = por %p29, %p30
      %p32 = scmp.ne.s32.totalorder %s21, %s24
      %p33 = scmp.eq.s32.totalorder %s16, 3
      %p34 = por %p32, %p33
      %p35 = scmp.ne.s32.totalorder %s24, %s25
      %p36 = scmp.eq.s32.totalorder %s16, 0
      %p37 = por %p35, %p36
      %p38 = scmp.ne.s32.totalorder %s24, %s25
      %p39 = scmp.eq.s32.totalorder %s17, 3
      %p40 = por %p38, %p39
      %p42 = scmp.ne.s32.totalorder %s25, %s41
      %p43 = scmp.eq.s32.totalorder %s17, 0
      %p44 = por %p42, %p43
      %s46 = sadd.s32 %s45, 1
      %p49 = scmp.eq.s32.totalorder %s11, 3
      %p50 = scmp.ne.s32.totalorder %s45, %s47
      %p51 = scmp.eq.s32.totalorder %s11, 0
      %p52 = por %p50, %p51
      %p53 = scmp.ne.s32.totalorder %s45, %s47
      %p54 = scmp.eq.s32.totalorder %s16, 3
      %p55 = por %p53, %p54
      %p56 = scmp.ne.s32.totalorder %s47, %s48
      %p57 = scmp.eq.s32.totalorder %s16, 0
      %p58 = por %p56, %p57
      %p59 = scmp.ne.s32.totalorder %s47, %s48
      %p60 = scmp.eq.s32.totalorder %s17, 3
      %p61 = por %p59, %p60
      %p63 = scmp.ne.s32.totalorder %s48, %s62
      %p64 = scmp.eq.s32.totalorder %s17, 0
      %p65 = por %p63, %p64
      %s67 = sadd.s32 %s66, 1
      %p70 = scmp.eq.s32.totalorder %s11, 3
      %p71 = scmp.ne.s32.totalorder %s66, %s68
      %p72 = scmp.eq.s32.totalorder %s11, 0
      %p73 = por %p71, %p72
      %p74 = scmp.ne.s32.totalorder %s66, %s68
      %p75 = scmp.eq.s32.totalorder %s16, 3
      %p76 = por %p74, %p75
      %p77 = scmp.ne.s32.totalorder %s68, %s69
      %p78 = scmp.eq.s32.totalorder %s16, 0
      %p79 = por %p77, %p78
      %p80 = scmp.ne.s32.totalorder %s68, %s69
      %p81 = scmp.eq.s32.totalorder %s17, 3
      %p82 = por %p80, %p81
      %p84 = scmp.ne.s32.totalorder %s69, %s83
      %p85 = scmp.eq.s32.totalorder %s17, 0
      %p86 = por %p84, %p85
      %s87 = ssub.s32 %s11, %s18
      %p88 = scmp.eq.s32.totalorder %s87, 0
      %s90 = sadd.s32 %s89, 1
      %s91 = scalar_select %p88, %s89, %s90
      %p94 = pneg %p88
      %p95 = scmp.eq.s32.totalorder %s11, 3
      %p96 = por %p94, %p95
      %p97 = scmp.ne.s32.totalorder %s89, %s92
      %p98 = scmp.eq.s32.totalorder %s11, 0
      %p99 = por %p97, %p98
      %p100 = scmp.ne.s32.totalorder %s89, %s92
      %p101 = scmp.eq.s32.totalorder %s16, 3
      %p102 = por %p100, %p101
      %p103 = scmp.ne.s32.totalorder %s92, %s93
      %p104 = scmp.eq.s32.totalorder %s16, 0
      %p105 = por %p103, %p104
      %p106 = scmp.ne.s32.totalorder %s92, %s93
      %p107 = scmp.eq.s32.totalorder %s17, 3
      %p108 = por %p106, %p107
      %p110 = scmp.ne.s32.totalorder %s93, %s109
      %p111 = scmp.eq.s32.totalorder %s17, 0
      %p112 = por %p110, %p111
      %p113 = scmp.le.s32.totalorder 1, %s11
      %p114 = scmp.lt.s32.totalorder %s11, 5
      %p115 = pnand %p113, %p114
      %p116 = pneg %p115
      // Predicated region
      $region9: #{cnn_forward.3} parent=5 // pred_check
        _
      $region10: #{cnn_forward.3} parent=5 // pred_check_branch
        %118 = sbr.rel (%p115) target = $region12
      $region11: #{cnn_forward.3} parent=5 // pred_region
        %s119 = ssub.s32 %s11, 1
        // Predicated region
        $region13: #{cnn_forward.3} parent=11 // pred_check
          %p120 = pneg %p58
        $region14: #{cnn_forward.3} parent=11 // pred_check_branch
          %122 = sbr.rel (%p120) target = $region16
        $region15: #{cnn_forward.3} parent=11 // pred_region
          %s124 = ssub.s32 256, 256
          %125 = vsyncadd [#allocation3], %s124
          %s126 = sshll.u32 [#allocation2], 4
          %s127 = int_to_ptr.vmem [resolvable:$true] %s126
          %132 = dma.hbm_to_vmem [thread:$0]  %s1, 256, %s127, [#allocation3], 128, 128, 8
        $region16: #{cnn_forward.3} parent=11 // pred_fallthru
          _
        // Predicated region
        $region17: #{cnn_forward.3} parent=11 // pred_check
          %p133 = pneg %p79
        $region18: #{cnn_forward.3} parent=11 // pred_check_branch
          %135 = sbr.rel (%p133) target = $region20
        $region19: #{cnn_forward.3} parent=11 // pred_region
          %s137 = ssub.s32 16, 16
          %138 = vsyncadd [#allocation5], %s137
          %s140 = sshll.u32 [#allocation4], 4
          %s141 = int_to_ptr.vmem [resolvable:$true] %s140
          %143 = dma.hbm_to_vmem [thread:$0]  %s2, 16, %s141, [#allocation5]
        $region20: #{cnn_forward.3} parent=11 // pred_fallthru
          _
      $region12: #{cnn_forward.3} parent=5 // pred_fallthru
        _
      %p144 = scmp.lt.s32.totalorder %s11, 4
      // Predicated region
      $region21: #{cnn_forward.3} parent=5 // pred_check
        %p145 = pneg %p144
      $region22: #{cnn_forward.3} parent=5 // pred_check_branch
        %147 = sbr.rel (%p145) target = $region24
      $region23: #{cnn_forward.3} parent=5 // pred_region
        // Predicated region
        $region25: #{cnn_forward.3} parent=23 // pred_check
          %p148 = pneg %p31
        $region26: #{cnn_forward.3} parent=23 // pred_check_branch
          %150 = sbr.rel (%p148) target = $region28
        $region27: #{cnn_forward.3} parent=23 // pred_region
          %s151 = smul.u32 49, %s11
          %p152 = scmp.lt.s32.totalorder %s151, 195
          %s153 = scalar_select %p152, %s151, 195
          %s154 = smul.addr %s153, 8
          %s155 = scalar_lea.vmem %s0, %s154
          %s156 = smul.u32 49, %s11
        $region28: #{cnn_forward.3} parent=23 // pred_fallthru
          _
      $region24: #{cnn_forward.3} parent=5 // pred_fallthru
        _
      %p157 = scmp.le.s32.totalorder 1, %s11
      %p158 = scmp.lt.s32.totalorder %s11, 5
      %p159 = pnand %p157, %p158
      %p160 = pneg %p159
      // Predicated region
      $region29: #{cnn_forward.3} parent=5 // pred_check
        _
      $region30: #{cnn_forward.3} parent=5 // pred_check_branch
        %162 = sbr.rel (%p159) target = $region32
      $region31: #{cnn_forward.3} parent=5 // pred_region
        %s163 = ssub.s32 %s11, 1
        // Predicated region
        $region33: #{cnn_forward.3} parent=31 // pred_check
          %p164 = pneg %p58
        $region34: #{cnn_forward.3} parent=31 // pred_check_branch
          %166 = sbr.rel (%p164) target = $region36
        $region35: #{cnn_forward.3} parent=31 // pred_region
          %167 = dma.done [#allocation3], 256
        $region36: #{cnn_forward.3} parent=31 // pred_fallthru
          _
        // Predicated region
        $region37: #{cnn_forward.3} parent=31 // pred_check
          %p168 = pneg %p79
        $region38: #{cnn_forward.3} parent=31 // pred_check_branch
          %170 = sbr.rel (%p168) target = $region40
        $region39: #{cnn_forward.3} parent=31 // pred_region
          %171 = dma.done [#allocation5], 16
        $region40: #{cnn_forward.3} parent=31 // pred_fallthru
          _
        %s172 = smul.u32 49, %s16
        %p173 = scmp.lt.s32.totalorder %s172, 195
        %s174 = scalar_select %p173, %s172, 195
        %s175 = smul.addr %s174, 8
        %s176 = scalar_lea.vmem %s0, %s175
        %p177 = pneg %p37
        %p178 = pneg %p34
        %p179 = pneg %p58
        %p180 = pneg %p55
        %p181 = pneg %p79
        %p182 = pneg %p76
        %p183 = pneg %p105
        %p184 = pneg %p102
        %s185 = smul.u32 49, %s16
        %p186 = scmp.lt.s32.totalorder %s185, 195
        %s187 = scalar_select %p186, %s185, 195
        %s188 = smul.addr %s187, 8
        %s189 = scalar_lea.vmem %s3, %s188
        %s190 = smul.u32 49, %s16
        %p191 = scmp.lt.s32.totalorder %s190, 195
        %s192 = scalar_select %p191, %s190, 195
        %s193 = smul.addr %s192, 8
        %s194 = scalar_lea.vmem %s0, %s193
        %s195 = smul.u32 49, %s16
        %s196 = smul.u32 49, %s16
        %p197 = scmp.lt.s32.totalorder %s196, 195
        %s198 = scalar_select %p197, %s196, 195
        %s199 = smul.addr %s198, 8
        %s200 = scalar_lea.vmem %s3, %s199
        %s201 = smul.u32 49, %s16
        %v202 = vld [vmem:[%s194] sm:$0xff]
        %v203 = vld [vmem:[%s194 + $0x8] sm:$0xff]
        %v204 = vld [vmem:[%s194 + $0x10] sm:$0xff]
        %v205 = vld [vmem:[%s194 + $0x18] sm:$0xff]
        %v206 = vld [vmem:[%s194 + $0x20] sm:$0xff]
        %v207 = vld [vmem:[%s194 + $0x28] sm:$0xff]
        %v208 = vld [vmem:[%s194 + $0x30] sm:$0xff]
        %v209 = vld [vmem:[%s194 + $0x38] sm:$0xff]
        %v210 = vld [vmem:[%s194 + $0x40] sm:$0xff]
        %v211 = vld [vmem:[%s194 + $0x48] sm:$0xff]
        %v212 = vld [vmem:[%s194 + $0x50] sm:$0xff]
        %v213 = vld [vmem:[%s194 + $0x58] sm:$0xff]
        %v214 = vld [vmem:[%s194 + $0x60] sm:$0xff]
        %v215 = vld [vmem:[%s194 + $0x68] sm:$0xff]
        %v216 = vld [vmem:[%s194 + $0x70] sm:$0xff]
        %v217 = vld [vmem:[%s194 + $0x78] sm:$0xff]
        %v218 = vld [vmem:[%s194 + $0x80] sm:$0xff]
        %v219 = vld [vmem:[%s194 + $0x88] sm:$0xff]
        %v220 = vld [vmem:[%s194 + $0x90] sm:$0xff]
        %v221 = vld [vmem:[%s194 + $0x98] sm:$0xff]
        %v222 = vld [vmem:[%s194 + $0xa0] sm:$0xff]
        %v223 = vld [vmem:[%s194 + $0xa8] sm:$0xff]
        %v224 = vld [vmem:[%s194 + $0xb0] sm:$0xff]
        %v225 = vld [vmem:[%s194 + $0xb8] sm:$0xff]
        %v226 = vld [vmem:[%s194 + $0xc0] sm:$0xff]
        %v227 = vld [vmem:[%s194 + $0xc8] sm:$0xff]
        %v228 = vld [vmem:[%s194 + $0xd0] sm:$0xff]
        %v229 = vld [vmem:[%s194 + $0xd8] sm:$0xff]
        %v230 = vld [vmem:[%s194 + $0xe0] sm:$0xff]
        %v231 = vld [vmem:[%s194 + $0xe8] sm:$0xff]
        %v232 = vld [vmem:[%s194 + $0xf0] sm:$0xff]
        %v233 = vld [vmem:[%s194 + $0xf8] sm:$0xff]
        %v234 = vld [vmem:[%s194 + $0x100] sm:$0xff]
        %v235 = vld [vmem:[%s194 + $0x108] sm:$0xff]
        %v236 = vld [vmem:[%s194 + $0x110] sm:$0xff]
        %v237 = vld [vmem:[%s194 + $0x118] sm:$0xff]
        %v238 = vld [vmem:[%s194 + $0x120] sm:$0xff]
        %v239 = vld [vmem:[%s194 + $0x128] sm:$0xff]
        %v240 = vld [vmem:[%s194 + $0x130] sm:$0xff]
        %v241 = vld [vmem:[%s194 + $0x138] sm:$0xff]
        %v242 = vld [vmem:[%s194 + $0x140] sm:$0xff]
        %v243 = vld [vmem:[%s194 + $0x148] sm:$0xff]
        %v244 = vld [vmem:[%s194 + $0x150] sm:$0xff]
        %v245 = vld [vmem:[%s194 + $0x158] sm:$0xff]
        %v246 = vld [vmem:[%s194 + $0x160] sm:$0xff]
        %v247 = vld [vmem:[%s194 + $0x168] sm:$0xff]
        %v248 = vld [vmem:[%s194 + $0x170] sm:$0xff]
        %v249 = vld [vmem:[%s194 + $0x178] sm:$0xff]
        %v250 = vld [vmem:[%s194 + $0x180] sm:$0xff]
        %v251 = vld [vmem:[#allocation2] sm:$0xff]
        %v252 = vld [vmem:[#allocation2 + $0x8] sm:$0x1]
        %v253 = vld [vmem:[#allocation4] sm:$0x1]
        %v255 = vlaneseq
        %v256 = vshrl.u32 %v255, 7
        %v257 = vsub.s32 0, %v256
        %v258 = vrot.slane %v253, %v257
        %vm260 = vcmask 72704
        %v262 = vsel %vm260, %v202, 0
        %v265 = vsel %vm260, %v203, 0
        %v268 = vsel %vm260, %v204, 0
        %v271 = vsel %vm260, %v205, 0
        %v274 = vsel %vm260, %v206, 0
        %v277 = vsel %vm260, %v207, 0
        %v280 = vsel %vm260, %v208, 0
        %v283 = vsel %vm260, %v209, 0
        %v286 = vsel %vm260, %v210, 0
        %v289 = vsel %vm260, %v211, 0
        %v292 = vsel %vm260, %v212, 0
        %v295 = vsel %vm260, %v213, 0
        %v298 = vsel %vm260, %v214, 0
        %v301 = vsel %vm260, %v215, 0
        %v304 = vsel %vm260, %v216, 0
        %v307 = vsel %vm260, %v217, 0
        %v310 = vsel %vm260, %v218, 0
        %v313 = vsel %vm260, %v219, 0
        %v316 = vsel %vm260, %v220, 0
        %v319 = vsel %vm260, %v221, 0
        %v322 = vsel %vm260, %v222, 0
        %v325 = vsel %vm260, %v223, 0
        %v328 = vsel %vm260, %v224, 0
        %v331 = vsel %vm260, %v225, 0
        %v334 = vsel %vm260, %v226, 0
        %v337 = vsel %vm260, %v227, 0
        %v340 = vsel %vm260, %v228, 0
        %v343 = vsel %vm260, %v229, 0
        %v346 = vsel %vm260, %v230, 0
        %v349 = vsel %vm260, %v231, 0
        %v352 = vsel %vm260, %v232, 0
        %v355 = vsel %vm260, %v233, 0
        %v358 = vsel %vm260, %v234, 0
        %v361 = vsel %vm260, %v235, 0
        %v364 = vsel %vm260, %v236, 0
        %v367 = vsel %vm260, %v237, 0
        %v370 = vsel %vm260, %v238, 0
        %v373 = vsel %vm260, %v239, 0
        %v376 = vsel %vm260, %v240, 0
        %v379 = vsel %vm260, %v241, 0
        %v382 = vsel %vm260, %v242, 0
        %v385 = vsel %vm260, %v243, 0
        %v388 = vsel %vm260, %v244, 0
        %v391 = vsel %vm260, %v245, 0
        %v394 = vsel %vm260, %v246, 0
        %v397 = vsel %vm260, %v247, 0
        %v400 = vsel %vm260, %v248, 0
        %v403 = vsel %vm260, %v249, 0
        %v406 = vsel %vm260, %v250, 0
        %vm408 = vcmask 1040384
        %v410 = vsel %vm408, %v252, 0
        %412 = vmatprep.subr.mxu0 0.0
        %413 = vmatpush1.msra.mxu0 0.0
        %414 = vmatprep.subr.mxu0 0.0
        %415 = vmatpush1.msra.mxu0 0.0
        %416 = vmatprep.subr.mxu0 0.0
        %417 = vmatpush1.msra.mxu0 0.0
        %418 = vmatprep.subr.mxu0 0.0
        %419 = vmatpush1.msra.mxu0 0.0
        %420 = vmatprep.subr.mxu0 0.0
        %421 = vmatpush1.msra.mxu0 0.0
        %422 = vmatprep.subr.mxu0 0.0
        %423 = vmatpush1.msra.mxu0 0.0
        %424 = vmatprep.subr.mxu0 0.0
        %425 = vmatpush1.msra.mxu0 0.0
        %426 = vmatprep.subr.mxu0 0.0
        %427 = vmatpush1.msra.mxu0 0.0
        %428 = vmatprep.subr.mxu0 0.0
        %429 = vmatpush1.msra.mxu0 0.0
        %430 = vmatprep.subr.mxu0 0.0
        %431 = vmatpush1.msra.mxu0 0.0
        %432 = vmatprep.subr.mxu0 0.0
        %433 = vmatpush1.msra.mxu0 0.0
        %434 = vmatprep.subr.mxu0 0.0
        %435 = vmatpush1.msra.mxu0 0.0
        %436 = vmatprep.subr.mxu0 0.0
        %437 = vmatpush1.msra.mxu0 0.0
        %438 = vmatprep.subr.mxu0 0.0
        %439 = vmatpush1.msra.mxu0 0.0
        %440 = vmatprep.subr.mxu0 0.0
        %441 = vmatpush1.msra.mxu0 %v410
        %442 = vmatprep.subr.mxu0 0.0
        %443 = vmatpush1.msra.mxu0 %v251
        %444 = vmatprep.subr.mxu0 0.0
        %445 = vmatpush2.msra.mxu0 0.0
        %446 = vmatprep.subr.mxu0 0.0
        %447 = vmatpush2.msra.mxu0 0.0
        %448 = vmatprep.subr.mxu0 0.0
        %449 = vmatpush2.msra.mxu0 0.0
        %450 = vmatprep.subr.mxu0 0.0
        %451 = vmatpush2.msra.mxu0 0.0
        %452 = vmatprep.subr.mxu0 0.0
        %453 = vmatpush2.msra.mxu0 0.0
        %454 = vmatprep.subr.mxu0 0.0
        %455 = vmatpush2.msra.mxu0 0.0
        %456 = vmatprep.subr.mxu0 0.0
        %457 = vmatpush2.msra.mxu0 0.0
        %458 = vmatprep.subr.mxu0 0.0
        %459 = vmatpush2.msra.mxu0 0.0
        %460 = vmatprep.subr.mxu0 0.0
        %461 = vmatpush2.msra.mxu0 0.0
        %462 = vmatprep.subr.mxu0 0.0
        %463 = vmatpush2.msra.mxu0 0.0
        %464 = vmatprep.subr.mxu0 0.0
        %465 = vmatpush2.msra.mxu0 0.0
        %466 = vmatprep.subr.mxu0 0.0
        %467 = vmatpush2.msra.mxu0 0.0
        %468 = vmatprep.subr.mxu0 0.0
        %469 = vmatpush2.msra.mxu0 0.0
        %470 = vmatprep.subr.mxu0 0.0
        %471 = vmatpush2.msra.mxu0 0.0
        %472 = vmatprep.subr.mxu0 0.0
        %473 = vmatpush2.msra.mxu0 0.0
        %474 = vmatprep.subr.mxu0 0.0
        %475 = vmatpush2.msra.mxu0 0.0
        %476 = vmatprep.mubr.f32.mxu0 0.0
        %477 = vmatmul.mubr.f32.gmra.mxu0 %v262
        %v478 = vpop.f32.mrf.mxu0
        %v479 = vadd.f32 %v258, %v478
        %v480 = vpop.f32.mrf.mxu0
        %481 = vmatprep.mubr.f32.mxu0 0.0
        %482 = vmatmul.mubr.f32.gmra.mxu0 %v265
        %v483 = vpop.f32.mrf.mxu0
        %v484 = vadd.f32 %v258, %v483
        %v485 = vpop.f32.mrf.mxu0
        %486 = vmatprep.mubr.f32.mxu0 0.0
        %487 = vmatmul.mubr.f32.gmra.mxu0 %v268
        %v488 = vpop.f32.mrf.mxu0
        %v489 = vadd.f32 %v258, %v488
        %v490 = vpop.f32.mrf.mxu0
        %491 = vmatprep.mubr.f32.mxu0 0.0
        %492 = vmatmul.mubr.f32.gmra.mxu0 %v271
        %v493 = vpop.f32.mrf.mxu0
        %v494 = vadd.f32 %v258, %v493
        %v495 = vpop.f32.mrf.mxu0
        %496 = vmatprep.mubr.f32.mxu0 0.0
        %497 = vmatmul.mubr.f32.gmra.mxu0 %v274
        %v498 = vpop.f32.mrf.mxu0
        %v499 = vadd.f32 %v258, %v498
        %v500 = vpop.f32.mrf.mxu0
        %501 = vmatprep.mubr.f32.mxu0 0.0
        %502 = vmatmul.mubr.f32.gmra.mxu0 %v277
        %v503 = vpop.f32.mrf.mxu0
        %v504 = vadd.f32 %v258, %v503
        %v505 = vpop.f32.mrf.mxu0
        %506 = vmatprep.mubr.f32.mxu0 0.0
        %507 = vmatmul.mubr.f32.gmra.mxu0 %v280
        %v508 = vpop.f32.mrf.mxu0
        %v509 = vadd.f32 %v258, %v508
        %v510 = vpop.f32.mrf.mxu0
        %511 = vmatprep.mubr.f32.mxu0 0.0
        %512 = vmatmul.mubr.f32.gmra.mxu0 %v283
        %v513 = vpop.f32.mrf.mxu0
        %v514 = vadd.f32 %v258, %v513
        %v515 = vpop.f32.mrf.mxu0
        %516 = vmatprep.mubr.f32.mxu0 0.0
        %517 = vmatmul.mubr.f32.gmra.mxu0 %v286
        %v518 = vpop.f32.mrf.mxu0
        %v519 = vadd.f32 %v258, %v518
        %v520 = vpop.f32.mrf.mxu0
        %521 = vmatprep.mubr.f32.mxu0 0.0
        %522 = vmatmul.mubr.f32.gmra.mxu0 %v289
        %v523 = vpop.f32.mrf.mxu0
        %v524 = vadd.f32 %v258, %v523
        %v525 = vpop.f32.mrf.mxu0
        %526 = vmatprep.mubr.f32.mxu0 0.0
        %527 = vmatmul.mubr.f32.gmra.mxu0 %v292
        %v528 = vpop.f32.mrf.mxu0
        %v529 = vadd.f32 %v258, %v528
        %v530 = vpop.f32.mrf.mxu0
        %531 = vmatprep.mubr.f32.mxu0 0.0
        %532 = vmatmul.mubr.f32.gmra.mxu0 %v295
        %v533 = vpop.f32.mrf.mxu0
        %v534 = vadd.f32 %v258, %v533
        %v535 = vpop.f32.mrf.mxu0
        %536 = vmatprep.mubr.f32.mxu0 0.0
        %537 = vmatmul.mubr.f32.gmra.mxu0 %v298
        %v538 = vpop.f32.mrf.mxu0
        %v539 = vadd.f32 %v258, %v538
        %v540 = vpop.f32.mrf.mxu0
        %541 = vmatprep.mubr.f32.mxu0 0.0
        %542 = vmatmul.mubr.f32.gmra.mxu0 %v301
        %v543 = vpop.f32.mrf.mxu0
        %v544 = vadd.f32 %v258, %v543
        %v545 = vpop.f32.mrf.mxu0
        %546 = vmatprep.mubr.f32.mxu0 0.0
        %547 = vmatmul.mubr.f32.gmra.mxu0 %v304
        %v548 = vpop.f32.mrf.mxu0
        %v549 = vadd.f32 %v258, %v548
        %v550 = vpop.f32.mrf.mxu0
        %551 = vmatprep.mubr.f32.mxu0 0.0
        %552 = vmatmul.mubr.f32.gmra.mxu0 %v307
        %v553 = vpop.f32.mrf.mxu0
        %v554 = vadd.f32 %v258, %v553
        %v555 = vpop.f32.mrf.mxu0
        %556 = vmatprep.mubr.f32.mxu0 0.0
        %557 = vmatmul.mubr.f32.gmra.mxu0 %v310
        %v558 = vpop.f32.mrf.mxu0
        %v559 = vadd.f32 %v258, %v558
        %v560 = vpop.f32.mrf.mxu0
        %561 = vmatprep.mubr.f32.mxu0 0.0
        %562 = vmatmul.mubr.f32.gmra.mxu0 %v313
        %v563 = vpop.f32.mrf.mxu0
        %v564 = vadd.f32 %v258, %v563
        %v565 = vpop.f32.mrf.mxu0
        %566 = vmatprep.mubr.f32.mxu0 0.0
        %567 = vmatmul.mubr.f32.gmra.mxu0 %v316
        %v568 = vpop.f32.mrf.mxu0
        %v569 = vadd.f32 %v258, %v568
        %v570 = vpop.f32.mrf.mxu0
        %571 = vmatprep.mubr.f32.mxu0 0.0
        %572 = vmatmul.mubr.f32.gmra.mxu0 %v319
        %v573 = vpop.f32.mrf.mxu0
        %v574 = vadd.f32 %v258, %v573
        %v575 = vpop.f32.mrf.mxu0
        %576 = vmatprep.mubr.f32.mxu0 0.0
        %577 = vmatmul.mubr.f32.gmra.mxu0 %v322
        %v578 = vpop.f32.mrf.mxu0
        %v579 = vadd.f32 %v258, %v578
        %v580 = vpop.f32.mrf.mxu0
        %581 = vmatprep.mubr.f32.mxu0 0.0
        %582 = vmatmul.mubr.f32.gmra.mxu0 %v325
        %v583 = vpop.f32.mrf.mxu0
        %v584 = vadd.f32 %v258, %v583
        %v585 = vpop.f32.mrf.mxu0
        %586 = vmatprep.mubr.f32.mxu0 0.0
        %587 = vmatmul.mubr.f32.gmra.mxu0 %v328
        %v588 = vpop.f32.mrf.mxu0
        %v589 = vadd.f32 %v258, %v588
        %v590 = vpop.f32.mrf.mxu0
        %591 = vmatprep.mubr.f32.mxu0 0.0
        %592 = vmatmul.mubr.f32.gmra.mxu0 %v331
        %v593 = vpop.f32.mrf.mxu0
        %v594 = vadd.f32 %v258, %v593
        %v595 = vpop.f32.mrf.mxu0
        %596 = vmatprep.mubr.f32.mxu0 0.0
        %597 = vmatmul.mubr.f32.gmra.mxu0 %v334
        %v598 = vpop.f32.mrf.mxu0
        %v599 = vadd.f32 %v258, %v598
        %v600 = vpop.f32.mrf.mxu0
        %601 = vmatprep.mubr.f32.mxu0 0.0
        %602 = vmatmul.mubr.f32.gmra.mxu0 %v337
        %v603 = vpop.f32.mrf.mxu0
        %v604 = vadd.f32 %v258, %v603
        %v605 = vpop.f32.mrf.mxu0
        %606 = vmatprep.mubr.f32.mxu0 0.0
        %607 = vmatmul.mubr.f32.gmra.mxu0 %v340
        %v608 = vpop.f32.mrf.mxu0
        %v609 = vadd.f32 %v258, %v608
        %v610 = vpop.f32.mrf.mxu0
        %611 = vmatprep.mubr.f32.mxu0 0.0
        %612 = vmatmul.mubr.f32.gmra.mxu0 %v343
        %v613 = vpop.f32.mrf.mxu0
        %v614 = vadd.f32 %v258, %v613
        %v615 = vpop.f32.mrf.mxu0
        %616 = vmatprep.mubr.f32.mxu0 0.0
        %617 = vmatmul.mubr.f32.gmra.mxu0 %v346
        %v618 = vpop.f32.mrf.mxu0
        %v619 = vadd.f32 %v258, %v618
        %v620 = vpop.f32.mrf.mxu0
        %621 = vmatprep.mubr.f32.mxu0 0.0
        %622 = vmatmul.mubr.f32.gmra.mxu0 %v349
        %v623 = vpop.f32.mrf.mxu0
        %v624 = vadd.f32 %v258, %v623
        %v625 = vpop.f32.mrf.mxu0
        %626 = vmatprep.mubr.f32.mxu0 0.0
        %627 = vmatmul.mubr.f32.gmra.mxu0 %v352
        %v628 = vpop.f32.mrf.mxu0
        %v629 = vadd.f32 %v258, %v628
        %v630 = vpop.f32.mrf.mxu0
        %631 = vmatprep.mubr.f32.mxu0 0.0
        %632 = vmatmul.mubr.f32.gmra.mxu0 %v355
        %v633 = vpop.f32.mrf.mxu0
        %v634 = vadd.f32 %v258, %v633
        %v635 = vpop.f32.mrf.mxu0
        %636 = vmatprep.mubr.f32.mxu0 0.0
        %637 = vmatmul.mubr.f32.gmra.mxu0 %v358
        %v638 = vpop.f32.mrf.mxu0
        %v639 = vadd.f32 %v258, %v638
        %v640 = vpop.f32.mrf.mxu0
        %641 = vmatprep.mubr.f32.mxu0 0.0
        %642 = vmatmul.mubr.f32.gmra.mxu0 %v361
        %v643 = vpop.f32.mrf.mxu0
        %v644 = vadd.f32 %v258, %v643
        %v645 = vpop.f32.mrf.mxu0
        %646 = vmatprep.mubr.f32.mxu0 0.0
        %647 = vmatmul.mubr.f32.gmra.mxu0 %v364
        %v648 = vpop.f32.mrf.mxu0
        %v649 = vadd.f32 %v258, %v648
        %v650 = vpop.f32.mrf.mxu0
        %651 = vmatprep.mubr.f32.mxu0 0.0
        %652 = vmatmul.mubr.f32.gmra.mxu0 %v367
        %v653 = vpop.f32.mrf.mxu0
        %v654 = vadd.f32 %v258, %v653
        %v655 = vpop.f32.mrf.mxu0
        %656 = vmatprep.mubr.f32.mxu0 0.0
        %657 = vmatmul.mubr.f32.gmra.mxu0 %v370
        %v658 = vpop.f32.mrf.mxu0
        %v659 = vadd.f32 %v258, %v658
        %v660 = vpop.f32.mrf.mxu0
        %661 = vmatprep.mubr.f32.mxu0 0.0
        %662 = vmatmul.mubr.f32.gmra.mxu0 %v373
        %v663 = vpop.f32.mrf.mxu0
        %v664 = vadd.f32 %v258, %v663
        %v665 = vpop.f32.mrf.mxu0
        %666 = vmatprep.mubr.f32.mxu0 0.0
        %667 = vmatmul.mubr.f32.gmra.mxu0 %v376
        %v668 = vpop.f32.mrf.mxu0
        %v669 = vadd.f32 %v258, %v668
        %v670 = vpop.f32.mrf.mxu0
        %671 = vmatprep.mubr.f32.mxu0 0.0
        %672 = vmatmul.mubr.f32.gmra.mxu0 %v379
        %v673 = vpop.f32.mrf.mxu0
        %v674 = vadd.f32 %v258, %v673
        %v675 = vpop.f32.mrf.mxu0
        %676 = vmatprep.mubr.f32.mxu0 0.0
        %677 = vmatmul.mubr.f32.gmra.mxu0 %v382
        %v678 = vpop.f32.mrf.mxu0
        %v679 = vadd.f32 %v258, %v678
        %v680 = vpop.f32.mrf.mxu0
        %681 = vmatprep.mubr.f32.mxu0 0.0
        %682 = vmatmul.mubr.f32.gmra.mxu0 %v385
        %v683 = vpop.f32.mrf.mxu0
        %v684 = vadd.f32 %v258, %v683
        %v685 = vpop.f32.mrf.mxu0
        %686 = vmatprep.mubr.f32.mxu0 0.0
        %687 = vmatmul.mubr.f32.gmra.mxu0 %v388
        %v688 = vpop.f32.mrf.mxu0
        %v689 = vadd.f32 %v258, %v688
        %v690 = vpop.f32.mrf.mxu0
        %691 = vmatprep.mubr.f32.mxu0 0.0
        %692 = vmatmul.mubr.f32.gmra.mxu0 %v391
        %v693 = vpop.f32.mrf.mxu0
        %v694 = vadd.f32 %v258, %v693
        %v695 = vpop.f32.mrf.mxu0
        %696 = vmatprep.mubr.f32.mxu0 0.0
        %697 = vmatmul.mubr.f32.gmra.mxu0 %v394
        %v698 = vpop.f32.mrf.mxu0
        %v699 = vadd.f32 %v258, %v698
        %v700 = vpop.f32.mrf.mxu0
        %701 = vmatprep.mubr.f32.mxu0 0.0
        %702 = vmatmul.mubr.f32.gmra.mxu0 %v397
        %v703 = vpop.f32.mrf.mxu0
        %v704 = vadd.f32 %v258, %v703
        %v705 = vpop.f32.mrf.mxu0
        %706 = vmatprep.mubr.f32.mxu0 0.0
        %707 = vmatmul.mubr.f32.gmra.mxu0 %v400
        %v708 = vpop.f32.mrf.mxu0
        %v709 = vadd.f32 %v258, %v708
        %v710 = vpop.f32.mrf.mxu0
        %711 = vmatprep.mubr.f32.mxu0 0.0
        %712 = vmatmul.mubr.f32.gmra.mxu0 %v403
        %v713 = vpop.f32.mrf.mxu0
        %v714 = vadd.f32 %v258, %v713
        %v715 = vpop.f32.mrf.mxu0
        %716 = vmatprep.mubr.f32.mxu0 0.0
        %717 = vmatmul.mubr.f32.gmra.mxu0 %v406
        %v718 = vpop.f32.mrf.mxu0
        %v719 = vadd.f32 %v258, %v718
        %v720 = vpop.f32.mrf.mxu0
        %721 = vdwg.mxu0
        %v722 = vmax.f32 %v479, 0.0
        %v723 = vmax.f32 %v484, 0.0
        %v724 = vmax.f32 %v489, 0.0
        %v725 = vmax.f32 %v494, 0.0
        %v726 = vmax.f32 %v499, 0.0
        %v727 = vmax.f32 %v504, 0.0
        %v728 = vmax.f32 %v509, 0.0
        %v729 = vmax.f32 %v514, 0.0
        %v730 = vmax.f32 %v519, 0.0
        %v731 = vmax.f32 %v524, 0.0
        %v732 = vmax.f32 %v529, 0.0
        %v733 = vmax.f32 %v534, 0.0
        %v734 = vmax.f32 %v539, 0.0
        %v735 = vmax.f32 %v544, 0.0
        %v736 = vmax.f32 %v549, 0.0
        %v737 = vmax.f32 %v554, 0.0
        %v738 = vmax.f32 %v559, 0.0
        %v739 = vmax.f32 %v564, 0.0
        %v740 = vmax.f32 %v569, 0.0
        %v741 = vmax.f32 %v574, 0.0
        %v742 = vmax.f32 %v579, 0.0
        %v743 = vmax.f32 %v584, 0.0
        %v744 = vmax.f32 %v589, 0.0
        %v745 = vmax.f32 %v594, 0.0
        %v746 = vmax.f32 %v599, 0.0
        %v747 = vmax.f32 %v604, 0.0
        %v748 = vmax.f32 %v609, 0.0
        %v749 = vmax.f32 %v614, 0.0
        %v750 = vmax.f32 %v619, 0.0
        %v751 = vmax.f32 %v624, 0.0
        %v752 = vmax.f32 %v629, 0.0
        %v753 = vmax.f32 %v634, 0.0
        %v754 = vmax.f32 %v639, 0.0
        %v755 = vmax.f32 %v644, 0.0
        %v756 = vmax.f32 %v649, 0.0
        %v757 = vmax.f32 %v654, 0.0
        %v758 = vmax.f32 %v659, 0.0
        %v759 = vmax.f32 %v664, 0.0
        %v760 = vmax.f32 %v669, 0.0
        %v761 = vmax.f32 %v674, 0.0
        %v762 = vmax.f32 %v679, 0.0
        %v763 = vmax.f32 %v684, 0.0
        %v764 = vmax.f32 %v689, 0.0
        %v765 = vmax.f32 %v694, 0.0
        %v766 = vmax.f32 %v699, 0.0
        %v767 = vmax.f32 %v704, 0.0
        %v768 = vmax.f32 %v709, 0.0
        %v769 = vmax.f32 %v714, 0.0
        %v770 = vmax.f32 %v719, 0.0
        %vm771 = vcmask 130048
        %772 = vst.msk [vmem:[%s200] sm:$0xff] %vm771, %v722
        %773 = vst.msk [vmem:[%s200 + $0x8] sm:$0xff] %vm771, %v723
        %774 = vst.msk [vmem:[%s200 + $0x10] sm:$0xff] %vm771, %v724
        %775 = vst.msk [vmem:[%s200 + $0x18] sm:$0xff] %vm771, %v725
        %776 = vst.msk [vmem:[%s200 + $0x20] sm:$0xff] %vm771, %v726
        %777 = vst.msk [vmem:[%s200 + $0x28] sm:$0xff] %vm771, %v727
        %778 = vst.msk [vmem:[%s200 + $0x30] sm:$0xff] %vm771, %v728
        %779 = vst.msk [vmem:[%s200 + $0x38] sm:$0xff] %vm771, %v729
        %780 = vst.msk [vmem:[%s200 + $0x40] sm:$0xff] %vm771, %v730
        %781 = vst.msk [vmem:[%s200 + $0x48] sm:$0xff] %vm771, %v731
        %782 = vst.msk [vmem:[%s200 + $0x50] sm:$0xff] %vm771, %v732
        %783 = vst.msk [vmem:[%s200 + $0x58] sm:$0xff] %vm771, %v733
        %784 = vst.msk [vmem:[%s200 + $0x60] sm:$0xff] %vm771, %v734
        %785 = vst.msk [vmem:[%s200 + $0x68] sm:$0xff] %vm771, %v735
        %786 = vst.msk [vmem:[%s200 + $0x70] sm:$0xff] %vm771, %v736
        %787 = vst.msk [vmem:[%s200 + $0x78] sm:$0xff] %vm771, %v737
        %788 = vst.msk [vmem:[%s200 + $0x80] sm:$0xff] %vm771, %v738
        %789 = vst.msk [vmem:[%s200 + $0x88] sm:$0xff] %vm771, %v739
        %790 = vst.msk [vmem:[%s200 + $0x90] sm:$0xff] %vm771, %v740
        %791 = vst.msk [vmem:[%s200 + $0x98] sm:$0xff] %vm771, %v741
        %792 = vst.msk [vmem:[%s200 + $0xa0] sm:$0xff] %vm771, %v742
        %793 = vst.msk [vmem:[%s200 + $0xa8] sm:$0xff] %vm771, %v743
        %794 = vst.msk [vmem:[%s200 + $0xb0] sm:$0xff] %vm771, %v744
        %795 = vst.msk [vmem:[%s200 + $0xb8] sm:$0xff] %vm771, %v745
        %796 = vst.msk [vmem:[%s200 + $0xc0] sm:$0xff] %vm771, %v746
        %797 = vst.msk [vmem:[%s200 + $0xc8] sm:$0xff] %vm771, %v747
        %798 = vst.msk [vmem:[%s200 + $0xd0] sm:$0xff] %vm771, %v748
        %799 = vst.msk [vmem:[%s200 + $0xd8] sm:$0xff] %vm771, %v749
        %800 = vst.msk [vmem:[%s200 + $0xe0] sm:$0xff] %vm771, %v750
        %801 = vst.msk [vmem:[%s200 + $0xe8] sm:$0xff] %vm771, %v751
        %802 = vst.msk [vmem:[%s200 + $0xf0] sm:$0xff] %vm771, %v752
        %803 = vst.msk [vmem:[%s200 + $0xf8] sm:$0xff] %vm771, %v753
        %804 = vst.msk [vmem:[%s200 + $0x100] sm:$0xff] %vm771, %v754
        %805 = vst.msk [vmem:[%s200 + $0x108] sm:$0xff] %vm771, %v755
        %806 = vst.msk [vmem:[%s200 + $0x110] sm:$0xff] %vm771, %v756
        %807 = vst.msk [vmem:[%s200 + $0x118] sm:$0xff] %vm771, %v757
        %808 = vst.msk [vmem:[%s200 + $0x120] sm:$0xff] %vm771, %v758
        %809 = vst.msk [vmem:[%s200 + $0x128] sm:$0xff] %vm771, %v759
        %810 = vst.msk [vmem:[%s200 + $0x130] sm:$0xff] %vm771, %v760
        %811 = vst.msk [vmem:[%s200 + $0x138] sm:$0xff] %vm771, %v761
        %812 = vst.msk [vmem:[%s200 + $0x140] sm:$0xff] %vm771, %v762
        %813 = vst.msk [vmem:[%s200 + $0x148] sm:$0xff] %vm771, %v763
        %814 = vst.msk [vmem:[%s200 + $0x150] sm:$0xff] %vm771, %v764
        %815 = vst.msk [vmem:[%s200 + $0x158] sm:$0xff] %vm771, %v765
        %816 = vst.msk [vmem:[%s200 + $0x160] sm:$0xff] %vm771, %v766
        %817 = vst.msk [vmem:[%s200 + $0x168] sm:$0xff] %vm771, %v767
        %818 = vst.msk [vmem:[%s200 + $0x170] sm:$0xff] %vm771, %v768
        %819 = vst.msk [vmem:[%s200 + $0x178] sm:$0xff] %vm771, %v769
        %820 = vst.msk [vmem:[%s200 + $0x180] sm:$0xff] %vm771, %v770
        %s821 = smul.u32 49, %s16
        %p822 = scmp.lt.s32.totalorder %s821, 195
        %s823 = scalar_select %p822, %s821, 195
        %s824 = smul.addr %s823, 8
        %s825 = scalar_lea.vmem %s3, %s824
        // Predicated region
        $region41: #{cnn_forward.3} parent=31 // pred_check
          %p826 = pneg %p102
        $region42: #{cnn_forward.3} parent=31 // pred_check_branch
          %828 = sbr.rel (%p826) target = $region44
        $region43: #{cnn_forward.3} parent=31 // pred_region
          %s829 = smul.u32 49, %s16
        $region44: #{cnn_forward.3} parent=31 // pred_fallthru
          _
      $region32: #{cnn_forward.3} parent=5 // pred_fallthru
        _
      %p830 = scmp.le.s32.totalorder 2, %s11
      // Predicated region
      $region45: #{cnn_forward.3} parent=5 // pred_check
        %p831 = pneg %p830
      $region46: #{cnn_forward.3} parent=5 // pred_check_branch
        %833 = sbr.rel (%p831) target = $region48
      $region47: #{cnn_forward.3} parent=5 // pred_region
        %s834 = ssub.s32 %s11, 2
        // Predicated region
        $region49: #{cnn_forward.3} parent=47 // pred_check
          %p835 = pneg %p108
        $region50: #{cnn_forward.3} parent=47 // pred_check_branch
          %837 = sbr.rel (%p835) target = $region52
        $region51: #{cnn_forward.3} parent=47 // pred_region
          %s838 = smul.u32 49, %s17
          %p839 = scmp.lt.s32.totalorder %s838, 195
          %s840 = scalar_select %p839, %s838, 195
          %s841 = smul.addr %s840, 8
          %s842 = scalar_lea.vmem %s3, %s841
        $region52: #{cnn_forward.3} parent=47 // pred_fallthru
          _
      $region48: #{cnn_forward.3} parent=5 // pred_fallthru
        _
    $region6: #{cnn_forward.3} parent=1 // loop_footer
      %s15 = sadd.s32 1, %s11
    $region7: #{cnn_forward.3} parent=1 // loop_footer_branch
      %10 = sbr.rel target = $region3
    $region8: #{cnn_forward.3} parent=1 // loop_exit
      _
    %843 = vsyncpa [#allocation3], 1
    %s844 = scalar_lea.sflag [#allocation3], 1
    %845 = vsyncpa %s844, 1
    %846 = vsyncpa [#allocation5], 1

// kernel: cnn_forward.4
$region0: #{cnn_forward.4}
  #allocation0 [shape = 'u32[]', space=smem, size = 0x4, offset = 0x4, fixed_abs, tag = 'smem constant byte address 0x4 - core index']
  #allocation1 [shape = 'u32[144,128]{1,0:T(1,128)}', space=vmem, size = 0x12000, scoped, tag = 'internal scratch']
  %s0 = inlined_call_operand.vmem [shape: f32[1568,144], index: 0, kind: input, shape index: {}]
  %s1 = inlined_call_operand.vmem [shape: f32[144,32], index: 1, kind: input, shape index: {}]
  %s2 = inlined_call_operand.vmem [shape: f32[1,32], index: 2, kind: input, shape index: {}]
  %s3 = inlined_call_operand.vmem [shape: f32[1568,32], index: 3, kind: output, shape index: {}]
  %s4 = sld [smem:[#allocation0]]
  $region45: #{cnn_forward.4} parent=0
    _
  %s6 = ssub.s32 1, %s4
  %s7 = scalar_select 0, %s6, %s4
  loop: start=0, step=1, limit=6
  $region2: #{cnn_forward.4} parent=0 // loop_pre_header
    _
  $region3: #{cnn_forward.4} parent=0 // loop_header
    %s9 = sphi 0, %s13
    %p10 = scmp.ge.s32.totalorder %s9, 6
    %s19 = sphi 0, %s21
    %s22 = sphi 0, %s19
    %s23 = sphi 0, %s22
    %s39 = sphi 0, %s23
    %s43 = sphi 0, %s43
    %s45 = sphi 0, %s43
    %s46 = sphi 0, %s45
    %s60 = sphi 0, %s46
    %s64 = sphi 0, %s64
    %s66 = sphi 0, %s64
    %s67 = sphi 0, %s66
    %s81 = sphi 0, %s67
    %s87 = sphi 0, %s89
    %s90 = sphi 0, %s87
    %s91 = sphi 0, %s90
    %s107 = sphi 0, %s91
  $region4: #{cnn_forward.4} parent=0 // loop_header_branch
    %12 = sbr.rel (%p10) target = $region8
  $region5: #{cnn_forward.4} parent=0 // loop_body
    %s14 = ssub.s32 %s9, 1
    %s15 = ssub.s32 %s9, 2
    %s16 = sadd.s32 %s9, 1
    %s17 = ssub.s32 %s9, %s16
    %p18 = scmp.eq.s32.totalorder %s17, 0
    %s20 = sadd.s32 %s19, 1
    %s21 = scalar_select %p18, %s19, %s20
    %p24 = pneg %p18
    %p25 = scmp.eq.s32.totalorder %s9, 3
    %p26 = por %p24, %p25
    %p27 = scmp.ne.s32.totalorder %s19, %s22
    %p28 = scmp.eq.s32.totalorder %s9, 0
    %p29 = por %p27, %p28
    %p30 = scmp.ne.s32.totalorder %s19, %s22
    %p31 = scmp.eq.s32.totalorder %s14, 3
    %p32 = por %p30, %p31
    %p33 = scmp.ne.s32.totalorder %s22, %s23
    %p34 = scmp.eq.s32.totalorder %s14, 0
    %p35 = por %p33, %p34
    %p36 = scmp.ne.s32.totalorder %s22, %s23
    %p37 = scmp.eq.s32.totalorder %s15, 3
    %p38 = por %p36, %p37
    %p40 = scmp.ne.s32.totalorder %s23, %s39
    %p41 = scmp.eq.s32.totalorder %s15, 0
    %p42 = por %p40, %p41
    %s44 = sadd.s32 %s43, 1
    %p47 = scmp.eq.s32.totalorder %s9, 3
    %p48 = scmp.ne.s32.totalorder %s43, %s45
    %p49 = scmp.eq.s32.totalorder %s9, 0
    %p50 = por %p48, %p49
    %p51 = scmp.ne.s32.totalorder %s43, %s45
    %p52 = scmp.eq.s32.totalorder %s14, 3
    %p53 = por %p51, %p52
    %p54 = scmp.ne.s32.totalorder %s45, %s46
    %p55 = scmp.eq.s32.totalorder %s14, 0
    %p56 = por %p54, %p55
    %p57 = scmp.ne.s32.totalorder %s45, %s46
    %p58 = scmp.eq.s32.totalorder %s15, 3
    %p59 = por %p57, %p58
    %p61 = scmp.ne.s32.totalorder %s46, %s60
    %p62 = scmp.eq.s32.totalorder %s15, 0
    %p63 = por %p61, %p62
    %s65 = sadd.s32 %s64, 1
    %p68 = scmp.eq.s32.totalorder %s9, 3
    %p69 = scmp.ne.s32.totalorder %s64, %s66
    %p70 = scmp.eq.s32.totalorder %s9, 0
    %p71 = por %p69, %p70
    %p72 = scmp.ne.s32.totalorder %s64, %s66
    %p73 = scmp.eq.s32.totalorder %s14, 3
    %p74 = por %p72, %p73
    %p75 = scmp.ne.s32.totalorder %s66, %s67
    %p76 = scmp.eq.s32.totalorder %s14, 0
    %p77 = por %p75, %p76
    %p78 = scmp.ne.s32.totalorder %s66, %s67
    %p79 = scmp.eq.s32.totalorder %s15, 3
    %p80 = por %p78, %p79
    %p82 = scmp.ne.s32.totalorder %s67, %s81
    %p83 = scmp.eq.s32.totalorder %s15, 0
    %p84 = por %p82, %p83
    %s85 = ssub.s32 %s9, %s16
    %p86 = scmp.eq.s32.totalorder %s85, 0
    %s88 = sadd.s32 %s87, 1
    %s89 = scalar_select %p86, %s87, %s88
    %p92 = pneg %p86
    %p93 = scmp.eq.s32.totalorder %s9, 3
    %p94 = por %p92, %p93
    %p95 = scmp.ne.s32.totalorder %s87, %s90
    %p96 = scmp.eq.s32.totalorder %s9, 0
    %p97 = por %p95, %p96
    %p98 = scmp.ne.s32.totalorder %s87, %s90
    %p99 = scmp.eq.s32.totalorder %s14, 3
    %p100 = por %p98, %p99
    %p101 = scmp.ne.s32.totalorder %s90, %s91
    %p102 = scmp.eq.s32.totalorder %s14, 0
    %p103 = por %p101, %p102
    %p104 = scmp.ne.s32.totalorder %s90, %s91
    %p105 = scmp.eq.s32.totalorder %s15, 3
    %p106 = por %p104, %p105
    %p108 = scmp.ne.s32.totalorder %s91, %s107
    %p109 = scmp.eq.s32.totalorder %s15, 0
    %p110 = por %p108, %p109
    %p111 = scmp.le.s32.totalorder 1, %s9
    %p112 = scmp.lt.s32.totalorder %s9, 5
    %p113 = pnand %p111, %p112
    %p114 = pneg %p113
    // Predicated region
    $region9: #{cnn_forward.4} parent=5 // pred_check
      _
    $region10: #{cnn_forward.4} parent=5 // pred_check_branch
      %116 = sbr.rel (%p113) target = $region12
    $region11: #{cnn_forward.4} parent=5 // pred_region
      %s117 = ssub.s32 %s9, 1
      // Predicated region
      $region13: #{cnn_forward.4} parent=11 // pred_check
        %p118 = pneg %p56
      $region14: #{cnn_forward.4} parent=11 // pred_check_branch
        %120 = sbr.rel (%p118) target = $region16
      $region15: #{cnn_forward.4} parent=11 // pred_region
        _
      $region16: #{cnn_forward.4} parent=11 // pred_fallthru
        _
      // Predicated region
      $region17: #{cnn_forward.4} parent=11 // pred_check
        %p121 = pneg %p77
      $region18: #{cnn_forward.4} parent=11 // pred_check_branch
        %123 = sbr.rel (%p121) target = $region20
      $region19: #{cnn_forward.4} parent=11 // pred_region
        _
      $region20: #{cnn_forward.4} parent=11 // pred_fallthru
        _
    $region12: #{cnn_forward.4} parent=5 // pred_fallthru
      _
    %p124 = scmp.lt.s32.totalorder %s9, 4
    // Predicated region
    $region21: #{cnn_forward.4} parent=5 // pred_check
      %p125 = pneg %p124
    $region22: #{cnn_forward.4} parent=5 // pred_check_branch
      %127 = sbr.rel (%p125) target = $region24
    $region23: #{cnn_forward.4} parent=5 // pred_region
      // Predicated region
      $region25: #{cnn_forward.4} parent=23 // pred_check
        %p128 = pneg %p29
      $region26: #{cnn_forward.4} parent=23 // pred_check_branch
        %130 = sbr.rel (%p128) target = $region28
      $region27: #{cnn_forward.4} parent=23 // pred_region
        %s131 = smul.u32 49, %s9
        %p132 = scmp.lt.s32.totalorder %s131, 195
        %s133 = scalar_select %p132, %s131, 195
        %s134 = smul.addr %s133, 2
        %s135 = smul.addr %s134, 8
        %s136 = scalar_lea.vmem %s0, %s135
        %s137 = smul.u32 49, %s9
      $region28: #{cnn_forward.4} parent=23 // pred_fallthru
        _
    $region24: #{cnn_forward.4} parent=5 // pred_fallthru
      _
    %p138 = scmp.le.s32.totalorder 1, %s9
    %p139 = scmp.lt.s32.totalorder %s9, 5
    %p140 = pnand %p138, %p139
    %p141 = pneg %p140
    // Predicated region
    $region29: #{cnn_forward.4} parent=5 // pred_check
      _
    $region30: #{cnn_forward.4} parent=5 // pred_check_branch
      %143 = sbr.rel (%p140) target = $region32
    $region31: #{cnn_forward.4} parent=5 // pred_region
      %s144 = ssub.s32 %s9, 1
      %s145 = smul.u32 49, %s14
      %p146 = scmp.lt.s32.totalorder %s145, 195
      %s147 = scalar_select %p146, %s145, 195
      %s148 = smul.addr %s147, 2
      %s149 = smul.addr %s148, 8
      %s150 = scalar_lea.vmem %s0, %s149
      %p151 = pneg %p35
      %p152 = pneg %p32
      %p153 = pneg %p56
      %p154 = pneg %p53
      %p155 = pneg %p77
      %p156 = pneg %p74
      %p157 = pneg %p103
      %p158 = pneg %p100
      %s159 = smul.u32 49, %s14
      %p160 = scmp.lt.s32.totalorder %s159, 195
      %s161 = scalar_select %p160, %s159, 195
      %s162 = smul.addr %s161, 8
      %s163 = scalar_lea.vmem %s3, %s162
      %s164 = smul.u32 49, %s14
      %p165 = scmp.lt.s32.totalorder %s164, 195
      %s166 = scalar_select %p165, %s164, 195
      %s167 = smul.addr %s166, 2
      %s168 = smul.addr %s167, 8
      %s169 = scalar_lea.vmem %s0, %s168
      %s170 = smul.u32 49, %s14
      %s171 = smul.u32 49, %s14
      %p172 = scmp.lt.s32.totalorder %s171, 195
      %s173 = scalar_select %p172, %s171, 195
      %s174 = smul.addr %s173, 8
      %s175 = scalar_lea.vmem %s3, %s174
      %s176 = smul.u32 49, %s14
      %v177 = vld [vmem:[%s169] sm:$0xff]
      %v178 = vld [vmem:[%s169 + $0x8] sm:$0xff]
      %v179 = vld [vmem:[%s169 + $0x10] sm:$0xff]
      %v180 = vld [vmem:[%s169 + $0x18] sm:$0xff]
      %v181 = vld [vmem:[%s169 + $0x20] sm:$0xff]
      %v182 = vld [vmem:[%s169 + $0x28] sm:$0xff]
      %v183 = vld [vmem:[%s169 + $0x30] sm:$0xff]
      %v184 = vld [vmem:[%s169 + $0x38] sm:$0xff]
      %v185 = vld [vmem:[%s169 + $0x40] sm:$0xff]
      %v186 = vld [vmem:[%s169 + $0x48] sm:$0xff]
      %v187 = vld [vmem:[%s169 + $0x50] sm:$0xff]
      %v188 = vld [vmem:[%s169 + $0x58] sm:$0xff]
      %v189 = vld [vmem:[%s169 + $0x60] sm:$0xff]
      %v190 = vld [vmem:[%s169 + $0x68] sm:$0xff]
      %v191 = vld [vmem:[%s169 + $0x70] sm:$0xff]
      %v192 = vld [vmem:[%s169 + $0x78] sm:$0xff]
      %v193 = vld [vmem:[%s169 + $0x80] sm:$0xff]
      %v194 = vld [vmem:[%s169 + $0x88] sm:$0xff]
      %v195 = vld [vmem:[%s169 + $0x90] sm:$0xff]
      %v196 = vld [vmem:[%s169 + $0x98] sm:$0xff]
      %v197 = vld [vmem:[%s169 + $0xa0] sm:$0xff]
      %v198 = vld [vmem:[%s169 + $0xa8] sm:$0xff]
      %v199 = vld [vmem:[%s169 + $0xb0] sm:$0xff]
      %v200 = vld [vmem:[%s169 + $0xb8] sm:$0xff]
      %v201 = vld [vmem:[%s169 + $0xc0] sm:$0xff]
      %v202 = vld [vmem:[%s169 + $0xc8] sm:$0xff]
      %v203 = vld [vmem:[%s169 + $0xd0] sm:$0xff]
      %v204 = vld [vmem:[%s169 + $0xd8] sm:$0xff]
      %v205 = vld [vmem:[%s169 + $0xe0] sm:$0xff]
      %v206 = vld [vmem:[%s169 + $0xe8] sm:$0xff]
      %v207 = vld [vmem:[%s169 + $0xf0] sm:$0xff]
      %v208 = vld [vmem:[%s169 + $0xf8] sm:$0xff]
      %v209 = vld [vmem:[%s169 + $0x100] sm:$0xff]
      %v210 = vld [vmem:[%s169 + $0x108] sm:$0xff]
      %v211 = vld [vmem:[%s169 + $0x110] sm:$0xff]
      %v212 = vld [vmem:[%s169 + $0x118] sm:$0xff]
      %v213 = vld [vmem:[%s169 + $0x120] sm:$0xff]
      %v214 = vld [vmem:[%s169 + $0x128] sm:$0xff]
      %v215 = vld [vmem:[%s169 + $0x130] sm:$0xff]
      %v216 = vld [vmem:[%s169 + $0x138] sm:$0xff]
      %v217 = vld [vmem:[%s169 + $0x140] sm:$0xff]
      %v218 = vld [vmem:[%s169 + $0x148] sm:$0xff]
      %v219 = vld [vmem:[%s169 + $0x150] sm:$0xff]
      %v220 = vld [vmem:[%s169 + $0x158] sm:$0xff]
      %v221 = vld [vmem:[%s169 + $0x160] sm:$0xff]
      %v222 = vld [vmem:[%s169 + $0x168] sm:$0xff]
      %v223 = vld [vmem:[%s169 + $0x170] sm:$0xff]
      %v224 = vld [vmem:[%s169 + $0x178] sm:$0xff]
      %v225 = vld [vmem:[%s169 + $0x180] sm:$0xff]
      %v226 = vld [vmem:[%s169 + $0x188] sm:$0xff]
      %v227 = vld [vmem:[%s169 + $0x190] sm:$0xff]
      %v228 = vld [vmem:[%s169 + $0x198] sm:$0xff]
      %v229 = vld [vmem:[%s169 + $0x1a0] sm:$0xff]
      %v230 = vld [vmem:[%s169 + $0x1a8] sm:$0xff]
      %v231 = vld [vmem:[%s169 + $0x1b0] sm:$0xff]
      %v232 = vld [vmem:[%s169 + $0x1b8] sm:$0xff]
      %v233 = vld [vmem:[%s169 + $0x1c0] sm:$0xff]
      %v234 = vld [vmem:[%s169 + $0x1c8] sm:$0xff]
      %v235 = vld [vmem:[%s169 + $0x1d0] sm:$0xff]
      %v236 = vld [vmem:[%s169 + $0x1d8] sm:$0xff]
      %v237 = vld [vmem:[%s169 + $0x1e0] sm:$0xff]
      %v238 = vld [vmem:[%s169 + $0x1e8] sm:$0xff]
      %v239 = vld [vmem:[%s169 + $0x1f0] sm:$0xff]
      %v240 = vld [vmem:[%s169 + $0x1f8] sm:$0xff]
      %v241 = vld [vmem:[%s169 + $0x200] sm:$0xff]
      %v242 = vld [vmem:[%s169 + $0x208] sm:$0xff]
      %v243 = vld [vmem:[%s169 + $0x210] sm:$0xff]
      %v244 = vld [vmem:[%s169 + $0x218] sm:$0xff]
      %v245 = vld [vmem:[%s169 + $0x220] sm:$0xff]
      %v246 = vld [vmem:[%s169 + $0x228] sm:$0xff]
      %v247 = vld [vmem:[%s169 + $0x230] sm:$0xff]
      %v248 = vld [vmem:[%s169 + $0x238] sm:$0xff]
      %v249 = vld [vmem:[%s169 + $0x240] sm:$0xff]
      %v250 = vld [vmem:[%s169 + $0x248] sm:$0xff]
      %v251 = vld [vmem:[%s169 + $0x250] sm:$0xff]
      %v252 = vld [vmem:[%s169 + $0x258] sm:$0xff]
      %v253 = vld [vmem:[%s169 + $0x260] sm:$0xff]
      %v254 = vld [vmem:[%s169 + $0x268] sm:$0xff]
      %v255 = vld [vmem:[%s169 + $0x270] sm:$0xff]
      %v256 = vld [vmem:[%s169 + $0x278] sm:$0xff]
      %v257 = vld [vmem:[%s169 + $0x280] sm:$0xff]
      %v258 = vld [vmem:[%s169 + $0x288] sm:$0xff]
      %v259 = vld [vmem:[%s169 + $0x290] sm:$0xff]
      %v260 = vld [vmem:[%s169 + $0x298] sm:$0xff]
      %v261 = vld [vmem:[%s169 + $0x2a0] sm:$0xff]
      %v262 = vld [vmem:[%s169 + $0x2a8] sm:$0xff]
      %v263 = vld [vmem:[%s169 + $0x2b0] sm:$0xff]
      %v264 = vld [vmem:[%s169 + $0x2b8] sm:$0xff]
      %v265 = vld [vmem:[%s169 + $0x2c0] sm:$0xff]
      %v266 = vld [vmem:[%s169 + $0x2c8] sm:$0xff]
      %v267 = vld [vmem:[%s169 + $0x2d0] sm:$0xff]
      %v268 = vld [vmem:[%s169 + $0x2d8] sm:$0xff]
      %v269 = vld [vmem:[%s169 + $0x2e0] sm:$0xff]
      %v270 = vld [vmem:[%s169 + $0x2e8] sm:$0xff]
      %v271 = vld [vmem:[%s169 + $0x2f0] sm:$0xff]
      %v272 = vld [vmem:[%s169 + $0x2f8] sm:$0xff]
      %v273 = vld [vmem:[%s169 + $0x300] sm:$0xff]
      %v274 = vld [vmem:[%s169 + $0x308] sm:$0xff]
      %v275 = vld [vmem:[%s1] sm:$0xff]
      %v276 = vld [vmem:[%s1 + $0x8] sm:$0xff]
      %v277 = vld [vmem:[%s1 + $0x10] sm:$0xff]
      %v278 = vld [vmem:[%s1 + $0x18] sm:$0xff]
      %v279 = vld [vmem:[%s1 + $0x20] sm:$0xff]
      %v280 = vld [vmem:[%s1 + $0x28] sm:$0xff]
      %v281 = vld [vmem:[%s1 + $0x30] sm:$0xff]
      %v282 = vld [vmem:[%s1 + $0x38] sm:$0xff]
      %v283 = vld [vmem:[%s1 + $0x40] sm:$0xff]
      %v284 = vld [vmem:[%s1 + $0x48] sm:$0xff]
      %v285 = vld [vmem:[%s1 + $0x50] sm:$0xff]
      %v286 = vld [vmem:[%s1 + $0x58] sm:$0xff]
      %v287 = vld [vmem:[%s1 + $0x60] sm:$0xff]
      %v288 = vld [vmem:[%s1 + $0x68] sm:$0xff]
      %v289 = vld [vmem:[%s1 + $0x70] sm:$0xff]
      %v290 = vld [vmem:[%s1 + $0x78] sm:$0xff]
      %v291 = vld [vmem:[%s1 + $0x80] sm:$0xff]
      %v292 = vld [vmem:[%s1 + $0x88] sm:$0xff]
      %v293 = vld [vmem:[%s2] sm:$0x1]
      %v295 = vlaneseq
      %v296 = vshrl.u32 %v295, 7
      %v297 = vsub.s32 0, %v296
      %v298 = vrot.slane %v293, %v297
      %vm300 = vcmask 130048
      %v302 = vsel %vm300, %v178, 0
      %v305 = vsel %vm300, %v180, 0
      %v308 = vsel %vm300, %v182, 0
      %v311 = vsel %vm300, %v184, 0
      %v314 = vsel %vm300, %v186, 0
      %v317 = vsel %vm300, %v188, 0
      %v320 = vsel %vm300, %v190, 0
      %v323 = vsel %vm300, %v192, 0
      %v326 = vsel %vm300, %v194, 0
      %v329 = vsel %vm300, %v196, 0
      %v332 = vsel %vm300, %v198, 0
      %v335 = vsel %vm300, %v200, 0
      %v338 = vsel %vm300, %v202, 0
      %v341 = vsel %vm300, %v204, 0
      %v344 = vsel %vm300, %v206, 0
      %v347 = vsel %vm300, %v208, 0
      %v350 = vsel %vm300, %v210, 0
      %v353 = vsel %vm300, %v212, 0
      %v356 = vsel %vm300, %v214, 0
      %v359 = vsel %vm300, %v216, 0
      %v362 = vsel %vm300, %v218, 0
      %v365 = vsel %vm300, %v220, 0
      %v368 = vsel %vm300, %v222, 0
      %v371 = vsel %vm300, %v224, 0
      %v374 = vsel %vm300, %v226, 0
      %v377 = vsel %vm300, %v228, 0
      %v380 = vsel %vm300, %v230, 0
      %v383 = vsel %vm300, %v232, 0
      %v386 = vsel %vm300, %v234, 0
      %v389 = vsel %vm300, %v236, 0
      %v392 = vsel %vm300, %v238, 0
      %v395 = vsel %vm300, %v240, 0
      %v398 = vsel %vm300, %v242, 0
      %v401 = vsel %vm300, %v244, 0
      %v404 = vsel %vm300, %v246, 0
      %v407 = vsel %vm300, %v248, 0
      %v410 = vsel %vm300, %v250, 0
      %v413 = vsel %vm300, %v252, 0
      %v416 = vsel %vm300, %v254, 0
      %v419 = vsel %vm300, %v256, 0
      %v422 = vsel %vm300, %v258, 0
      %v425 = vsel %vm300, %v260, 0
      %v428 = vsel %vm300, %v262, 0
      %v431 = vsel %vm300, %v264, 0
      %v434 = vsel %vm300, %v266, 0
      %v437 = vsel %vm300, %v268, 0
      %v440 = vsel %vm300, %v270, 0
      %v443 = vsel %vm300, %v272, 0
      %v446 = vsel %vm300, %v274, 0
      %448 = vmatprep.subr.mxu0 0.0
      %449 = vmatpush1.msra.mxu0 %v290
      %450 = vmatprep.subr.mxu0 0.0
      %451 = vmatpush1.msra.mxu0 %v289
      %452 = vmatprep.subr.mxu0 0.0
      %453 = vmatpush1.msra.mxu0 %v288
      %454 = vmatprep.subr.mxu0 0.0
      %455 = vmatpush1.msra.mxu0 %v287
      %456 = vmatprep.subr.mxu0 0.0
      %457 = vmatpush1.msra.mxu0 %v286
      %458 = vmatprep.subr.mxu0 0.0
      %459 = vmatpush1.msra.mxu0 %v285
      %460 = vmatprep.subr.mxu0 0.0
      %461 = vmatpush1.msra.mxu0 %v284
      %462 = vmatprep.subr.mxu0 0.0
      %463 = vmatpush1.msra.mxu0 %v283
      %464 = vmatprep.subr.mxu0 0.0
      %465 = vmatpush1.msra.mxu0 %v282
      %466 = vmatprep.subr.mxu0 0.0
      %467 = vmatpush1.msra.mxu0 %v281
      %468 = vmatprep.subr.mxu0 0.0
      %469 = vmatpush1.msra.mxu0 %v280
      %470 = vmatprep.subr.mxu0 0.0
      %471 = vmatpush1.msra.mxu0 %v279
      %472 = vmatprep.subr.mxu0 0.0
      %473 = vmatpush1.msra.mxu0 %v278
      %474 = vmatprep.subr.mxu0 0.0
      %475 = vmatpush1.msra.mxu0 %v277
      %476 = vmatprep.subr.mxu0 0.0
      %477 = vmatpush1.msra.mxu0 %v276
      %478 = vmatprep.subr.mxu0 0.0
      %479 = vmatpush1.msra.mxu0 %v275
      %480 = vmatprep.subr.mxu0 0.0
      %481 = vmatpush2.msra.mxu0 0.0
      %482 = vmatprep.subr.mxu0 0.0
      %483 = vmatpush2.msra.mxu0 0.0
      %484 = vmatprep.subr.mxu0 0.0
      %485 = vmatpush2.msra.mxu0 0.0
      %486 = vmatprep.subr.mxu0 0.0
      %487 = vmatpush2.msra.mxu0 0.0
      %488 = vmatprep.subr.mxu0 0.0
      %489 = vmatpush2.msra.mxu0 0.0
      %490 = vmatprep.subr.mxu0 0.0
      %491 = vmatpush2.msra.mxu0 0.0
      %492 = vmatprep.subr.mxu0 0.0
      %493 = vmatpush2.msra.mxu0 0.0
      %494 = vmatprep.subr.mxu0 0.0
      %495 = vmatpush2.msra.mxu0 0.0
      %496 = vmatprep.subr.mxu0 0.0
      %497 = vmatpush2.msra.mxu0 0.0
      %498 = vmatprep.subr.mxu0 0.0
      %499 = vmatpush2.msra.mxu0 0.0
      %500 = vmatprep.subr.mxu0 0.0
      %501 = vmatpush2.msra.mxu0 0.0
      %502 = vmatprep.subr.mxu0 0.0
      %503 = vmatpush2.msra.mxu0 0.0
      %504 = vmatprep.subr.mxu0 0.0
      %505 = vmatpush2.msra.mxu0 0.0
      %506 = vmatprep.subr.mxu0 0.0
      %507 = vmatpush2.msra.mxu0 0.0
      %508 = vmatprep.subr.mxu0 0.0
      %509 = vmatpush2.msra.mxu0 %v292
      %510 = vmatprep.subr.mxu0 0.0
      %511 = vmatpush2.msra.mxu0 %v291
      %512 = vmatprep.mubr.f32.mxu0 %v302
      %513 = vmatmul.mubr.f32.gmra.mxu0 %v177
      %v514 = vpop.f32.mrf.mxu0
      %v515 = vadd.f32 %v298, %v514
      %v516 = vpop.f32.mrf.mxu0
      %517 = vmatprep.mubr.f32.mxu0 %v305
      %518 = vmatmul.mubr.f32.gmra.mxu0 %v179
      %v519 = vpop.f32.mrf.mxu0
      %v520 = vadd.f32 %v298, %v519
      %v521 = vpop.f32.mrf.mxu0
      %522 = vmatprep.mubr.f32.mxu0 %v308
      %523 = vmatmul.mubr.f32.gmra.mxu0 %v181
      %v524 = vpop.f32.mrf.mxu0
      %v525 = vadd.f32 %v298, %v524
      %v526 = vpop.f32.mrf.mxu0
      %527 = vmatprep.mubr.f32.mxu0 %v311
      %528 = vmatmul.mubr.f32.gmra.mxu0 %v183
      %v529 = vpop.f32.mrf.mxu0
      %v530 = vadd.f32 %v298, %v529
      %v531 = vpop.f32.mrf.mxu0
      %532 = vmatprep.mubr.f32.mxu0 %v314
      %533 = vmatmul.mubr.f32.gmra.mxu0 %v185
      %v534 = vpop.f32.mrf.mxu0
      %v535 = vadd.f32 %v298, %v534
      %v536 = vpop.f32.mrf.mxu0
      %537 = vmatprep.mubr.f32.mxu0 %v317
      %538 = vmatmul.mubr.f32.gmra.mxu0 %v187
      %v539 = vpop.f32.mrf.mxu0
      %v540 = vadd.f32 %v298, %v539
      %v541 = vpop.f32.mrf.mxu0
      %542 = vmatprep.mubr.f32.mxu0 %v320
      %543 = vmatmul.mubr.f32.gmra.mxu0 %v189
      %v544 = vpop.f32.mrf.mxu0
      %v545 = vadd.f32 %v298, %v544
      %v546 = vpop.f32.mrf.mxu0
      %547 = vmatprep.mubr.f32.mxu0 %v323
      %548 = vmatmul.mubr.f32.gmra.mxu0 %v191
      %v549 = vpop.f32.mrf.mxu0
      %v550 = vadd.f32 %v298, %v549
      %v551 = vpop.f32.mrf.mxu0
      %552 = vmatprep.mubr.f32.mxu0 %v326
      %553 = vmatmul.mubr.f32.gmra.mxu0 %v193
      %v554 = vpop.f32.mrf.mxu0
      %v555 = vadd.f32 %v298, %v554
      %v556 = vpop.f32.mrf.mxu0
      %557 = vmatprep.mubr.f32.mxu0 %v329
      %558 = vmatmul.mubr.f32.gmra.mxu0 %v195
      %v559 = vpop.f32.mrf.mxu0
      %v560 = vadd.f32 %v298, %v559
      %v561 = vpop.f32.mrf.mxu0
      %562 = vmatprep.mubr.f32.mxu0 %v332
      %563 = vmatmul.mubr.f32.gmra.mxu0 %v197
      %v564 = vpop.f32.mrf.mxu0
      %v565 = vadd.f32 %v298, %v564
      %v566 = vpop.f32.mrf.mxu0
      %567 = vmatprep.mubr.f32.mxu0 %v335
      %568 = vmatmul.mubr.f32.gmra.mxu0 %v199
      %v569 = vpop.f32.mrf.mxu0
      %v570 = vadd.f32 %v298, %v569
      %v571 = vpop.f32.mrf.mxu0
      %572 = vmatprep.mubr.f32.mxu0 %v338
      %573 = vmatmul.mubr.f32.gmra.mxu0 %v201
      %v574 = vpop.f32.mrf.mxu0
      %v575 = vadd.f32 %v298, %v574
      %v576 = vpop.f32.mrf.mxu0
      %577 = vmatprep.mubr.f32.mxu0 %v341
      %578 = vmatmul.mubr.f32.gmra.mxu0 %v203
      %v579 = vpop.f32.mrf.mxu0
      %v580 = vadd.f32 %v298, %v579
      %v581 = vpop.f32.mrf.mxu0
      %582 = vmatprep.mubr.f32.mxu0 %v344
      %583 = vmatmul.mubr.f32.gmra.mxu0 %v205
      %v584 = vpop.f32.mrf.mxu0
      %v585 = vadd.f32 %v298, %v584
      %v586 = vpop.f32.mrf.mxu0
      %587 = vmatprep.mubr.f32.mxu0 %v347
      %588 = vmatmul.mubr.f32.gmra.mxu0 %v207
      %v589 = vpop.f32.mrf.mxu0
      %v590 = vadd.f32 %v298, %v589
      %v591 = vpop.f32.mrf.mxu0
      %592 = vmatprep.mubr.f32.mxu0 %v350
      %593 = vmatmul.mubr.f32.gmra.mxu0 %v209
      %v594 = vpop.f32.mrf.mxu0
      %v595 = vadd.f32 %v298, %v594
      %v596 = vpop.f32.mrf.mxu0
      %597 = vmatprep.mubr.f32.mxu0 %v353
      %598 = vmatmul.mubr.f32.gmra.mxu0 %v211
      %v599 = vpop.f32.mrf.mxu0
      %v600 = vadd.f32 %v298, %v599
      %v601 = vpop.f32.mrf.mxu0
      %602 = vmatprep.mubr.f32.mxu0 %v356
      %603 = vmatmul.mubr.f32.gmra.mxu0 %v213
      %v604 = vpop.f32.mrf.mxu0
      %v605 = vadd.f32 %v298, %v604
      %v606 = vpop.f32.mrf.mxu0
      %607 = vmatprep.mubr.f32.mxu0 %v359
      %608 = vmatmul.mubr.f32.gmra.mxu0 %v215
      %v609 = vpop.f32.mrf.mxu0
      %v610 = vadd.f32 %v298, %v609
      %v611 = vpop.f32.mrf.mxu0
      %612 = vmatprep.mubr.f32.mxu0 %v362
      %613 = vmatmul.mubr.f32.gmra.mxu0 %v217
      %v614 = vpop.f32.mrf.mxu0
      %v615 = vadd.f32 %v298, %v614
      %v616 = vpop.f32.mrf.mxu0
      %617 = vmatprep.mubr.f32.mxu0 %v365
      %618 = vmatmul.mubr.f32.gmra.mxu0 %v219
      %v619 = vpop.f32.mrf.mxu0
      %v620 = vadd.f32 %v298, %v619
      %v621 = vpop.f32.mrf.mxu0
      %622 = vmatprep.mubr.f32.mxu0 %v368
      %623 = vmatmul.mubr.f32.gmra.mxu0 %v221
      %v624 = vpop.f32.mrf.mxu0
      %v625 = vadd.f32 %v298, %v624
      %v626 = vpop.f32.mrf.mxu0
      %627 = vmatprep.mubr.f32.mxu0 %v371
      %628 = vmatmul.mubr.f32.gmra.mxu0 %v223
      %v629 = vpop.f32.mrf.mxu0
      %v630 = vadd.f32 %v298, %v629
      %v631 = vpop.f32.mrf.mxu0
      %632 = vmatprep.mubr.f32.mxu0 %v374
      %633 = vmatmul.mubr.f32.gmra.mxu0 %v225
      %v634 = vpop.f32.mrf.mxu0
      %v635 = vadd.f32 %v298, %v634
      %v636 = vpop.f32.mrf.mxu0
      %637 = vmatprep.mubr.f32.mxu0 %v377
      %638 = vmatmul.mubr.f32.gmra.mxu0 %v227
      %v639 = vpop.f32.mrf.mxu0
      %v640 = vadd.f32 %v298, %v639
      %v641 = vpop.f32.mrf.mxu0
      %642 = vmatprep.mubr.f32.mxu0 %v380
      %643 = vmatmul.mubr.f32.gmra.mxu0 %v229
      %v644 = vpop.f32.mrf.mxu0
      %v645 = vadd.f32 %v298, %v644
      %v646 = vpop.f32.mrf.mxu0
      %647 = vmatprep.mubr.f32.mxu0 %v383
      %648 = vmatmul.mubr.f32.gmra.mxu0 %v231
      %v649 = vpop.f32.mrf.mxu0
      %v650 = vadd.f32 %v298, %v649
      %v651 = vpop.f32.mrf.mxu0
      %652 = vmatprep.mubr.f32.mxu0 %v386
      %653 = vmatmul.mubr.f32.gmra.mxu0 %v233
      %v654 = vpop.f32.mrf.mxu0
      %v655 = vadd.f32 %v298, %v654
      %v656 = vpop.f32.mrf.mxu0
      %657 = vmatprep.mubr.f32.mxu0 %v389
      %658 = vmatmul.mubr.f32.gmra.mxu0 %v235
      %v659 = vpop.f32.mrf.mxu0
      %v660 = vadd.f32 %v298, %v659
      %v661 = vpop.f32.mrf.mxu0
      %662 = vmatprep.mubr.f32.mxu0 %v392
      %663 = vmatmul.mubr.f32.gmra.mxu0 %v237
      %v664 = vpop.f32.mrf.mxu0
      %v665 = vadd.f32 %v298, %v664
      %v666 = vpop.f32.mrf.mxu0
      %667 = vmatprep.mubr.f32.mxu0 %v395
      %668 = vmatmul.mubr.f32.gmra.mxu0 %v239
      %v669 = vpop.f32.mrf.mxu0
      %v670 = vadd.f32 %v298, %v669
      %v671 = vpop.f32.mrf.mxu0
      %672 = vmatprep.mubr.f32.mxu0 %v398
      %673 = vmatmul.mubr.f32.gmra.mxu0 %v241
      %v674 = vpop.f32.mrf.mxu0
      %v675 = vadd.f32 %v298, %v674
      %v676 = vpop.f32.mrf.mxu0
      %677 = vmatprep.mubr.f32.mxu0 %v401
      %678 = vmatmul.mubr.f32.gmra.mxu0 %v243
      %v679 = vpop.f32.mrf.mxu0
      %v680 = vadd.f32 %v298, %v679
      %v681 = vpop.f32.mrf.mxu0
      %682 = vmatprep.mubr.f32.mxu0 %v404
      %683 = vmatmul.mubr.f32.gmra.mxu0 %v245
      %v684 = vpop.f32.mrf.mxu0
      %v685 = vadd.f32 %v298, %v684
      %v686 = vpop.f32.mrf.mxu0
      %687 = vmatprep.mubr.f32.mxu0 %v407
      %688 = vmatmul.mubr.f32.gmra.mxu0 %v247
      %v689 = vpop.f32.mrf.mxu0
      %v690 = vadd.f32 %v298, %v689
      %v691 = vpop.f32.mrf.mxu0
      %692 = vmatprep.mubr.f32.mxu0 %v410
      %693 = vmatmul.mubr.f32.gmra.mxu0 %v249
      %v694 = vpop.f32.mrf.mxu0
      %v695 = vadd.f32 %v298, %v694
      %v696 = vpop.f32.mrf.mxu0
      %697 = vmatprep.mubr.f32.mxu0 %v413
      %698 = vmatmul.mubr.f32.gmra.mxu0 %v251
      %v699 = vpop.f32.mrf.mxu0
      %v700 = vadd.f32 %v298, %v699
      %v701 = vpop.f32.mrf.mxu0
      %702 = vmatprep.mubr.f32.mxu0 %v416
      %703 = vmatmul.mubr.f32.gmra.mxu0 %v253
      %v704 = vpop.f32.mrf.mxu0
      %v705 = vadd.f32 %v298, %v704
      %v706 = vpop.f32.mrf.mxu0
      %707 = vmatprep.mubr.f32.mxu0 %v419
      %708 = vmatmul.mubr.f32.gmra.mxu0 %v255
      %v709 = vpop.f32.mrf.mxu0
      %v710 = vadd.f32 %v298, %v709
      %v711 = vpop.f32.mrf.mxu0
      %712 = vmatprep.mubr.f32.mxu0 %v422
      %713 = vmatmul.mubr.f32.gmra.mxu0 %v257
      %v714 = vpop.f32.mrf.mxu0
      %v715 = vadd.f32 %v298, %v714
      %v716 = vpop.f32.mrf.mxu0
      %717 = vmatprep.mubr.f32.mxu0 %v425
      %718 = vmatmul.mubr.f32.gmra.mxu0 %v259
      %v719 = vpop.f32.mrf.mxu0
      %v720 = vadd.f32 %v298, %v719
      %v721 = vpop.f32.mrf.mxu0
      %722 = vmatprep.mubr.f32.mxu0 %v428
      %723 = vmatmul.mubr.f32.gmra.mxu0 %v261
      %v724 = vpop.f32.mrf.mxu0
      %v725 = vadd.f32 %v298, %v724
      %v726 = vpop.f32.mrf.mxu0
      %727 = vmatprep.mubr.f32.mxu0 %v431
      %728 = vmatmul.mubr.f32.gmra.mxu0 %v263
      %v729 = vpop.f32.mrf.mxu0
      %v730 = vadd.f32 %v298, %v729
      %v731 = vpop.f32.mrf.mxu0
      %732 = vmatprep.mubr.f32.mxu0 %v434
      %733 = vmatmul.mubr.f32.gmra.mxu0 %v265
      %v734 = vpop.f32.mrf.mxu0
      %v735 = vadd.f32 %v298, %v734
      %v736 = vpop.f32.mrf.mxu0
      %737 = vmatprep.mubr.f32.mxu0 %v437
      %738 = vmatmul.mubr.f32.gmra.mxu0 %v267
      %v739 = vpop.f32.mrf.mxu0
      %v740 = vadd.f32 %v298, %v739
      %v741 = vpop.f32.mrf.mxu0
      %742 = vmatprep.mubr.f32.mxu0 %v440
      %743 = vmatmul.mubr.f32.gmra.mxu0 %v269
      %v744 = vpop.f32.mrf.mxu0
      %v745 = vadd.f32 %v298, %v744
      %v746 = vpop.f32.mrf.mxu0
      %747 = vmatprep.mubr.f32.mxu0 %v443
      %748 = vmatmul.mubr.f32.gmra.mxu0 %v271
      %v749 = vpop.f32.mrf.mxu0
      %v750 = vadd.f32 %v298, %v749
      %v751 = vpop.f32.mrf.mxu0
      %752 = vmatprep.mubr.f32.mxu0 %v446
      %753 = vmatmul.mubr.f32.gmra.mxu0 %v273
      %v754 = vpop.f32.mrf.mxu0
      %v755 = vadd.f32 %v298, %v754
      %v756 = vpop.f32.mrf.mxu0
      %757 = vdwg.mxu0
      %v758 = vmax.f32 %v515, 0.0
      %v759 = vmax.f32 %v520, 0.0
      %v760 = vmax.f32 %v525, 0.0
      %v761 = vmax.f32 %v530, 0.0
      %v762 = vmax.f32 %v535, 0.0
      %v763 = vmax.f32 %v540, 0.0
      %v764 = vmax.f32 %v545, 0.0
      %v765 = vmax.f32 %v550, 0.0
      %v766 = vmax.f32 %v555, 0.0
      %v767 = vmax.f32 %v560, 0.0
      %v768 = vmax.f32 %v565, 0.0
      %v769 = vmax.f32 %v570, 0.0
      %v770 = vmax.f32 %v575, 0.0
      %v771 = vmax.f32 %v580, 0.0
      %v772 = vmax.f32 %v585, 0.0
      %v773 = vmax.f32 %v590, 0.0
      %v774 = vmax.f32 %v595, 0.0
      %v775 = vmax.f32 %v600, 0.0
      %v776 = vmax.f32 %v605, 0.0
      %v777 = vmax.f32 %v610, 0.0
      %v778 = vmax.f32 %v615, 0.0
      %v779 = vmax.f32 %v620, 0.0
      %v780 = vmax.f32 %v625, 0.0
      %v781 = vmax.f32 %v630, 0.0
      %v782 = vmax.f32 %v635, 0.0
      %v783 = vmax.f32 %v640, 0.0
      %v784 = vmax.f32 %v645, 0.0
      %v785 = vmax.f32 %v650, 0.0
      %v786 = vmax.f32 %v655, 0.0
      %v787 = vmax.f32 %v660, 0.0
      %v788 = vmax.f32 %v665, 0.0
      %v789 = vmax.f32 %v670, 0.0
      %v790 = vmax.f32 %v675, 0.0
      %v791 = vmax.f32 %v680, 0.0
      %v792 = vmax.f32 %v685, 0.0
      %v793 = vmax.f32 %v690, 0.0
      %v794 = vmax.f32 %v695, 0.0
      %v795 = vmax.f32 %v700, 0.0
      %v796 = vmax.f32 %v705, 0.0
      %v797 = vmax.f32 %v710, 0.0
      %v798 = vmax.f32 %v715, 0.0
      %v799 = vmax.f32 %v720, 0.0
      %v800 = vmax.f32 %v725, 0.0
      %v801 = vmax.f32 %v730, 0.0
      %v802 = vmax.f32 %v735, 0.0
      %v803 = vmax.f32 %v740, 0.0
      %v804 = vmax.f32 %v745, 0.0
      %v805 = vmax.f32 %v750, 0.0
      %v806 = vmax.f32 %v755, 0.0
      %vm807 = vcmask 261120
      %808 = vst.msk [vmem:[%s175] sm:$0xff] %vm807, %v758
      %809 = vst.msk [vmem:[%s175 + $0x8] sm:$0xff] %vm807, %v759
      %810 = vst.msk [vmem:[%s175 + $0x10] sm:$0xff] %vm807, %v760
      %811 = vst.msk [vmem:[%s175 + $0x18] sm:$0xff] %vm807, %v761
      %812 = vst.msk [vmem:[%s175 + $0x20] sm:$0xff] %vm807, %v762
      %813 = vst.msk [vmem:[%s175 + $0x28] sm:$0xff] %vm807, %v763
      %814 = vst.msk [vmem:[%s175 + $0x30] sm:$0xff] %vm807, %v764
      %815 = vst.msk [vmem:[%s175 + $0x38] sm:$0xff] %vm807, %v765
      %816 = vst.msk [vmem:[%s175 + $0x40] sm:$0xff] %vm807, %v766
      %817 = vst.msk [vmem:[%s175 + $0x48] sm:$0xff] %vm807, %v767
      %818 = vst.msk [vmem:[%s175 + $0x50] sm:$0xff] %vm807, %v768
      %819 = vst.msk [vmem:[%s175 + $0x58] sm:$0xff] %vm807, %v769
      %820 = vst.msk [vmem:[%s175 + $0x60] sm:$0xff] %vm807, %v770
      %821 = vst.msk [vmem:[%s175 + $0x68] sm:$0xff] %vm807, %v771
      %822 = vst.msk [vmem:[%s175 + $0x70] sm:$0xff] %vm807, %v772
      %823 = vst.msk [vmem:[%s175 + $0x78] sm:$0xff] %vm807, %v773
      %824 = vst.msk [vmem:[%s175 + $0x80] sm:$0xff] %vm807, %v774
      %825 = vst.msk [vmem:[%s175 + $0x88] sm:$0xff] %vm807, %v775
      %826 = vst.msk [vmem:[%s175 + $0x90] sm:$0xff] %vm807, %v776
      %827 = vst.msk [vmem:[%s175 + $0x98] sm:$0xff] %vm807, %v777
      %828 = vst.msk [vmem:[%s175 + $0xa0] sm:$0xff] %vm807, %v778
      %829 = vst.msk [vmem:[%s175 + $0xa8] sm:$0xff] %vm807, %v779
      %830 = vst.msk [vmem:[%s175 + $0xb0] sm:$0xff] %vm807, %v780
      %831 = vst.msk [vmem:[%s175 + $0xb8] sm:$0xff] %vm807, %v781
      %832 = vst.msk [vmem:[%s175 + $0xc0] sm:$0xff] %vm807, %v782
      %833 = vst.msk [vmem:[%s175 + $0xc8] sm:$0xff] %vm807, %v783
      %834 = vst.msk [vmem:[%s175 + $0xd0] sm:$0xff] %vm807, %v784
      %835 = vst.msk [vmem:[%s175 + $0xd8] sm:$0xff] %vm807, %v785
      %836 = vst.msk [vmem:[%s175 + $0xe0] sm:$0xff] %vm807, %v786
      %837 = vst.msk [vmem:[%s175 + $0xe8] sm:$0xff] %vm807, %v787
      %838 = vst.msk [vmem:[%s175 + $0xf0] sm:$0xff] %vm807, %v788
      %839 = vst.msk [vmem:[%s175 + $0xf8] sm:$0xff] %vm807, %v789
      %840 = vst.msk [vmem:[%s175 + $0x100] sm:$0xff] %vm807, %v790
      %841 = vst.msk [vmem:[%s175 + $0x108] sm:$0xff] %vm807, %v791
      %842 = vst.msk [vmem:[%s175 + $0x110] sm:$0xff] %vm807, %v792
      %843 = vst.msk [vmem:[%s175 + $0x118] sm:$0xff] %vm807, %v793
      %844 = vst.msk [vmem:[%s175 + $0x120] sm:$0xff] %vm807, %v794
      %845 = vst.msk [vmem:[%s175 + $0x128] sm:$0xff] %vm807, %v795
      %846 = vst.msk [vmem:[%s175 + $0x130] sm:$0xff] %vm807, %v796
      %847 = vst.msk [vmem:[%s175 + $0x138] sm:$0xff] %vm807, %v797
      %848 = vst.msk [vmem:[%s175 + $0x140] sm:$0xff] %vm807, %v798
      %849 = vst.msk [vmem:[%s175 + $0x148] sm:$0xff] %vm807, %v799
      %850 = vst.msk [vmem:[%s175 + $0x150] sm:$0xff] %vm807, %v800
      %851 = vst.msk [vmem:[%s175 + $0x158] sm:$0xff] %vm807, %v801
      %852 = vst.msk [vmem:[%s175 + $0x160] sm:$0xff] %vm807, %v802
      %853 = vst.msk [vmem:[%s175 + $0x168] sm:$0xff] %vm807, %v803
      %854 = vst.msk [vmem:[%s175 + $0x170] sm:$0xff] %vm807, %v804
      %855 = vst.msk [vmem:[%s175 + $0x178] sm:$0xff] %vm807, %v805
      %856 = vst.msk [vmem:[%s175 + $0x180] sm:$0xff] %vm807, %v806
      %s857 = smul.u32 49, %s14
      %p858 = scmp.lt.s32.totalorder %s857, 195
      %s859 = scalar_select %p858, %s857, 195
      %s860 = smul.addr %s859, 8
      %s861 = scalar_lea.vmem %s3, %s860
      // Predicated region
      $region33: #{cnn_forward.4} parent=31 // pred_check
        %p862 = pneg %p100
      $region34: #{cnn_forward.4} parent=31 // pred_check_branch
        %864 = sbr.rel (%p862) target = $region36
      $region35: #{cnn_forward.4} parent=31 // pred_region
        %s865 = smul.u32 49, %s14
      $region36: #{cnn_forward.4} parent=31 // pred_fallthru
        _
    $region32: #{cnn_forward.4} parent=5 // pred_fallthru
      _
    %p866 = scmp.le.s32.totalorder 2, %s9
    // Predicated region
    $region37: #{cnn_forward.4} parent=5 // pred_check
      %p867 = pneg %p866
    $region38: #{cnn_forward.4} parent=5 // pred_check_branch
      %869 = sbr.rel (%p867) target = $region40
    $region39: #{cnn_forward.4} parent=5 // pred_region
      %s870 = ssub.s32 %s9, 2
      // Predicated region
      $region41: #{cnn_forward.4} parent=39 // pred_check
        %p871 = pneg %p106
      $region42: #{cnn_forward.4} parent=39 // pred_check_branch
        %873 = sbr.rel (%p871) target = $region44
      $region43: #{cnn_forward.4} parent=39 // pred_region
        %s874 = smul.u32 49, %s15
        %p875 = scmp.lt.s32.totalorder %s874, 195
        %s876 = scalar_select %p875, %s874, 195
        %s877 = smul.addr %s876, 8
        %s878 = scalar_lea.vmem %s3, %s877
      $region44: #{cnn_forward.4} parent=39 // pred_fallthru
        _
    $region40: #{cnn_forward.4} parent=5 // pred_fallthru
      _
  $region6: #{cnn_forward.4} parent=0 // loop_footer
    %s13 = sadd.s32 1, %s9
  $region7: #{cnn_forward.4} parent=0 // loop_footer_branch
    %8 = sbr.rel target = $region3
  $region8: #{cnn_forward.4} parent=0 // loop_exit
    _

// kernel: cnn_forward.5
$region0: #{cnn_forward.5}
  #allocation0 [shape = 'u32[]', space=smem, size = 0x4, offset = 0x4, fixed_abs, tag = 'smem constant byte address 0x4 - core index']
  #allocation1 [shape = 'u32[144,128]{1,0:T(1,128)}', space=vmem, size = 0x12000, scoped, tag = 'internal scratch']
  #allocation2 [shape = 'f32[2,90]{1,0:T(2,128)}', space=vmem, size = 0x400, scoped, tag = 'scratch operand']
  %s0 = inlined_call_operand.vmem [shape: bf16[2,25088], index: 0, kind: input, shape index: {}]
  %s1 = inlined_call_operand.vmem [shape: bf16[25088,90], index: 1, kind: input, shape index: {}]
  %s2 = inlined_call_operand.vmem [shape: f32[1,90], index: 2, kind: input, shape index: {}]
  %s3 = inlined_call_operand.vmem [shape: f32[90,10], index: 3, kind: input, shape index: {}]
  %s4 = inlined_call_operand.vmem [shape: f32[1,10], index: 4, kind: input, shape index: {}]
  %s5 = inlined_call_operand.hbm [shape: f32[2,10], index: 5, kind: output, shape index: {}]
  %s6 = sld [smem:[#allocation0]]
  $region61: #{cnn_forward.5} parent=0
    _
  %s8 = ssub.s32 1, %s6
  %s9 = scalar_select 0, %s8, %s6
  $region1: #{cnn_forward.5} parent=0
    #allocation3 [shape = 'u8[1024]{0}', space=vmem, size = 0x400, scoped, tag = 'output window, operand 0, single buffered']
    #allocation4 [shape = 's32[2]{0}', space=sflag, size = 0x8, scoped, tag = 'scoped memory for cnn_forward.5']
    %10 = vsyncpa [#allocation4], 0
    loop: start=0, step=1, limit=6
    $region2: #{cnn_forward.5} parent=1 // loop_pre_header
      _
    $region3: #{cnn_forward.5} parent=1 // loop_header
      %s12 = sphi 0, %s16
      %p13 = scmp.ge.s32.totalorder %s12, 6
      %s22 = sphi 0, %s24
      %s25 = sphi 0, %s22
      %s26 = sphi 0, %s25
      %s42 = sphi 0, %s26
      %s48 = sphi 0, %s50
      %s51 = sphi 0, %s48
      %s52 = sphi 0, %s51
      %s68 = sphi 0, %s52
      %s72 = sphi 0, %s72
      %s74 = sphi 0, %s72
      %s75 = sphi 0, %s74
      %s89 = sphi 0, %s75
      %s93 = sphi 0, %s93
      %s95 = sphi 0, %s93
      %s96 = sphi 0, %s95
      %s110 = sphi 0, %s96
      %s114 = sphi 0, %s114
      %s116 = sphi 0, %s114
      %s117 = sphi 0, %s116
      %s131 = sphi 0, %s117
      %s135 = sphi 0, %s135
      %s137 = sphi 0, %s135
      %s138 = sphi 0, %s137
      %s152 = sphi 0, %s138
    $region4: #{cnn_forward.5} parent=1 // loop_header_branch
      %15 = sbr.rel (%p13) target = $region8
    $region5: #{cnn_forward.5} parent=1 // loop_body
      %s17 = ssub.s32 %s12, 1
      %s18 = ssub.s32 %s12, 2
      %s19 = sadd.s32 %s12, 1
      %s20 = ssub.s32 %s12, %s19
      %p21 = scmp.eq.s32.totalorder %s20, 0
      %s23 = sadd.s32 %s22, 1
      %s24 = scalar_select %p21, %s22, %s23
      %p27 = pneg %p21
      %p28 = scmp.eq.s32.totalorder %s12, 3
      %p29 = por %p27, %p28
      %p30 = scmp.ne.s32.totalorder %s22, %s25
      %p31 = scmp.eq.s32.totalorder %s12, 0
      %p32 = por %p30, %p31
      %p33 = scmp.ne.s32.totalorder %s22, %s25
      %p34 = scmp.eq.s32.totalorder %s17, 3
      %p35 = por %p33, %p34
      %p36 = scmp.ne.s32.totalorder %s25, %s26
      %p37 = scmp.eq.s32.totalorder %s17, 0
      %p38 = por %p36, %p37
      %p39 = scmp.ne.s32.totalorder %s25, %s26
      %p40 = scmp.eq.s32.totalorder %s18, 3
      %p41 = por %p39, %p40
      %p43 = scmp.ne.s32.totalorder %s26, %s42
      %p44 = scmp.eq.s32.totalorder %s18, 0
      %p45 = por %p43, %p44
      %s46 = ssub.s32 %s12, %s19
      %p47 = scmp.eq.s32.totalorder %s46, 0
      %s49 = sadd.s32 %s48, 1
      %s50 = scalar_select %p47, %s48, %s49
      %p53 = pneg %p47
      %p54 = scmp.eq.s32.totalorder %s12, 3
      %p55 = por %p53, %p54
      %p56 = scmp.ne.s32.totalorder %s48, %s51
      %p57 = scmp.eq.s32.totalorder %s12, 0
      %p58 = por %p56, %p57
      %p59 = scmp.ne.s32.totalorder %s48, %s51
      %p60 = scmp.eq.s32.totalorder %s17, 3
      %p61 = por %p59, %p60
      %p62 = scmp.ne.s32.totalorder %s51, %s52
      %p63 = scmp.eq.s32.totalorder %s17, 0
      %p64 = por %p62, %p63
      %p65 = scmp.ne.s32.totalorder %s51, %s52
      %p66 = scmp.eq.s32.totalorder %s18, 3
      %p67 = por %p65, %p66
      %p69 = scmp.ne.s32.totalorder %s52, %s68
      %p70 = scmp.eq.s32.totalorder %s18, 0
      %p71 = por %p69, %p70
      %s73 = sadd.s32 %s72, 1
      %p76 = scmp.eq.s32.totalorder %s12, 3
      %p77 = scmp.ne.s32.totalorder %s72, %s74
      %p78 = scmp.eq.s32.totalorder %s12, 0
      %p79 = por %p77, %p78
      %p80 = scmp.ne.s32.totalorder %s72, %s74
      %p81 = scmp.eq.s32.totalorder %s17, 3
      %p82 = por %p80, %p81
      %p83 = scmp.ne.s32.totalorder %s74, %s75
      %p84 = scmp.eq.s32.totalorder %s17, 0
      %p85 = por %p83, %p84
      %p86 = scmp.ne.s32.totalorder %s74, %s75
      %p87 = scmp.eq.s32.totalorder %s18, 3
      %p88 = por %p86, %p87
      %p90 = scmp.ne.s32.totalorder %s75, %s89
      %p91 = scmp.eq.s32.totalorder %s18, 0
      %p92 = por %p90, %p91
      %s94 = sadd.s32 %s93, 1
      %p97 = scmp.eq.s32.totalorder %s12, 3
      %p98 = scmp.ne.s32.totalorder %s93, %s95
      %p99 = scmp.eq.s32.totalorder %s12, 0
      %p100 = por %p98, %p99
      %p101 = scmp.ne.s32.totalorder %s93, %s95
      %p102 = scmp.eq.s32.totalorder %s17, 3
      %p103 = por %p101, %p102
      %p104 = scmp.ne.s32.totalorder %s95, %s96
      %p105 = scmp.eq.s32.totalorder %s17, 0
      %p106 = por %p104, %p105
      %p107 = scmp.ne.s32.totalorder %s95, %s96
      %p108 = scmp.eq.s32.totalorder %s18, 3
      %p109 = por %p107, %p108
      %p111 = scmp.ne.s32.totalorder %s96, %s110
      %p112 = scmp.eq.s32.totalorder %s18, 0
      %p113 = por %p111, %p112
      %s115 = sadd.s32 %s114, 1
      %p118 = scmp.eq.s32.totalorder %s12, 3
      %p119 = scmp.ne.s32.totalorder %s114, %s116
      %p120 = scmp.eq.s32.totalorder %s12, 0
      %p121 = por %p119, %p120
      %p122 = scmp.ne.s32.totalorder %s114, %s116
      %p123 = scmp.eq.s32.totalorder %s17, 3
      %p124 = por %p122, %p123
      %p125 = scmp.ne.s32.totalorder %s116, %s117
      %p126 = scmp.eq.s32.totalorder %s17, 0
      %p127 = por %p125, %p126
      %p128 = scmp.ne.s32.totalorder %s116, %s117
      %p129 = scmp.eq.s32.totalorder %s18, 3
      %p130 = por %p128, %p129
      %p132 = scmp.ne.s32.totalorder %s117, %s131
      %p133 = scmp.eq.s32.totalorder %s18, 0
      %p134 = por %p132, %p133
      %s136 = sadd.s32 %s135, 1
      %p139 = scmp.eq.s32.totalorder %s12, 3
      %p140 = scmp.ne.s32.totalorder %s135, %s137
      %p141 = scmp.eq.s32.totalorder %s12, 0
      %p142 = por %p140, %p141
      %p143 = scmp.ne.s32.totalorder %s135, %s137
      %p144 = scmp.eq.s32.totalorder %s17, 3
      %p145 = por %p143, %p144
      %p146 = scmp.ne.s32.totalorder %s137, %s138
      %p147 = scmp.eq.s32.totalorder %s17, 0
      %p148 = por %p146, %p147
      %p149 = scmp.ne.s32.totalorder %s137, %s138
      %p150 = scmp.eq.s32.totalorder %s18, 3
      %p151 = por %p149, %p150
      %p153 = scmp.ne.s32.totalorder %s138, %s152
      %p154 = scmp.eq.s32.totalorder %s18, 0
      %p155 = por %p153, %p154
      %p156 = scmp.le.s32.totalorder 1, %s12
      %p157 = scmp.lt.s32.totalorder %s12, 5
      %p158 = pnand %p156, %p157
      %p159 = pneg %p158
      // Predicated region
      $region9: #{cnn_forward.5} parent=5 // pred_check
        _
      $region10: #{cnn_forward.5} parent=5 // pred_check_branch
        %161 = sbr.rel (%p158) target = $region12
      $region11: #{cnn_forward.5} parent=5 // pred_region
        %s162 = ssub.s32 %s12, 1
        // Predicated region
        $region13: #{cnn_forward.5} parent=11 // pred_check
          %p163 = pneg %p85
        $region14: #{cnn_forward.5} parent=11 // pred_check_branch
          %165 = sbr.rel (%p163) target = $region16
        $region15: #{cnn_forward.5} parent=11 // pred_region
          _
        $region16: #{cnn_forward.5} parent=11 // pred_fallthru
          _
        // Predicated region
        $region17: #{cnn_forward.5} parent=11 // pred_check
          %p166 = pneg %p106
        $region18: #{cnn_forward.5} parent=11 // pred_check_branch
          %168 = sbr.rel (%p166) target = $region20
        $region19: #{cnn_forward.5} parent=11 // pred_region
          _
        $region20: #{cnn_forward.5} parent=11 // pred_fallthru
          _
        // Predicated region
        $region21: #{cnn_forward.5} parent=11 // pred_check
          %p169 = pneg %p127
        $region22: #{cnn_forward.5} parent=11 // pred_check_branch
          %171 = sbr.rel (%p169) target = $region24
        $region23: #{cnn_forward.5} parent=11 // pred_region
          _
        $region24: #{cnn_forward.5} parent=11 // pred_fallthru
          _
      $region12: #{cnn_forward.5} parent=5 // pred_fallthru
        _
      %p172 = scmp.lt.s32.totalorder %s12, 4
      // Predicated region
      $region25: #{cnn_forward.5} parent=5 // pred_check
        %p173 = pneg %p172
      $region26: #{cnn_forward.5} parent=5 // pred_check_branch
        %175 = sbr.rel (%p173) target = $region28
      $region27: #{cnn_forward.5} parent=5 // pred_region
        // Predicated region
        $region29: #{cnn_forward.5} parent=27 // pred_check
          %p176 = pneg %p32
        $region30: #{cnn_forward.5} parent=27 // pred_check_branch
          %178 = sbr.rel (%p176) target = $region32
        $region31: #{cnn_forward.5} parent=27 // pred_region
          %s179 = smul.u32 49, %s12
          %p180 = scmp.lt.s32.totalorder %s179, 195
          %s181 = scalar_select %p180, %s179, 195
          %s182 = scalar_lea.vmem %s0, %s181
          %s183 = smul.u32 49, %s12
        $region32: #{cnn_forward.5} parent=27 // pred_fallthru
          _
        // Predicated region
        $region33: #{cnn_forward.5} parent=27 // pred_check
          %p184 = pneg %p58
        $region34: #{cnn_forward.5} parent=27 // pred_check_branch
          %186 = sbr.rel (%p184) target = $region36
        $region35: #{cnn_forward.5} parent=27 // pred_region
          %s187 = smul.u32 784, %s12
          %p188 = scmp.lt.s32.totalorder %s187, 3135
          %s189 = scalar_select %p188, %s187, 3135
          %s190 = smul.addr %s189, 4
          %s191 = scalar_lea.vmem %s1, %s190
          %s192 = smul.u32 784, %s12
        $region36: #{cnn_forward.5} parent=27 // pred_fallthru
          _
      $region28: #{cnn_forward.5} parent=5 // pred_fallthru
        _
      %p193 = scmp.le.s32.totalorder 1, %s12
      %p194 = scmp.lt.s32.totalorder %s12, 5
      %p195 = pnand %p193, %p194
      %p196 = pneg %p195
      // Predicated region
      $region37: #{cnn_forward.5} parent=5 // pred_check
        _
      $region38: #{cnn_forward.5} parent=5 // pred_check_branch
        %198 = sbr.rel (%p195) target = $region40
      $region39: #{cnn_forward.5} parent=5 // pred_region
        %s199 = ssub.s32 %s12, 1
        %s200 = smul.u32 49, %s17
        %p201 = scmp.lt.s32.totalorder %s200, 195
        %s202 = scalar_select %p201, %s200, 195
        %s203 = scalar_lea.vmem %s0, %s202
        %p204 = pneg %p38
        %p205 = pneg %p35
        %s206 = smul.u32 784, %s17
        %p207 = scmp.lt.s32.totalorder %s206, 3135
        %s208 = scalar_select %p207, %s206, 3135
        %s209 = smul.addr %s208, 4
        %s210 = scalar_lea.vmem %s1, %s209
        %p211 = pneg %p64
        %p212 = pneg %p61
        %p213 = pneg %p85
        %p214 = pneg %p82
        %p215 = pneg %p106
        %p216 = pneg %p103
        %p217 = pneg %p127
        %p218 = pneg %p124
        %p219 = pneg %p148
        %p220 = pneg %p145
        %s221 = smul.u32 49, %s17
        %p222 = scmp.lt.s32.totalorder %s221, 195
        %s223 = scalar_select %p222, %s221, 195
        %s224 = scalar_lea.vmem %s0, %s223
        %s225 = smul.u32 49, %s17
        %s226 = smul.u32 784, %s17
        %p227 = scmp.lt.s32.totalorder %s226, 3135
        %s228 = scalar_select %p227, %s226, 3135
        %s229 = smul.addr %s228, 4
        %s230 = scalar_lea.vmem %s1, %s229
        %s231 = smul.u32 784, %s17
        %p233 = scmp.eq.s32.totalorder %s17, 0
        // Predicated region
        $region41: #{cnn_forward.5} parent=39 // pred_check
          %p234 = pneg %p233
        $region42: #{cnn_forward.5} parent=39 // pred_check_branch
          %236 = sbr.rel (%p234) target = $region44
        $region43: #{cnn_forward.5} parent=39 // pred_region
          %vm237 = vcmask 730112
          %238 = vst.msk [vmem:[#allocation2] sm:$0x3] %vm237, 0.0
        $region44: #{cnn_forward.5} parent=39 // pred_fallthru
          _
        %v239 = vld [vmem:[#allocation2] sm:$0x3]
        %v240 = vld [vmem:[%s224] sm:$0xff]
        %v241 = vld [vmem:[%s224 + $0x8] sm:$0xff]
        %v242 = vld [vmem:[%s224 + $0x10] sm:$0xff]
        %v243 = vld [vmem:[%s224 + $0x18] sm:$0xff]
        %v244 = vld [vmem:[%s224 + $0x20] sm:$0xff]
        %v245 = vld [vmem:[%s224 + $0x28] sm:$0xff]
        %v246 = vld [vmem:[%s224 + $0x30] sm:$0x1]
        %v247 = vld [vmem:[%s230] sm:$0xf]
        %v248 = vld [vmem:[%s230 + $0x4] sm:$0xf]
        %v249 = vld [vmem:[%s230 + $0x8] sm:$0xf]
        %v250 = vld [vmem:[%s230 + $0xc] sm:$0xf]
        %v251 = vld [vmem:[%s230 + $0x10] sm:$0xf]
        %v252 = vld [vmem:[%s230 + $0x14] sm:$0xf]
        %v253 = vld [vmem:[%s230 + $0x18] sm:$0xf]
        %v254 = vld [vmem:[%s230 + $0x1c] sm:$0xf]
        %v255 = vld [vmem:[%s230 + $0x20] sm:$0xf]
        %v256 = vld [vmem:[%s230 + $0x24] sm:$0xf]
        %v257 = vld [vmem:[%s230 + $0x28] sm:$0xf]
        %v258 = vld [vmem:[%s230 + $0x2c] sm:$0xf]
        %v259 = vld [vmem:[%s230 + $0x30] sm:$0xf]
        %v260 = vld [vmem:[%s230 + $0x34] sm:$0xf]
        %v261 = vld [vmem:[%s230 + $0x38] sm:$0xf]
        %v262 = vld [vmem:[%s230 + $0x3c] sm:$0xf]
        %v263 = vld [vmem:[%s230 + $0x40] sm:$0xf]
        %v264 = vld [vmem:[%s230 + $0x44] sm:$0xf]
        %v265 = vld [vmem:[%s230 + $0x48] sm:$0xf]
        %v266 = vld [vmem:[%s230 + $0x4c] sm:$0xf]
        %v267 = vld [vmem:[%s230 + $0x50] sm:$0xf]
        %v268 = vld [vmem:[%s230 + $0x54] sm:$0xf]
        %v269 = vld [vmem:[%s230 + $0x58] sm:$0xf]
        %v270 = vld [vmem:[%s230 + $0x5c] sm:$0xf]
        %v271 = vld [vmem:[%s230 + $0x60] sm:$0xf]
        %v272 = vld [vmem:[%s230 + $0x64] sm:$0xf]
        %v273 = vld [vmem:[%s230 + $0x68] sm:$0xf]
        %v274 = vld [vmem:[%s230 + $0x6c] sm:$0xf]
        %v275 = vld [vmem:[%s230 + $0x70] sm:$0xf]
        %v276 = vld [vmem:[%s230 + $0x74] sm:$0xf]
        %v277 = vld [vmem:[%s230 + $0x78] sm:$0xf]
        %v278 = vld [vmem:[%s230 + $0x7c] sm:$0xf]
        %v279 = vld [vmem:[%s230 + $0x80] sm:$0xf]
        %v280 = vld [vmem:[%s230 + $0x84] sm:$0xf]
        %v281 = vld [vmem:[%s230 + $0x88] sm:$0xf]
        %v282 = vld [vmem:[%s230 + $0x8c] sm:$0xf]
        %v283 = vld [vmem:[%s230 + $0x90] sm:$0xf]
        %v284 = vld [vmem:[%s230 + $0x94] sm:$0xf]
        %v285 = vld [vmem:[%s230 + $0x98] sm:$0xf]
        %v286 = vld [vmem:[%s230 + $0x9c] sm:$0xf]
        %v287 = vld [vmem:[%s230 + $0xa0] sm:$0xf]
        %v288 = vld [vmem:[%s230 + $0xa4] sm:$0xf]
        %v289 = vld [vmem:[%s230 + $0xa8] sm:$0xf]
        %v290 = vld [vmem:[%s230 + $0xac] sm:$0xf]
        %v291 = vld [vmem:[%s230 + $0xb0] sm:$0xf]
        %v292 = vld [vmem:[%s230 + $0xb4] sm:$0xf]
        %v293 = vld [vmem:[%s230 + $0xb8] sm:$0xf]
        %v294 = vld [vmem:[%s230 + $0xbc] sm:$0xf]
        %v295 = vld [vmem:[%s230 + $0xc0] sm:$0xf]
        %v296 = vld [vmem:[%s230 + $0xc4] sm:$0xf]
        %v297 = vld [vmem:[%s230 + $0xc8] sm:$0xf]
        %v298 = vld [vmem:[%s230 + $0xcc] sm:$0xf]
        %v299 = vld [vmem:[%s230 + $0xd0] sm:$0xf]
        %v300 = vld [vmem:[%s230 + $0xd4] sm:$0xf]
        %v301 = vld [vmem:[%s230 + $0xd8] sm:$0xf]
        %v302 = vld [vmem:[%s230 + $0xdc] sm:$0xf]
        %v303 = vld [vmem:[%s230 + $0xe0] sm:$0xf]
        %v304 = vld [vmem:[%s230 + $0xe4] sm:$0xf]
        %v305 = vld [vmem:[%s230 + $0xe8] sm:$0xf]
        %v306 = vld [vmem:[%s230 + $0xec] sm:$0xf]
        %v307 = vld [vmem:[%s230 + $0xf0] sm:$0xf]
        %v308 = vld [vmem:[%s230 + $0xf4] sm:$0xf]
        %v309 = vld [vmem:[%s230 + $0xf8] sm:$0xf]
        %v310 = vld [vmem:[%s230 + $0xfc] sm:$0xf]
        %v311 = vld [vmem:[%s230 + $0x100] sm:$0xf]
        %v312 = vld [vmem:[%s230 + $0x104] sm:$0xf]
        %v313 = vld [vmem:[%s230 + $0x108] sm:$0xf]
        %v314 = vld [vmem:[%s230 + $0x10c] sm:$0xf]
        %v315 = vld [vmem:[%s230 + $0x110] sm:$0xf]
        %v316 = vld [vmem:[%s230 + $0x114] sm:$0xf]
        %v317 = vld [vmem:[%s230 + $0x118] sm:$0xf]
        %v318 = vld [vmem:[%s230 + $0x11c] sm:$0xf]
        %v319 = vld [vmem:[%s230 + $0x120] sm:$0xf]
        %v320 = vld [vmem:[%s230 + $0x124] sm:$0xf]
        %v321 = vld [vmem:[%s230 + $0x128] sm:$0xf]
        %v322 = vld [vmem:[%s230 + $0x12c] sm:$0xf]
        %v323 = vld [vmem:[%s230 + $0x130] sm:$0xf]
        %v324 = vld [vmem:[%s230 + $0x134] sm:$0xf]
        %v325 = vld [vmem:[%s230 + $0x138] sm:$0xf]
        %v326 = vld [vmem:[%s230 + $0x13c] sm:$0xf]
        %v327 = vld [vmem:[%s230 + $0x140] sm:$0xf]
        %v328 = vld [vmem:[%s230 + $0x144] sm:$0xf]
        %v329 = vld [vmem:[%s230 + $0x148] sm:$0xf]
        %v330 = vld [vmem:[%s230 + $0x14c] sm:$0xf]
        %v331 = vld [vmem:[%s230 + $0x150] sm:$0xf]
        %v332 = vld [vmem:[%s230 + $0x154] sm:$0xf]
        %v333 = vld [vmem:[%s230 + $0x158] sm:$0xf]
        %v334 = vld [vmem:[%s230 + $0x15c] sm:$0xf]
        %v335 = vld [vmem:[%s230 + $0x160] sm:$0xf]
        %v336 = vld [vmem:[%s230 + $0x164] sm:$0xf]
        %v337 = vld [vmem:[%s230 + $0x168] sm:$0xf]
        %v338 = vld [vmem:[%s230 + $0x16c] sm:$0xf]
        %v339 = vld [vmem:[%s230 + $0x170] sm:$0xf]
        %v340 = vld [vmem:[%s230 + $0x174] sm:$0xf]
        %v341 = vld [vmem:[%s230 + $0x178] sm:$0xf]
        %v342 = vld [vmem:[%s230 + $0x17c] sm:$0xf]
        %v343 = vld [vmem:[%s230 + $0x180] sm:$0xf]
        %v344 = vld [vmem:[%s230 + $0x184] sm:$0xf]
        %v345 = vld [vmem:[%s230 + $0x188] sm:$0xf]
        %v346 = vld [vmem:[%s230 + $0x18c] sm:$0xf]
        %v347 = vld [vmem:[%s230 + $0x190] sm:$0xf]
        %v348 = vld [vmem:[%s230 + $0x194] sm:$0xf]
        %v349 = vld [vmem:[%s230 + $0x198] sm:$0xf]
        %v350 = vld [vmem:[%s230 + $0x19c] sm:$0xf]
        %v351 = vld [vmem:[%s230 + $0x1a0] sm:$0xf]
        %v352 = vld [vmem:[%s230 + $0x1a4] sm:$0xf]
        %v353 = vld [vmem:[%s230 + $0x1a8] sm:$0xf]
        %v354 = vld [vmem:[%s230 + $0x1ac] sm:$0xf]
        %v355 = vld [vmem:[%s230 + $0x1b0] sm:$0xf]
        %v356 = vld [vmem:[%s230 + $0x1b4] sm:$0xf]
        %v357 = vld [vmem:[%s230 + $0x1b8] sm:$0xf]
        %v358 = vld [vmem:[%s230 + $0x1bc] sm:$0xf]
        %v359 = vld [vmem:[%s230 + $0x1c0] sm:$0xf]
        %v360 = vld [vmem:[%s230 + $0x1c4] sm:$0xf]
        %v361 = vld [vmem:[%s230 + $0x1c8] sm:$0xf]
        %v362 = vld [vmem:[%s230 + $0x1cc] sm:$0xf]
        %v363 = vld [vmem:[%s230 + $0x1d0] sm:$0xf]
        %v364 = vld [vmem:[%s230 + $0x1d4] sm:$0xf]
        %v365 = vld [vmem:[%s230 + $0x1d8] sm:$0xf]
        %v366 = vld [vmem:[%s230 + $0x1dc] sm:$0xf]
        %v367 = vld [vmem:[%s230 + $0x1e0] sm:$0xf]
        %v368 = vld [vmem:[%s230 + $0x1e4] sm:$0xf]
        %v369 = vld [vmem:[%s230 + $0x1e8] sm:$0xf]
        %v370 = vld [vmem:[%s230 + $0x1ec] sm:$0xf]
        %v371 = vld [vmem:[%s230 + $0x1f0] sm:$0xf]
        %v372 = vld [vmem:[%s230 + $0x1f4] sm:$0xf]
        %v373 = vld [vmem:[%s230 + $0x1f8] sm:$0xf]
        %v374 = vld [vmem:[%s230 + $0x1fc] sm:$0xf]
        %v375 = vld [vmem:[%s230 + $0x200] sm:$0xf]
        %v376 = vld [vmem:[%s230 + $0x204] sm:$0xf]
        %v377 = vld [vmem:[%s230 + $0x208] sm:$0xf]
        %v378 = vld [vmem:[%s230 + $0x20c] sm:$0xf]
        %v379 = vld [vmem:[%s230 + $0x210] sm:$0xf]
        %v380 = vld [vmem:[%s230 + $0x214] sm:$0xf]
        %v381 = vld [vmem:[%s230 + $0x218] sm:$0xf]
        %v382 = vld [vmem:[%s230 + $0x21c] sm:$0xf]
        %v383 = vld [vmem:[%s230 + $0x220] sm:$0xf]
        %v384 = vld [vmem:[%s230 + $0x224] sm:$0xf]
        %v385 = vld [vmem:[%s230 + $0x228] sm:$0xf]
        %v386 = vld [vmem:[%s230 + $0x22c] sm:$0xf]
        %v387 = vld [vmem:[%s230 + $0x230] sm:$0xf]
        %v388 = vld [vmem:[%s230 + $0x234] sm:$0xf]
        %v389 = vld [vmem:[%s230 + $0x238] sm:$0xf]
        %v390 = vld [vmem:[%s230 + $0x23c] sm:$0xf]
        %v391 = vld [vmem:[%s230 + $0x240] sm:$0xf]
        %v392 = vld [vmem:[%s230 + $0x244] sm:$0xf]
        %v393 = vld [vmem:[%s230 + $0x248] sm:$0xf]
        %v394 = vld [vmem:[%s230 + $0x24c] sm:$0xf]
        %v395 = vld [vmem:[%s230 + $0x250] sm:$0xf]
        %v396 = vld [vmem:[%s230 + $0x254] sm:$0xf]
        %v397 = vld [vmem:[%s230 + $0x258] sm:$0xf]
        %v398 = vld [vmem:[%s230 + $0x25c] sm:$0xf]
        %v399 = vld [vmem:[%s230 + $0x260] sm:$0xf]
        %v400 = vld [vmem:[%s230 + $0x264] sm:$0xf]
        %v401 = vld [vmem:[%s230 + $0x268] sm:$0xf]
        %v402 = vld [vmem:[%s230 + $0x26c] sm:$0xf]
        %v403 = vld [vmem:[%s230 + $0x270] sm:$0xf]
        %v404 = vld [vmem:[%s230 + $0x274] sm:$0xf]
        %v405 = vld [vmem:[%s230 + $0x278] sm:$0xf]
        %v406 = vld [vmem:[%s230 + $0x27c] sm:$0xf]
        %v407 = vld [vmem:[%s230 + $0x280] sm:$0xf]
        %v408 = vld [vmem:[%s230 + $0x284] sm:$0xf]
        %v409 = vld [vmem:[%s230 + $0x288] sm:$0xf]
        %v410 = vld [vmem:[%s230 + $0x28c] sm:$0xf]
        %v411 = vld [vmem:[%s230 + $0x290] sm:$0xf]
        %v412 = vld [vmem:[%s230 + $0x294] sm:$0xf]
        %v413 = vld [vmem:[%s230 + $0x298] sm:$0xf]
        %v414 = vld [vmem:[%s230 + $0x29c] sm:$0xf]
        %v415 = vld [vmem:[%s230 + $0x2a0] sm:$0xf]
        %v416 = vld [vmem:[%s230 + $0x2a4] sm:$0xf]
        %v417 = vld [vmem:[%s230 + $0x2a8] sm:$0xf]
        %v418 = vld [vmem:[%s230 + $0x2ac] sm:$0xf]
        %v419 = vld [vmem:[%s230 + $0x2b0] sm:$0xf]
        %v420 = vld [vmem:[%s230 + $0x2b4] sm:$0xf]
        %v421 = vld [vmem:[%s230 + $0x2b8] sm:$0xf]
        %v422 = vld [vmem:[%s230 + $0x2bc] sm:$0xf]
        %v423 = vld [vmem:[%s230 + $0x2c0] sm:$0xf]
        %v424 = vld [vmem:[%s230 + $0x2c4] sm:$0xf]
        %v425 = vld [vmem:[%s230 + $0x2c8] sm:$0xf]
        %v426 = vld [vmem:[%s230 + $0x2cc] sm:$0xf]
        %v427 = vld [vmem:[%s230 + $0x2d0] sm:$0xf]
        %v428 = vld [vmem:[%s230 + $0x2d4] sm:$0xf]
        %v429 = vld [vmem:[%s230 + $0x2d8] sm:$0xf]
        %v430 = vld [vmem:[%s230 + $0x2dc] sm:$0xf]
        %v431 = vld [vmem:[%s230 + $0x2e0] sm:$0xf]
        %v432 = vld [vmem:[%s230 + $0x2e4] sm:$0xf]
        %v433 = vld [vmem:[%s230 + $0x2e8] sm:$0xf]
        %v434 = vld [vmem:[%s230 + $0x2ec] sm:$0xf]
        %v435 = vld [vmem:[%s230 + $0x2f0] sm:$0xf]
        %v436 = vld [vmem:[%s230 + $0x2f4] sm:$0xf]
        %v437 = vld [vmem:[%s230 + $0x2f8] sm:$0xf]
        %v438 = vld [vmem:[%s230 + $0x2fc] sm:$0xf]
        %v439 = vld [vmem:[%s230 + $0x300] sm:$0xf]
        %v440 = vld [vmem:[%s230 + $0x304] sm:$0xf]
        %v441 = vld [vmem:[%s230 + $0x308] sm:$0xf]
        %v442 = vld [vmem:[%s230 + $0x30c] sm:$0xf]
        %v443 = vld [vmem:[%s230 + $0x310] sm:$0xf]
        %v444 = vld [vmem:[%s230 + $0x314] sm:$0xf]
        %v445 = vld [vmem:[%s230 + $0x318] sm:$0xf]
        %v446 = vld [vmem:[%s230 + $0x31c] sm:$0xf]
        %v447 = vld [vmem:[%s230 + $0x320] sm:$0xf]
        %v448 = vld [vmem:[%s230 + $0x324] sm:$0xf]
        %v449 = vld [vmem:[%s230 + $0x328] sm:$0xf]
        %v450 = vld [vmem:[%s230 + $0x32c] sm:$0xf]
        %v451 = vld [vmem:[%s230 + $0x330] sm:$0xf]
        %v452 = vld [vmem:[%s230 + $0x334] sm:$0xf]
        %v453 = vld [vmem:[%s230 + $0x338] sm:$0xf]
        %v454 = vld [vmem:[%s230 + $0x33c] sm:$0xf]
        %v455 = vld [vmem:[%s230 + $0x340] sm:$0xf]
        %v456 = vld [vmem:[%s230 + $0x344] sm:$0xf]
        %v457 = vld [vmem:[%s230 + $0x348] sm:$0xf]
        %v458 = vld [vmem:[%s230 + $0x34c] sm:$0xf]
        %v459 = vld [vmem:[%s230 + $0x350] sm:$0xf]
        %v460 = vld [vmem:[%s230 + $0x354] sm:$0xf]
        %v461 = vld [vmem:[%s230 + $0x358] sm:$0xf]
        %v462 = vld [vmem:[%s230 + $0x35c] sm:$0xf]
        %v463 = vld [vmem:[%s230 + $0x360] sm:$0xf]
        %v464 = vld [vmem:[%s230 + $0x364] sm:$0xf]
        %v465 = vld [vmem:[%s230 + $0x368] sm:$0xf]
        %v466 = vld [vmem:[%s230 + $0x36c] sm:$0xf]
        %v467 = vld [vmem:[%s230 + $0x370] sm:$0xf]
        %v468 = vld [vmem:[%s230 + $0x374] sm:$0xf]
        %v469 = vld [vmem:[%s230 + $0x378] sm:$0xf]
        %v470 = vld [vmem:[%s230 + $0x37c] sm:$0xf]
        %v471 = vld [vmem:[%s230 + $0x380] sm:$0xf]
        %v472 = vld [vmem:[%s230 + $0x384] sm:$0xf]
        %v473 = vld [vmem:[%s230 + $0x388] sm:$0xf]
        %v474 = vld [vmem:[%s230 + $0x38c] sm:$0xf]
        %v475 = vld [vmem:[%s230 + $0x390] sm:$0xf]
        %v476 = vld [vmem:[%s230 + $0x394] sm:$0xf]
        %v477 = vld [vmem:[%s230 + $0x398] sm:$0xf]
        %v478 = vld [vmem:[%s230 + $0x39c] sm:$0xf]
        %v479 = vld [vmem:[%s230 + $0x3a0] sm:$0xf]
        %v480 = vld [vmem:[%s230 + $0x3a4] sm:$0xf]
        %v481 = vld [vmem:[%s230 + $0x3a8] sm:$0xf]
        %v482 = vld [vmem:[%s230 + $0x3ac] sm:$0xf]
        %v483 = vld [vmem:[%s230 + $0x3b0] sm:$0xf]
        %v484 = vld [vmem:[%s230 + $0x3b4] sm:$0xf]
        %v485 = vld [vmem:[%s230 + $0x3b8] sm:$0xf]
        %v486 = vld [vmem:[%s230 + $0x3bc] sm:$0xf]
        %v487 = vld [vmem:[%s230 + $0x3c0] sm:$0xf]
        %v488 = vld [vmem:[%s230 + $0x3c4] sm:$0xf]
        %v489 = vld [vmem:[%s230 + $0x3c8] sm:$0xf]
        %v490 = vld [vmem:[%s230 + $0x3cc] sm:$0xf]
        %v491 = vld [vmem:[%s230 + $0x3d0] sm:$0xf]
        %v492 = vld [vmem:[%s230 + $0x3d4] sm:$0xf]
        %v493 = vld [vmem:[%s230 + $0x3d8] sm:$0xf]
        %v494 = vld [vmem:[%s230 + $0x3dc] sm:$0xf]
        %v495 = vld [vmem:[%s230 + $0x3e0] sm:$0xf]
        %v496 = vld [vmem:[%s230 + $0x3e4] sm:$0xf]
        %v497 = vld [vmem:[%s230 + $0x3e8] sm:$0xf]
        %v498 = vld [vmem:[%s230 + $0x3ec] sm:$0xf]
        %v499 = vld [vmem:[%s230 + $0x3f0] sm:$0xf]
        %v500 = vld [vmem:[%s230 + $0x3f4] sm:$0xf]
        %v501 = vld [vmem:[%s230 + $0x3f8] sm:$0xf]
        %v502 = vld [vmem:[%s230 + $0x3fc] sm:$0xf]
        %v503 = vld [vmem:[%s230 + $0x400] sm:$0xf]
        %v504 = vld [vmem:[%s230 + $0x404] sm:$0xf]
        %v505 = vld [vmem:[%s230 + $0x408] sm:$0xf]
        %v506 = vld [vmem:[%s230 + $0x40c] sm:$0xf]
        %v507 = vld [vmem:[%s230 + $0x410] sm:$0xf]
        %v508 = vld [vmem:[%s230 + $0x414] sm:$0xf]
        %v509 = vld [vmem:[%s230 + $0x418] sm:$0xf]
        %v510 = vld [vmem:[%s230 + $0x41c] sm:$0xf]
        %v511 = vld [vmem:[%s230 + $0x420] sm:$0xf]
        %v512 = vld [vmem:[%s230 + $0x424] sm:$0xf]
        %v513 = vld [vmem:[%s230 + $0x428] sm:$0xf]
        %v514 = vld [vmem:[%s230 + $0x42c] sm:$0xf]
        %v515 = vld [vmem:[%s230 + $0x430] sm:$0xf]
        %v516 = vld [vmem:[%s230 + $0x434] sm:$0xf]
        %v517 = vld [vmem:[%s230 + $0x438] sm:$0xf]
        %v518 = vld [vmem:[%s230 + $0x43c] sm:$0xf]
        %v519 = vld [vmem:[%s230 + $0x440] sm:$0xf]
        %v520 = vld [vmem:[%s230 + $0x444] sm:$0xf]
        %v521 = vld [vmem:[%s230 + $0x448] sm:$0xf]
        %v522 = vld [vmem:[%s230 + $0x44c] sm:$0xf]
        %v523 = vld [vmem:[%s230 + $0x450] sm:$0xf]
        %v524 = vld [vmem:[%s230 + $0x454] sm:$0xf]
        %v525 = vld [vmem:[%s230 + $0x458] sm:$0xf]
        %v526 = vld [vmem:[%s230 + $0x45c] sm:$0xf]
        %v527 = vld [vmem:[%s230 + $0x460] sm:$0xf]
        %v528 = vld [vmem:[%s230 + $0x464] sm:$0xf]
        %v529 = vld [vmem:[%s230 + $0x468] sm:$0xf]
        %v530 = vld [vmem:[%s230 + $0x46c] sm:$0xf]
        %v531 = vld [vmem:[%s230 + $0x470] sm:$0xf]
        %v532 = vld [vmem:[%s230 + $0x474] sm:$0xf]
        %v533 = vld [vmem:[%s230 + $0x478] sm:$0xf]
        %v534 = vld [vmem:[%s230 + $0x47c] sm:$0xf]
        %v535 = vld [vmem:[%s230 + $0x480] sm:$0xf]
        %v536 = vld [vmem:[%s230 + $0x484] sm:$0xf]
        %v537 = vld [vmem:[%s230 + $0x488] sm:$0xf]
        %v538 = vld [vmem:[%s230 + $0x48c] sm:$0xf]
        %v539 = vld [vmem:[%s230 + $0x490] sm:$0xf]
        %v540 = vld [vmem:[%s230 + $0x494] sm:$0xf]
        %v541 = vld [vmem:[%s230 + $0x498] sm:$0xf]
        %v542 = vld [vmem:[%s230 + $0x49c] sm:$0xf]
        %v543 = vld [vmem:[%s230 + $0x4a0] sm:$0xf]
        %v544 = vld [vmem:[%s230 + $0x4a4] sm:$0xf]
        %v545 = vld [vmem:[%s230 + $0x4a8] sm:$0xf]
        %v546 = vld [vmem:[%s230 + $0x4ac] sm:$0xf]
        %v547 = vld [vmem:[%s230 + $0x4b0] sm:$0xf]
        %v548 = vld [vmem:[%s230 + $0x4b4] sm:$0xf]
        %v549 = vld [vmem:[%s230 + $0x4b8] sm:$0xf]
        %v550 = vld [vmem:[%s230 + $0x4bc] sm:$0xf]
        %v551 = vld [vmem:[%s230 + $0x4c0] sm:$0xf]
        %v552 = vld [vmem:[%s230 + $0x4c4] sm:$0xf]
        %v553 = vld [vmem:[%s230 + $0x4c8] sm:$0xf]
        %v554 = vld [vmem:[%s230 + $0x4cc] sm:$0xf]
        %v555 = vld [vmem:[%s230 + $0x4d0] sm:$0xf]
        %v556 = vld [vmem:[%s230 + $0x4d4] sm:$0xf]
        %v557 = vld [vmem:[%s230 + $0x4d8] sm:$0xf]
        %v558 = vld [vmem:[%s230 + $0x4dc] sm:$0xf]
        %v559 = vld [vmem:[%s230 + $0x4e0] sm:$0xf]
        %v560 = vld [vmem:[%s230 + $0x4e4] sm:$0xf]
        %v561 = vld [vmem:[%s230 + $0x4e8] sm:$0xf]
        %v562 = vld [vmem:[%s230 + $0x4ec] sm:$0xf]
        %v563 = vld [vmem:[%s230 + $0x4f0] sm:$0xf]
        %v564 = vld [vmem:[%s230 + $0x4f4] sm:$0xf]
        %v565 = vld [vmem:[%s230 + $0x4f8] sm:$0xf]
        %v566 = vld [vmem:[%s230 + $0x4fc] sm:$0xf]
        %v567 = vld [vmem:[%s230 + $0x500] sm:$0xf]
        %v568 = vld [vmem:[%s230 + $0x504] sm:$0xf]
        %v569 = vld [vmem:[%s230 + $0x508] sm:$0xf]
        %v570 = vld [vmem:[%s230 + $0x50c] sm:$0xf]
        %v571 = vld [vmem:[%s230 + $0x510] sm:$0xf]
        %v572 = vld [vmem:[%s230 + $0x514] sm:$0xf]
        %v573 = vld [vmem:[%s230 + $0x518] sm:$0xf]
        %v574 = vld [vmem:[%s230 + $0x51c] sm:$0xf]
        %v575 = vld [vmem:[%s230 + $0x520] sm:$0xf]
        %v576 = vld [vmem:[%s230 + $0x524] sm:$0xf]
        %v577 = vld [vmem:[%s230 + $0x528] sm:$0xf]
        %v578 = vld [vmem:[%s230 + $0x52c] sm:$0xf]
        %v579 = vld [vmem:[%s230 + $0x530] sm:$0xf]
        %v580 = vld [vmem:[%s230 + $0x534] sm:$0xf]
        %v581 = vld [vmem:[%s230 + $0x538] sm:$0xf]
        %v582 = vld [vmem:[%s230 + $0x53c] sm:$0xf]
        %v583 = vld [vmem:[%s230 + $0x540] sm:$0xf]
        %v584 = vld [vmem:[%s230 + $0x544] sm:$0xf]
        %v585 = vld [vmem:[%s230 + $0x548] sm:$0xf]
        %v586 = vld [vmem:[%s230 + $0x54c] sm:$0xf]
        %v587 = vld [vmem:[%s230 + $0x550] sm:$0xf]
        %v588 = vld [vmem:[%s230 + $0x554] sm:$0xf]
        %v589 = vld [vmem:[%s230 + $0x558] sm:$0xf]
        %v590 = vld [vmem:[%s230 + $0x55c] sm:$0xf]
        %v591 = vld [vmem:[%s230 + $0x560] sm:$0xf]
        %v592 = vld [vmem:[%s230 + $0x564] sm:$0xf]
        %v593 = vld [vmem:[%s230 + $0x568] sm:$0xf]
        %v594 = vld [vmem:[%s230 + $0x56c] sm:$0xf]
        %v595 = vld [vmem:[%s230 + $0x570] sm:$0xf]
        %v596 = vld [vmem:[%s230 + $0x574] sm:$0xf]
        %v597 = vld [vmem:[%s230 + $0x578] sm:$0xf]
        %v598 = vld [vmem:[%s230 + $0x57c] sm:$0xf]
        %v599 = vld [vmem:[%s230 + $0x580] sm:$0xf]
        %v600 = vld [vmem:[%s230 + $0x584] sm:$0xf]
        %v601 = vld [vmem:[%s230 + $0x588] sm:$0xf]
        %v602 = vld [vmem:[%s230 + $0x58c] sm:$0xf]
        %v603 = vld [vmem:[%s230 + $0x590] sm:$0xf]
        %v604 = vld [vmem:[%s230 + $0x594] sm:$0xf]
        %v605 = vld [vmem:[%s230 + $0x598] sm:$0xf]
        %v606 = vld [vmem:[%s230 + $0x59c] sm:$0xf]
        %v607 = vld [vmem:[%s230 + $0x5a0] sm:$0xf]
        %v608 = vld [vmem:[%s230 + $0x5a4] sm:$0xf]
        %v609 = vld [vmem:[%s230 + $0x5a8] sm:$0xf]
        %v610 = vld [vmem:[%s230 + $0x5ac] sm:$0xf]
        %v611 = vld [vmem:[%s230 + $0x5b0] sm:$0xf]
        %v612 = vld [vmem:[%s230 + $0x5b4] sm:$0xf]
        %v613 = vld [vmem:[%s230 + $0x5b8] sm:$0xf]
        %v614 = vld [vmem:[%s230 + $0x5bc] sm:$0xf]
        %v615 = vld [vmem:[%s230 + $0x5c0] sm:$0xf]
        %v616 = vld [vmem:[%s230 + $0x5c4] sm:$0xf]
        %v617 = vld [vmem:[%s230 + $0x5c8] sm:$0xf]
        %v618 = vld [vmem:[%s230 + $0x5cc] sm:$0xf]
        %v619 = vld [vmem:[%s230 + $0x5d0] sm:$0xf]
        %v620 = vld [vmem:[%s230 + $0x5d4] sm:$0xf]
        %v621 = vld [vmem:[%s230 + $0x5d8] sm:$0xf]
        %v622 = vld [vmem:[%s230 + $0x5dc] sm:$0xf]
        %v623 = vld [vmem:[%s230 + $0x5e0] sm:$0xf]
        %v624 = vld [vmem:[%s230 + $0x5e4] sm:$0xf]
        %v625 = vld [vmem:[%s230 + $0x5e8] sm:$0xf]
        %v626 = vld [vmem:[%s230 + $0x5ec] sm:$0xf]
        %v627 = vld [vmem:[%s230 + $0x5f0] sm:$0xf]
        %v628 = vld [vmem:[%s230 + $0x5f4] sm:$0xf]
        %v629 = vld [vmem:[%s230 + $0x5f8] sm:$0xf]
        %v630 = vld [vmem:[%s230 + $0x5fc] sm:$0xf]
        %v631 = vld [vmem:[%s230 + $0x600] sm:$0xf]
        %v632 = vld [vmem:[%s230 + $0x604] sm:$0xf]
        %v633 = vld [vmem:[%s230 + $0x608] sm:$0xf]
        %v634 = vld [vmem:[%s230 + $0x60c] sm:$0xf]
        %v635 = vld [vmem:[%s230 + $0x610] sm:$0xf]
        %v636 = vld [vmem:[%s230 + $0x614] sm:$0xf]
        %v637 = vld [vmem:[%s230 + $0x618] sm:$0xf]
        %v638 = vld [vmem:[%s230 + $0x61c] sm:$0xf]
        %v639 = vld [vmem:[%s230 + $0x620] sm:$0xf]
        %v640 = vld [vmem:[%s230 + $0x624] sm:$0xf]
        %v641 = vld [vmem:[%s230 + $0x628] sm:$0xf]
        %v642 = vld [vmem:[%s230 + $0x62c] sm:$0xf]
        %v643 = vld [vmem:[%s230 + $0x630] sm:$0xf]
        %v644 = vld [vmem:[%s230 + $0x634] sm:$0xf]
        %v645 = vld [vmem:[%s230 + $0x638] sm:$0xf]
        %v646 = vld [vmem:[%s230 + $0x63c] sm:$0xf]
        %v647 = vld [vmem:[%s230 + $0x640] sm:$0xf]
        %v648 = vld [vmem:[%s230 + $0x644] sm:$0xf]
        %v649 = vld [vmem:[%s230 + $0x648] sm:$0xf]
        %v650 = vld [vmem:[%s230 + $0x64c] sm:$0xf]
        %v651 = vld [vmem:[%s230 + $0x650] sm:$0xf]
        %v652 = vld [vmem:[%s230 + $0x654] sm:$0xf]
        %v653 = vld [vmem:[%s230 + $0x658] sm:$0xf]
        %v654 = vld [vmem:[%s230 + $0x65c] sm:$0xf]
        %v655 = vld [vmem:[%s230 + $0x660] sm:$0xf]
        %v656 = vld [vmem:[%s230 + $0x664] sm:$0xf]
        %v657 = vld [vmem:[%s230 + $0x668] sm:$0xf]
        %v658 = vld [vmem:[%s230 + $0x66c] sm:$0xf]
        %v659 = vld [vmem:[%s230 + $0x670] sm:$0xf]
        %v660 = vld [vmem:[%s230 + $0x674] sm:$0xf]
        %v661 = vld [vmem:[%s230 + $0x678] sm:$0xf]
        %v662 = vld [vmem:[%s230 + $0x67c] sm:$0xf]
        %v663 = vld [vmem:[%s230 + $0x680] sm:$0xf]
        %v664 = vld [vmem:[%s230 + $0x684] sm:$0xf]
        %v665 = vld [vmem:[%s230 + $0x688] sm:$0xf]
        %v666 = vld [vmem:[%s230 + $0x68c] sm:$0xf]
        %v667 = vld [vmem:[%s230 + $0x690] sm:$0xf]
        %v668 = vld [vmem:[%s230 + $0x694] sm:$0xf]
        %v669 = vld [vmem:[%s230 + $0x698] sm:$0xf]
        %v670 = vld [vmem:[%s230 + $0x69c] sm:$0xf]
        %v671 = vld [vmem:[%s230 + $0x6a0] sm:$0xf]
        %v672 = vld [vmem:[%s230 + $0x6a4] sm:$0xf]
        %v673 = vld [vmem:[%s230 + $0x6a8] sm:$0xf]
        %v674 = vld [vmem:[%s230 + $0x6ac] sm:$0xf]
        %v675 = vld [vmem:[%s230 + $0x6b0] sm:$0xf]
        %v676 = vld [vmem:[%s230 + $0x6b4] sm:$0xf]
        %v677 = vld [vmem:[%s230 + $0x6b8] sm:$0xf]
        %v678 = vld [vmem:[%s230 + $0x6bc] sm:$0xf]
        %v679 = vld [vmem:[%s230 + $0x6c0] sm:$0xf]
        %v680 = vld [vmem:[%s230 + $0x6c4] sm:$0xf]
        %v681 = vld [vmem:[%s230 + $0x6c8] sm:$0xf]
        %v682 = vld [vmem:[%s230 + $0x6cc] sm:$0xf]
        %v683 = vld [vmem:[%s230 + $0x6d0] sm:$0xf]
        %v684 = vld [vmem:[%s230 + $0x6d4] sm:$0xf]
        %v685 = vld [vmem:[%s230 + $0x6d8] sm:$0xf]
        %v686 = vld [vmem:[%s230 + $0x6dc] sm:$0xf]
        %v687 = vld [vmem:[%s230 + $0x6e0] sm:$0xf]
        %v688 = vld [vmem:[%s230 + $0x6e4] sm:$0xf]
        %v689 = vld [vmem:[%s230 + $0x6e8] sm:$0xf]
        %v690 = vld [vmem:[%s230 + $0x6ec] sm:$0xf]
        %v691 = vld [vmem:[%s230 + $0x6f0] sm:$0xf]
        %v692 = vld [vmem:[%s230 + $0x6f4] sm:$0xf]
        %v693 = vld [vmem:[%s230 + $0x6f8] sm:$0xf]
        %v694 = vld [vmem:[%s230 + $0x6fc] sm:$0xf]
        %v695 = vld [vmem:[%s230 + $0x700] sm:$0xf]
        %v696 = vld [vmem:[%s230 + $0x704] sm:$0xf]
        %v697 = vld [vmem:[%s230 + $0x708] sm:$0xf]
        %v698 = vld [vmem:[%s230 + $0x70c] sm:$0xf]
        %v699 = vld [vmem:[%s230 + $0x710] sm:$0xf]
        %v700 = vld [vmem:[%s230 + $0x714] sm:$0xf]
        %v701 = vld [vmem:[%s230 + $0x718] sm:$0xf]
        %v702 = vld [vmem:[%s230 + $0x71c] sm:$0xf]
        %v703 = vld [vmem:[%s230 + $0x720] sm:$0xf]
        %v704 = vld [vmem:[%s230 + $0x724] sm:$0xf]
        %v705 = vld [vmem:[%s230 + $0x728] sm:$0xf]
        %v706 = vld [vmem:[%s230 + $0x72c] sm:$0xf]
        %v707 = vld [vmem:[%s230 + $0x730] sm:$0xf]
        %v708 = vld [vmem:[%s230 + $0x734] sm:$0xf]
        %v709 = vld [vmem:[%s230 + $0x738] sm:$0xf]
        %v710 = vld [vmem:[%s230 + $0x73c] sm:$0xf]
        %v711 = vld [vmem:[%s230 + $0x740] sm:$0xf]
        %v712 = vld [vmem:[%s230 + $0x744] sm:$0xf]
        %v713 = vld [vmem:[%s230 + $0x748] sm:$0xf]
        %v714 = vld [vmem:[%s230 + $0x74c] sm:$0xf]
        %v715 = vld [vmem:[%s230 + $0x750] sm:$0xf]
        %v716 = vld [vmem:[%s230 + $0x754] sm:$0xf]
        %v717 = vld [vmem:[%s230 + $0x758] sm:$0xf]
        %v718 = vld [vmem:[%s230 + $0x75c] sm:$0xf]
        %v719 = vld [vmem:[%s230 + $0x760] sm:$0xf]
        %v720 = vld [vmem:[%s230 + $0x764] sm:$0xf]
        %v721 = vld [vmem:[%s230 + $0x768] sm:$0xf]
        %v722 = vld [vmem:[%s230 + $0x76c] sm:$0xf]
        %v723 = vld [vmem:[%s230 + $0x770] sm:$0xf]
        %v724 = vld [vmem:[%s230 + $0x774] sm:$0xf]
        %v725 = vld [vmem:[%s230 + $0x778] sm:$0xf]
        %v726 = vld [vmem:[%s230 + $0x77c] sm:$0xf]
        %v727 = vld [vmem:[%s230 + $0x780] sm:$0xf]
        %v728 = vld [vmem:[%s230 + $0x784] sm:$0xf]
        %v729 = vld [vmem:[%s230 + $0x788] sm:$0xf]
        %v730 = vld [vmem:[%s230 + $0x78c] sm:$0xf]
        %v731 = vld [vmem:[%s230 + $0x790] sm:$0xf]
        %v732 = vld [vmem:[%s230 + $0x794] sm:$0xf]
        %v733 = vld [vmem:[%s230 + $0x798] sm:$0xf]
        %v734 = vld [vmem:[%s230 + $0x79c] sm:$0xf]
        %v735 = vld [vmem:[%s230 + $0x7a0] sm:$0xf]
        %v736 = vld [vmem:[%s230 + $0x7a4] sm:$0xf]
        %v737 = vld [vmem:[%s230 + $0x7a8] sm:$0xf]
        %v738 = vld [vmem:[%s230 + $0x7ac] sm:$0xf]
        %v739 = vld [vmem:[%s230 + $0x7b0] sm:$0xf]
        %v740 = vld [vmem:[%s230 + $0x7b4] sm:$0xf]
        %v741 = vld [vmem:[%s230 + $0x7b8] sm:$0xf]
        %v742 = vld [vmem:[%s230 + $0x7bc] sm:$0xf]
        %v743 = vld [vmem:[%s230 + $0x7c0] sm:$0xf]
        %v744 = vld [vmem:[%s230 + $0x7c4] sm:$0xf]
        %v745 = vld [vmem:[%s230 + $0x7c8] sm:$0xf]
        %v746 = vld [vmem:[%s230 + $0x7cc] sm:$0xf]
        %v747 = vld [vmem:[%s230 + $0x7d0] sm:$0xf]
        %v748 = vld [vmem:[%s230 + $0x7d4] sm:$0xf]
        %v749 = vld [vmem:[%s230 + $0x7d8] sm:$0xf]
        %v750 = vld [vmem:[%s230 + $0x7dc] sm:$0xf]
        %v751 = vld [vmem:[%s230 + $0x7e0] sm:$0xf]
        %v752 = vld [vmem:[%s230 + $0x7e4] sm:$0xf]
        %v753 = vld [vmem:[%s230 + $0x7e8] sm:$0xf]
        %v754 = vld [vmem:[%s230 + $0x7ec] sm:$0xf]
        %v755 = vld [vmem:[%s230 + $0x7f0] sm:$0xf]
        %v756 = vld [vmem:[%s230 + $0x7f4] sm:$0xf]
        %v757 = vld [vmem:[%s230 + $0x7f8] sm:$0xf]
        %v758 = vld [vmem:[%s230 + $0x7fc] sm:$0xf]
        %v759 = vld [vmem:[%s230 + $0x800] sm:$0xf]
        %v760 = vld [vmem:[%s230 + $0x804] sm:$0xf]
        %v761 = vld [vmem:[%s230 + $0x808] sm:$0xf]
        %v762 = vld [vmem:[%s230 + $0x80c] sm:$0xf]
        %v763 = vld [vmem:[%s230 + $0x810] sm:$0xf]
        %v764 = vld [vmem:[%s230 + $0x814] sm:$0xf]
        %v765 = vld [vmem:[%s230 + $0x818] sm:$0xf]
        %v766 = vld [vmem:[%s230 + $0x81c] sm:$0xf]
        %v767 = vld [vmem:[%s230 + $0x820] sm:$0xf]
        %v768 = vld [vmem:[%s230 + $0x824] sm:$0xf]
        %v769 = vld [vmem:[%s230 + $0x828] sm:$0xf]
        %v770 = vld [vmem:[%s230 + $0x82c] sm:$0xf]
        %v771 = vld [vmem:[%s230 + $0x830] sm:$0xf]
        %v772 = vld [vmem:[%s230 + $0x834] sm:$0xf]
        %v773 = vld [vmem:[%s230 + $0x838] sm:$0xf]
        %v774 = vld [vmem:[%s230 + $0x83c] sm:$0xf]
        %v775 = vld [vmem:[%s230 + $0x840] sm:$0xf]
        %v776 = vld [vmem:[%s230 + $0x844] sm:$0xf]
        %v777 = vld [vmem:[%s230 + $0x848] sm:$0xf]
        %v778 = vld [vmem:[%s230 + $0x84c] sm:$0xf]
        %v779 = vld [vmem:[%s230 + $0x850] sm:$0xf]
        %v780 = vld [vmem:[%s230 + $0x854] sm:$0xf]
        %v781 = vld [vmem:[%s230 + $0x858] sm:$0xf]
        %v782 = vld [vmem:[%s230 + $0x85c] sm:$0xf]
        %v783 = vld [vmem:[%s230 + $0x860] sm:$0xf]
        %v784 = vld [vmem:[%s230 + $0x864] sm:$0xf]
        %v785 = vld [vmem:[%s230 + $0x868] sm:$0xf]
        %v786 = vld [vmem:[%s230 + $0x86c] sm:$0xf]
        %v787 = vld [vmem:[%s230 + $0x870] sm:$0xf]
        %v788 = vld [vmem:[%s230 + $0x874] sm:$0xf]
        %v789 = vld [vmem:[%s230 + $0x878] sm:$0xf]
        %v790 = vld [vmem:[%s230 + $0x87c] sm:$0xf]
        %v791 = vld [vmem:[%s230 + $0x880] sm:$0xf]
        %v792 = vld [vmem:[%s230 + $0x884] sm:$0xf]
        %v793 = vld [vmem:[%s230 + $0x888] sm:$0xf]
        %v794 = vld [vmem:[%s230 + $0x88c] sm:$0xf]
        %v795 = vld [vmem:[%s230 + $0x890] sm:$0xf]
        %v796 = vld [vmem:[%s230 + $0x894] sm:$0xf]
        %v797 = vld [vmem:[%s230 + $0x898] sm:$0xf]
        %v798 = vld [vmem:[%s230 + $0x89c] sm:$0xf]
        %v799 = vld [vmem:[%s230 + $0x8a0] sm:$0xf]
        %v800 = vld [vmem:[%s230 + $0x8a4] sm:$0xf]
        %v801 = vld [vmem:[%s230 + $0x8a8] sm:$0xf]
        %v802 = vld [vmem:[%s230 + $0x8ac] sm:$0xf]
        %v803 = vld [vmem:[%s230 + $0x8b0] sm:$0xf]
        %v804 = vld [vmem:[%s230 + $0x8b4] sm:$0xf]
        %v805 = vld [vmem:[%s230 + $0x8b8] sm:$0xf]
        %v806 = vld [vmem:[%s230 + $0x8bc] sm:$0xf]
        %v807 = vld [vmem:[%s230 + $0x8c0] sm:$0xf]
        %v808 = vld [vmem:[%s230 + $0x8c4] sm:$0xf]
        %v809 = vld [vmem:[%s230 + $0x8c8] sm:$0xf]
        %v810 = vld [vmem:[%s230 + $0x8cc] sm:$0xf]
        %v811 = vld [vmem:[%s230 + $0x8d0] sm:$0xf]
        %v812 = vld [vmem:[%s230 + $0x8d4] sm:$0xf]
        %v813 = vld [vmem:[%s230 + $0x8d8] sm:$0xf]
        %v814 = vld [vmem:[%s230 + $0x8dc] sm:$0xf]
        %v815 = vld [vmem:[%s230 + $0x8e0] sm:$0xf]
        %v816 = vld [vmem:[%s230 + $0x8e4] sm:$0xf]
        %v817 = vld [vmem:[%s230 + $0x8e8] sm:$0xf]
        %v818 = vld [vmem:[%s230 + $0x8ec] sm:$0xf]
        %v819 = vld [vmem:[%s230 + $0x8f0] sm:$0xf]
        %v820 = vld [vmem:[%s230 + $0x8f4] sm:$0xf]
        %v821 = vld [vmem:[%s230 + $0x8f8] sm:$0xf]
        %v822 = vld [vmem:[%s230 + $0x8fc] sm:$0xf]
        %v823 = vld [vmem:[%s230 + $0x900] sm:$0xf]
        %v824 = vld [vmem:[%s230 + $0x904] sm:$0xf]
        %v825 = vld [vmem:[%s230 + $0x908] sm:$0xf]
        %v826 = vld [vmem:[%s230 + $0x90c] sm:$0xf]
        %v827 = vld [vmem:[%s230 + $0x910] sm:$0xf]
        %v828 = vld [vmem:[%s230 + $0x914] sm:$0xf]
        %v829 = vld [vmem:[%s230 + $0x918] sm:$0xf]
        %v830 = vld [vmem:[%s230 + $0x91c] sm:$0xf]
        %v831 = vld [vmem:[%s230 + $0x920] sm:$0xf]
        %v832 = vld [vmem:[%s230 + $0x924] sm:$0xf]
        %v833 = vld [vmem:[%s230 + $0x928] sm:$0xf]
        %v834 = vld [vmem:[%s230 + $0x92c] sm:$0xf]
        %v835 = vld [vmem:[%s230 + $0x930] sm:$0xf]
        %v836 = vld [vmem:[%s230 + $0x934] sm:$0xf]
        %v837 = vld [vmem:[%s230 + $0x938] sm:$0xf]
        %v838 = vld [vmem:[%s230 + $0x93c] sm:$0xf]
        %v839 = vld [vmem:[%s230 + $0x940] sm:$0xf]
        %v840 = vld [vmem:[%s230 + $0x944] sm:$0xf]
        %v841 = vld [vmem:[%s230 + $0x948] sm:$0xf]
        %v842 = vld [vmem:[%s230 + $0x94c] sm:$0xf]
        %v843 = vld [vmem:[%s230 + $0x950] sm:$0xf]
        %v844 = vld [vmem:[%s230 + $0x954] sm:$0xf]
        %v845 = vld [vmem:[%s230 + $0x958] sm:$0xf]
        %v846 = vld [vmem:[%s230 + $0x95c] sm:$0xf]
        %v847 = vld [vmem:[%s230 + $0x960] sm:$0xf]
        %v848 = vld [vmem:[%s230 + $0x964] sm:$0xf]
        %v849 = vld [vmem:[%s230 + $0x968] sm:$0xf]
        %v850 = vld [vmem:[%s230 + $0x96c] sm:$0xf]
        %v851 = vld [vmem:[%s230 + $0x970] sm:$0xf]
        %v852 = vld [vmem:[%s230 + $0x974] sm:$0xf]
        %v853 = vld [vmem:[%s230 + $0x978] sm:$0xf]
        %v854 = vld [vmem:[%s230 + $0x97c] sm:$0xf]
        %v855 = vld [vmem:[%s230 + $0x980] sm:$0xf]
        %v856 = vld [vmem:[%s230 + $0x984] sm:$0xf]
        %v857 = vld [vmem:[%s230 + $0x988] sm:$0xf]
        %v858 = vld [vmem:[%s230 + $0x98c] sm:$0xf]
        %v859 = vld [vmem:[%s230 + $0x990] sm:$0xf]
        %v860 = vld [vmem:[%s230 + $0x994] sm:$0xf]
        %v861 = vld [vmem:[%s230 + $0x998] sm:$0xf]
        %v862 = vld [vmem:[%s230 + $0x99c] sm:$0xf]
        %v863 = vld [vmem:[%s230 + $0x9a0] sm:$0xf]
        %v864 = vld [vmem:[%s230 + $0x9a4] sm:$0xf]
        %v865 = vld [vmem:[%s230 + $0x9a8] sm:$0xf]
        %v866 = vld [vmem:[%s230 + $0x9ac] sm:$0xf]
        %v867 = vld [vmem:[%s230 + $0x9b0] sm:$0xf]
        %v868 = vld [vmem:[%s230 + $0x9b4] sm:$0xf]
        %v869 = vld [vmem:[%s230 + $0x9b8] sm:$0xf]
        %v870 = vld [vmem:[%s230 + $0x9bc] sm:$0xf]
        %v871 = vld [vmem:[%s230 + $0x9c0] sm:$0xf]
        %v872 = vld [vmem:[%s230 + $0x9c4] sm:$0xf]
        %v873 = vld [vmem:[%s230 + $0x9c8] sm:$0xf]
        %v874 = vld [vmem:[%s230 + $0x9cc] sm:$0xf]
        %v875 = vld [vmem:[%s230 + $0x9d0] sm:$0xf]
        %v876 = vld [vmem:[%s230 + $0x9d4] sm:$0xf]
        %v877 = vld [vmem:[%s230 + $0x9d8] sm:$0xf]
        %v878 = vld [vmem:[%s230 + $0x9dc] sm:$0xf]
        %v879 = vld [vmem:[%s230 + $0x9e0] sm:$0xf]
        %v880 = vld [vmem:[%s230 + $0x9e4] sm:$0xf]
        %v881 = vld [vmem:[%s230 + $0x9e8] sm:$0xf]
        %v882 = vld [vmem:[%s230 + $0x9ec] sm:$0xf]
        %v883 = vld [vmem:[%s230 + $0x9f0] sm:$0xf]
        %v884 = vld [vmem:[%s230 + $0x9f4] sm:$0xf]
        %v885 = vld [vmem:[%s230 + $0x9f8] sm:$0xf]
        %v886 = vld [vmem:[%s230 + $0x9fc] sm:$0xf]
        %v887 = vld [vmem:[%s230 + $0xa00] sm:$0xf]
        %v888 = vld [vmem:[%s230 + $0xa04] sm:$0xf]
        %v889 = vld [vmem:[%s230 + $0xa08] sm:$0xf]
        %v890 = vld [vmem:[%s230 + $0xa0c] sm:$0xf]
        %v891 = vld [vmem:[%s230 + $0xa10] sm:$0xf]
        %v892 = vld [vmem:[%s230 + $0xa14] sm:$0xf]
        %v893 = vld [vmem:[%s230 + $0xa18] sm:$0xf]
        %v894 = vld [vmem:[%s230 + $0xa1c] sm:$0xf]
        %v895 = vld [vmem:[%s230 + $0xa20] sm:$0xf]
        %v896 = vld [vmem:[%s230 + $0xa24] sm:$0xf]
        %v897 = vld [vmem:[%s230 + $0xa28] sm:$0xf]
        %v898 = vld [vmem:[%s230 + $0xa2c] sm:$0xf]
        %v899 = vld [vmem:[%s230 + $0xa30] sm:$0xf]
        %v900 = vld [vmem:[%s230 + $0xa34] sm:$0xf]
        %v901 = vld [vmem:[%s230 + $0xa38] sm:$0xf]
        %v902 = vld [vmem:[%s230 + $0xa3c] sm:$0xf]
        %v903 = vld [vmem:[%s230 + $0xa40] sm:$0xf]
        %v904 = vld [vmem:[%s230 + $0xa44] sm:$0xf]
        %v905 = vld [vmem:[%s230 + $0xa48] sm:$0xf]
        %v906 = vld [vmem:[%s230 + $0xa4c] sm:$0xf]
        %v907 = vld [vmem:[%s230 + $0xa50] sm:$0xf]
        %v908 = vld [vmem:[%s230 + $0xa54] sm:$0xf]
        %v909 = vld [vmem:[%s230 + $0xa58] sm:$0xf]
        %v910 = vld [vmem:[%s230 + $0xa5c] sm:$0xf]
        %v911 = vld [vmem:[%s230 + $0xa60] sm:$0xf]
        %v912 = vld [vmem:[%s230 + $0xa64] sm:$0xf]
        %v913 = vld [vmem:[%s230 + $0xa68] sm:$0xf]
        %v914 = vld [vmem:[%s230 + $0xa6c] sm:$0xf]
        %v915 = vld [vmem:[%s230 + $0xa70] sm:$0xf]
        %v916 = vld [vmem:[%s230 + $0xa74] sm:$0xf]
        %v917 = vld [vmem:[%s230 + $0xa78] sm:$0xf]
        %v918 = vld [vmem:[%s230 + $0xa7c] sm:$0xf]
        %v919 = vld [vmem:[%s230 + $0xa80] sm:$0xf]
        %v920 = vld [vmem:[%s230 + $0xa84] sm:$0xf]
        %v921 = vld [vmem:[%s230 + $0xa88] sm:$0xf]
        %v922 = vld [vmem:[%s230 + $0xa8c] sm:$0xf]
        %v923 = vld [vmem:[%s230 + $0xa90] sm:$0xf]
        %v924 = vld [vmem:[%s230 + $0xa94] sm:$0xf]
        %v925 = vld [vmem:[%s230 + $0xa98] sm:$0xf]
        %v926 = vld [vmem:[%s230 + $0xa9c] sm:$0xf]
        %v927 = vld [vmem:[%s230 + $0xaa0] sm:$0xf]
        %v928 = vld [vmem:[%s230 + $0xaa4] sm:$0xf]
        %v929 = vld [vmem:[%s230 + $0xaa8] sm:$0xf]
        %v930 = vld [vmem:[%s230 + $0xaac] sm:$0xf]
        %v931 = vld [vmem:[%s230 + $0xab0] sm:$0xf]
        %v932 = vld [vmem:[%s230 + $0xab4] sm:$0xf]
        %v933 = vld [vmem:[%s230 + $0xab8] sm:$0xf]
        %v934 = vld [vmem:[%s230 + $0xabc] sm:$0xf]
        %v935 = vld [vmem:[%s230 + $0xac0] sm:$0xf]
        %v936 = vld [vmem:[%s230 + $0xac4] sm:$0xf]
        %v937 = vld [vmem:[%s230 + $0xac8] sm:$0xf]
        %v938 = vld [vmem:[%s230 + $0xacc] sm:$0xf]
        %v939 = vld [vmem:[%s230 + $0xad0] sm:$0xf]
        %v940 = vld [vmem:[%s230 + $0xad4] sm:$0xf]
        %v941 = vld [vmem:[%s230 + $0xad8] sm:$0xf]
        %v942 = vld [vmem:[%s230 + $0xadc] sm:$0xf]
        %v943 = vld [vmem:[%s230 + $0xae0] sm:$0xf]
        %v944 = vld [vmem:[%s230 + $0xae4] sm:$0xf]
        %v945 = vld [vmem:[%s230 + $0xae8] sm:$0xf]
        %v946 = vld [vmem:[%s230 + $0xaec] sm:$0xf]
        %v947 = vld [vmem:[%s230 + $0xaf0] sm:$0xf]
        %v948 = vld [vmem:[%s230 + $0xaf4] sm:$0xf]
        %v949 = vld [vmem:[%s230 + $0xaf8] sm:$0xf]
        %v950 = vld [vmem:[%s230 + $0xafc] sm:$0xf]
        %v951 = vld [vmem:[%s230 + $0xb00] sm:$0xf]
        %v952 = vld [vmem:[%s230 + $0xb04] sm:$0xf]
        %v953 = vld [vmem:[%s230 + $0xb08] sm:$0xf]
        %v954 = vld [vmem:[%s230 + $0xb0c] sm:$0xf]
        %v955 = vld [vmem:[%s230 + $0xb10] sm:$0xf]
        %v956 = vld [vmem:[%s230 + $0xb14] sm:$0xf]
        %v957 = vld [vmem:[%s230 + $0xb18] sm:$0xf]
        %v958 = vld [vmem:[%s230 + $0xb1c] sm:$0xf]
        %v959 = vld [vmem:[%s230 + $0xb20] sm:$0xf]
        %v960 = vld [vmem:[%s230 + $0xb24] sm:$0xf]
        %v961 = vld [vmem:[%s230 + $0xb28] sm:$0xf]
        %v962 = vld [vmem:[%s230 + $0xb2c] sm:$0xf]
        %v963 = vld [vmem:[%s230 + $0xb30] sm:$0xf]
        %v964 = vld [vmem:[%s230 + $0xb34] sm:$0xf]
        %v965 = vld [vmem:[%s230 + $0xb38] sm:$0xf]
        %v966 = vld [vmem:[%s230 + $0xb3c] sm:$0xf]
        %v967 = vld [vmem:[%s230 + $0xb40] sm:$0xf]
        %v968 = vld [vmem:[%s230 + $0xb44] sm:$0xf]
        %v969 = vld [vmem:[%s230 + $0xb48] sm:$0xf]
        %v970 = vld [vmem:[%s230 + $0xb4c] sm:$0xf]
        %v971 = vld [vmem:[%s230 + $0xb50] sm:$0xf]
        %v972 = vld [vmem:[%s230 + $0xb54] sm:$0xf]
        %v973 = vld [vmem:[%s230 + $0xb58] sm:$0xf]
        %v974 = vld [vmem:[%s230 + $0xb5c] sm:$0xf]
        %v975 = vld [vmem:[%s230 + $0xb60] sm:$0xf]
        %v976 = vld [vmem:[%s230 + $0xb64] sm:$0xf]
        %v977 = vld [vmem:[%s230 + $0xb68] sm:$0xf]
        %v978 = vld [vmem:[%s230 + $0xb6c] sm:$0xf]
        %v979 = vld [vmem:[%s230 + $0xb70] sm:$0xf]
        %v980 = vld [vmem:[%s230 + $0xb74] sm:$0xf]
        %v981 = vld [vmem:[%s230 + $0xb78] sm:$0xf]
        %v982 = vld [vmem:[%s230 + $0xb7c] sm:$0xf]
        %v983 = vld [vmem:[%s230 + $0xb80] sm:$0xf]
        %v984 = vld [vmem:[%s230 + $0xb84] sm:$0xf]
        %v985 = vld [vmem:[%s230 + $0xb88] sm:$0xf]
        %v986 = vld [vmem:[%s230 + $0xb8c] sm:$0xf]
        %v987 = vld [vmem:[%s230 + $0xb90] sm:$0xf]
        %v988 = vld [vmem:[%s230 + $0xb94] sm:$0xf]
        %v989 = vld [vmem:[%s230 + $0xb98] sm:$0xf]
        %v990 = vld [vmem:[%s230 + $0xb9c] sm:$0xf]
        %v991 = vld [vmem:[%s230 + $0xba0] sm:$0xf]
        %v992 = vld [vmem:[%s230 + $0xba4] sm:$0xf]
        %v993 = vld [vmem:[%s230 + $0xba8] sm:$0xf]
        %v994 = vld [vmem:[%s230 + $0xbac] sm:$0xf]
        %v995 = vld [vmem:[%s230 + $0xbb0] sm:$0xf]
        %v996 = vld [vmem:[%s230 + $0xbb4] sm:$0xf]
        %v997 = vld [vmem:[%s230 + $0xbb8] sm:$0xf]
        %v998 = vld [vmem:[%s230 + $0xbbc] sm:$0xf]
        %v999 = vld [vmem:[%s230 + $0xbc0] sm:$0xf]
        %v1000 = vld [vmem:[%s230 + $0xbc4] sm:$0xf]
        %v1001 = vld [vmem:[%s230 + $0xbc8] sm:$0xf]
        %v1002 = vld [vmem:[%s230 + $0xbcc] sm:$0xf]
        %v1003 = vld [vmem:[%s230 + $0xbd0] sm:$0xf]
        %v1004 = vld [vmem:[%s230 + $0xbd4] sm:$0xf]
        %v1005 = vld [vmem:[%s230 + $0xbd8] sm:$0xf]
        %v1006 = vld [vmem:[%s230 + $0xbdc] sm:$0xf]
        %v1007 = vld [vmem:[%s230 + $0xbe0] sm:$0xf]
        %v1008 = vld [vmem:[%s230 + $0xbe4] sm:$0xf]
        %v1009 = vld [vmem:[%s230 + $0xbe8] sm:$0xf]
        %v1010 = vld [vmem:[%s230 + $0xbec] sm:$0xf]
        %v1011 = vld [vmem:[%s230 + $0xbf0] sm:$0xf]
        %v1012 = vld [vmem:[%s230 + $0xbf4] sm:$0xf]
        %v1013 = vld [vmem:[%s230 + $0xbf8] sm:$0xf]
        %v1014 = vld [vmem:[%s230 + $0xbfc] sm:$0xf]
        %v1015 = vld [vmem:[%s230 + $0xc00] sm:$0xf]
        %v1016 = vld [vmem:[%s230 + $0xc04] sm:$0xf]
        %v1017 = vld [vmem:[%s230 + $0xc08] sm:$0xf]
        %v1018 = vld [vmem:[%s230 + $0xc0c] sm:$0xf]
        %v1019 = vld [vmem:[%s230 + $0xc10] sm:$0xf]
        %v1020 = vld [vmem:[%s230 + $0xc14] sm:$0xf]
        %v1021 = vld [vmem:[%s230 + $0xc18] sm:$0xf]
        %v1022 = vld [vmem:[%s230 + $0xc1c] sm:$0xf]
        %v1023 = vld [vmem:[%s230 + $0xc20] sm:$0xf]
        %v1024 = vld [vmem:[%s230 + $0xc24] sm:$0xf]
        %v1025 = vld [vmem:[%s230 + $0xc28] sm:$0xf]
        %v1026 = vld [vmem:[%s230 + $0xc2c] sm:$0xf]
        %v1027 = vld [vmem:[%s230 + $0xc30] sm:$0xf]
        %v1028 = vld [vmem:[%s230 + $0xc34] sm:$0xf]
        %v1029 = vld [vmem:[%s230 + $0xc38] sm:$0xf]
        %v1030 = vld [vmem:[%s230 + $0xc3c] sm:$0xf]
        %v1038 = vcombine.high %v240, %v240
        %v1040 = vunpack.c.l.s4 1966171168
        %v1041 = vunpack.c.0.s8 %v1040
        %v1042 = vlaneseq
        %v1043 = vshrl.u32 %v1042, 7
        %v1044 = vsub.s32 %v1041, %v1043
        %v1045 = vrot.slane %v240, %v1044
        %v1047 = vunpack.c.l.s4 1966171168
        %v1048 = vunpack.c.0.s8 %v1047
        %v1049 = vlaneseq
        %v1050 = vshrl.u32 %v1049, 7
        %v1051 = vsub.s32 %v1048, %v1050
        %v1052 = vrot.slane %v1038, %v1051
        %v1053 = vcombine.high %v1045, %v1045
        %v1054 = vcombine.high %v1052, %v1052
        %v1056 = vunpack.c.l.s4 1966171168
        %v1057 = vunpack.c.0.s8 %v1056
        %v1058 = vlaneseq
        %v1059 = vshrl.u32 %v1058, 7
        %v1060 = vsub.s32 %v1057, %v1059
        %v1061 = vrot.slane %v1045, %v1060
        %v1063 = vunpack.c.l.s4 1966171168
        %v1064 = vunpack.c.0.s8 %v1063
        %v1065 = vlaneseq
        %v1066 = vshrl.u32 %v1065, 7
        %v1067 = vsub.s32 %v1064, %v1066
        %v1068 = vrot.slane %v1052, %v1067
        %v1070 = vunpack.c.l.s4 1966171168
        %v1071 = vunpack.c.0.s8 %v1070
        %v1072 = vlaneseq
        %v1073 = vshrl.u32 %v1072, 7
        %v1074 = vsub.s32 %v1071, %v1073
        %v1075 = vrot.slane %v1053, %v1074
        %v1077 = vunpack.c.l.s4 1966171168
        %v1078 = vunpack.c.0.s8 %v1077
        %v1079 = vlaneseq
        %v1080 = vshrl.u32 %v1079, 7
        %v1081 = vsub.s32 %v1078, %v1080
        %v1082 = vrot.slane %v1054, %v1081
        %v1083 = vcombine.high %v1061, %v1061
        %v1084 = vcombine.high %v1068, %v1068
        %v1085 = vcombine.high %v1075, %v1075
        %v1086 = vcombine.high %v1082, %v1082
        %v1087 = vcombine.high %v241, %v241
        %v1089 = vunpack.c.l.s4 1966171168
        %v1090 = vunpack.c.0.s8 %v1089
        %v1091 = vlaneseq
        %v1092 = vshrl.u32 %v1091, 7
        %v1093 = vsub.s32 %v1090, %v1092
        %v1094 = vrot.slane %v241, %v1093
        %v1096 = vunpack.c.l.s4 1966171168
        %v1097 = vunpack.c.0.s8 %v1096
        %v1098 = vlaneseq
        %v1099 = vshrl.u32 %v1098, 7
        %v1100 = vsub.s32 %v1097, %v1099
        %v1101 = vrot.slane %v1087, %v1100
        %v1102 = vcombine.high %v1094, %v1094
        %v1103 = vcombine.high %v1101, %v1101
        %v1105 = vunpack.c.l.s4 1966171168
        %v1106 = vunpack.c.0.s8 %v1105
        %v1107 = vlaneseq
        %v1108 = vshrl.u32 %v1107, 7
        %v1109 = vsub.s32 %v1106, %v1108
        %v1110 = vrot.slane %v1094, %v1109
        %v1112 = vunpack.c.l.s4 1966171168
        %v1113 = vunpack.c.0.s8 %v1112
        %v1114 = vlaneseq
        %v1115 = vshrl.u32 %v1114, 7
        %v1116 = vsub.s32 %v1113, %v1115
        %v1117 = vrot.slane %v1101, %v1116
        %v1119 = vunpack.c.l.s4 1966171168
        %v1120 = vunpack.c.0.s8 %v1119
        %v1121 = vlaneseq
        %v1122 = vshrl.u32 %v1121, 7
        %v1123 = vsub.s32 %v1120, %v1122
        %v1124 = vrot.slane %v1102, %v1123
        %v1126 = vunpack.c.l.s4 1966171168
        %v1127 = vunpack.c.0.s8 %v1126
        %v1128 = vlaneseq
        %v1129 = vshrl.u32 %v1128, 7
        %v1130 = vsub.s32 %v1127, %v1129
        %v1131 = vrot.slane %v1103, %v1130
        %v1132 = vcombine.high %v1110, %v1110
        %v1133 = vcombine.high %v1117, %v1117
        %v1134 = vcombine.high %v1124, %v1124
        %v1135 = vcombine.high %v1131, %v1131
        %v1136 = vcombine.high %v242, %v242
        %v1138 = vunpack.c.l.s4 1966171168
        %v1139 = vunpack.c.0.s8 %v1138
        %v1140 = vlaneseq
        %v1141 = vshrl.u32 %v1140, 7
        %v1142 = vsub.s32 %v1139, %v1141
        %v1143 = vrot.slane %v242, %v1142
        %v1145 = vunpack.c.l.s4 1966171168
        %v1146 = vunpack.c.0.s8 %v1145
        %v1147 = vlaneseq
        %v1148 = vshrl.u32 %v1147, 7
        %v1149 = vsub.s32 %v1146, %v1148
        %v1150 = vrot.slane %v1136, %v1149
        %v1151 = vcombine.high %v1143, %v1143
        %v1152 = vcombine.high %v1150, %v1150
        %v1154 = vunpack.c.l.s4 1966171168
        %v1155 = vunpack.c.0.s8 %v1154
        %v1156 = vlaneseq
        %v1157 = vshrl.u32 %v1156, 7
        %v1158 = vsub.s32 %v1155, %v1157
        %v1159 = vrot.slane %v1143, %v1158
        %v1161 = vunpack.c.l.s4 1966171168
        %v1162 = vunpack.c.0.s8 %v1161
        %v1163 = vlaneseq
        %v1164 = vshrl.u32 %v1163, 7
        %v1165 = vsub.s32 %v1162, %v1164
        %v1166 = vrot.slane %v1150, %v1165
        %v1168 = vunpack.c.l.s4 1966171168
        %v1169 = vunpack.c.0.s8 %v1168
        %v1170 = vlaneseq
        %v1171 = vshrl.u32 %v1170, 7
        %v1172 = vsub.s32 %v1169, %v1171
        %v1173 = vrot.slane %v1151, %v1172
        %v1175 = vunpack.c.l.s4 1966171168
        %v1176 = vunpack.c.0.s8 %v1175
        %v1177 = vlaneseq
        %v1178 = vshrl.u32 %v1177, 7
        %v1179 = vsub.s32 %v1176, %v1178
        %v1180 = vrot.slane %v1152, %v1179
        %v1181 = vcombine.high %v1159, %v1159
        %v1182 = vcombine.high %v1166, %v1166
        %v1183 = vcombine.high %v1173, %v1173
        %v1184 = vcombine.high %v1180, %v1180
        %v1185 = vcombine.high %v243, %v243
        %v1187 = vunpack.c.l.s4 1966171168
        %v1188 = vunpack.c.0.s8 %v1187
        %v1189 = vlaneseq
        %v1190 = vshrl.u32 %v1189, 7
        %v1191 = vsub.s32 %v1188, %v1190
        %v1192 = vrot.slane %v243, %v1191
        %v1194 = vunpack.c.l.s4 1966171168
        %v1195 = vunpack.c.0.s8 %v1194
        %v1196 = vlaneseq
        %v1197 = vshrl.u32 %v1196, 7
        %v1198 = vsub.s32 %v1195, %v1197
        %v1199 = vrot.slane %v1185, %v1198
        %v1200 = vcombine.high %v1192, %v1192
        %v1201 = vcombine.high %v1199, %v1199
        %v1203 = vunpack.c.l.s4 1966171168
        %v1204 = vunpack.c.0.s8 %v1203
        %v1205 = vlaneseq
        %v1206 = vshrl.u32 %v1205, 7
        %v1207 = vsub.s32 %v1204, %v1206
        %v1208 = vrot.slane %v1192, %v1207
        %v1210 = vunpack.c.l.s4 1966171168
        %v1211 = vunpack.c.0.s8 %v1210
        %v1212 = vlaneseq
        %v1213 = vshrl.u32 %v1212, 7
        %v1214 = vsub.s32 %v1211, %v1213
        %v1215 = vrot.slane %v1199, %v1214
        %v1217 = vunpack.c.l.s4 1966171168
        %v1218 = vunpack.c.0.s8 %v1217
        %v1219 = vlaneseq
        %v1220 = vshrl.u32 %v1219, 7
        %v1221 = vsub.s32 %v1218, %v1220
        %v1222 = vrot.slane %v1200, %v1221
        %v1224 = vunpack.c.l.s4 1966171168
        %v1225 = vunpack.c.0.s8 %v1224
        %v1226 = vlaneseq
        %v1227 = vshrl.u32 %v1226, 7
        %v1228 = vsub.s32 %v1225, %v1227
        %v1229 = vrot.slane %v1201, %v1228
        %v1230 = vcombine.high %v1208, %v1208
        %v1231 = vcombine.high %v1215, %v1215
        %v1232 = vcombine.high %v1222, %v1222
        %v1233 = vcombine.high %v1229, %v1229
        %v1234 = vcombine.high %v244, %v244
        %v1236 = vunpack.c.l.s4 1966171168
        %v1237 = vunpack.c.0.s8 %v1236
        %v1238 = vlaneseq
        %v1239 = vshrl.u32 %v1238, 7
        %v1240 = vsub.s32 %v1237, %v1239
        %v1241 = vrot.slane %v244, %v1240
        %v1243 = vunpack.c.l.s4 1966171168
        %v1244 = vunpack.c.0.s8 %v1243
        %v1245 = vlaneseq
        %v1246 = vshrl.u32 %v1245, 7
        %v1247 = vsub.s32 %v1244, %v1246
        %v1248 = vrot.slane %v1234, %v1247
        %v1249 = vcombine.high %v1241, %v1241
        %v1250 = vcombine.high %v1248, %v1248
        %v1252 = vunpack.c.l.s4 1966171168
        %v1253 = vunpack.c.0.s8 %v1252
        %v1254 = vlaneseq
        %v1255 = vshrl.u32 %v1254, 7
        %v1256 = vsub.s32 %v1253, %v1255
        %v1257 = vrot.slane %v1241, %v1256
        %v1259 = vunpack.c.l.s4 1966171168
        %v1260 = vunpack.c.0.s8 %v1259
        %v1261 = vlaneseq
        %v1262 = vshrl.u32 %v1261, 7
        %v1263 = vsub.s32 %v1260, %v1262
        %v1264 = vrot.slane %v1248, %v1263
        %v1266 = vunpack.c.l.s4 1966171168
        %v1267 = vunpack.c.0.s8 %v1266
        %v1268 = vlaneseq
        %v1269 = vshrl.u32 %v1268, 7
        %v1270 = vsub.s32 %v1267, %v1269
        %v1271 = vrot.slane %v1249, %v1270
        %v1273 = vunpack.c.l.s4 1966171168
        %v1274 = vunpack.c.0.s8 %v1273
        %v1275 = vlaneseq
        %v1276 = vshrl.u32 %v1275, 7
        %v1277 = vsub.s32 %v1274, %v1276
        %v1278 = vrot.slane %v1250, %v1277
        %v1279 = vcombine.high %v1257, %v1257
        %v1280 = vcombine.high %v1264, %v1264
        %v1281 = vcombine.high %v1271, %v1271
        %v1282 = vcombine.high %v1278, %v1278
        %v1283 = vcombine.high %v245, %v245
        %v1285 = vunpack.c.l.s4 1966171168
        %v1286 = vunpack.c.0.s8 %v1285
        %v1287 = vlaneseq
        %v1288 = vshrl.u32 %v1287, 7
        %v1289 = vsub.s32 %v1286, %v1288
        %v1290 = vrot.slane %v245, %v1289
        %v1292 = vunpack.c.l.s4 1966171168
        %v1293 = vunpack.c.0.s8 %v1292
        %v1294 = vlaneseq
        %v1295 = vshrl.u32 %v1294, 7
        %v1296 = vsub.s32 %v1293, %v1295
        %v1297 = vrot.slane %v1283, %v1296
        %v1298 = vcombine.high %v1290, %v1290
        %v1299 = vcombine.high %v1297, %v1297
        %v1301 = vunpack.c.l.s4 1966171168
        %v1302 = vunpack.c.0.s8 %v1301
        %v1303 = vlaneseq
        %v1304 = vshrl.u32 %v1303, 7
        %v1305 = vsub.s32 %v1302, %v1304
        %v1306 = vrot.slane %v1290, %v1305
        %v1308 = vunpack.c.l.s4 1966171168
        %v1309 = vunpack.c.0.s8 %v1308
        %v1310 = vlaneseq
        %v1311 = vshrl.u32 %v1310, 7
        %v1312 = vsub.s32 %v1309, %v1311
        %v1313 = vrot.slane %v1297, %v1312
        %v1315 = vunpack.c.l.s4 1966171168
        %v1316 = vunpack.c.0.s8 %v1315
        %v1317 = vlaneseq
        %v1318 = vshrl.u32 %v1317, 7
        %v1319 = vsub.s32 %v1316, %v1318
        %v1320 = vrot.slane %v1298, %v1319
        %v1322 = vunpack.c.l.s4 1966171168
        %v1323 = vunpack.c.0.s8 %v1322
        %v1324 = vlaneseq
        %v1325 = vshrl.u32 %v1324, 7
        %v1326 = vsub.s32 %v1323, %v1325
        %v1327 = vrot.slane %v1299, %v1326
        %v1328 = vcombine.high %v1306, %v1306
        %v1329 = vcombine.high %v1313, %v1313
        %v1330 = vcombine.high %v1320, %v1320
        %v1331 = vcombine.high %v1327, %v1327
        %v1333 = vunpack.c.l.s4 1966171168
        %v1334 = vunpack.c.0.s8 %v1333
        %v1335 = vlaneseq
        %v1336 = vshrl.u32 %v1335, 7
        %v1337 = vsub.s32 %v1334, %v1336
        %v1338 = vrot.slane %v246, %v1337
        %v1340 = vunpack.c.l.s4 1966171168
        %v1341 = vunpack.c.0.s8 %v1340
        %v1342 = vlaneseq
        %v1343 = vshrl.u32 %v1342, 7
        %v1344 = vsub.s32 %v1341, %v1343
        %v1345 = vrot.slane %v1338, %v1344
        %v2179 = vunpack.c.l.b16 %v247
        %v2180 = vunpack.c.l.b16 %v248
        %v2181 = vunpack.c.l.b16 %v249
        %v2182 = vunpack.c.l.b16 %v250
        %v2183 = vunpack.c.l.b16 %v251
        %v2184 = vunpack.c.l.b16 %v252
        %v2185 = vunpack.c.l.b16 %v253
        %v2186 = vunpack.c.l.b16 %v254
        %v2187 = vunpack.c.l.b16 %v255
        %v2188 = vunpack.c.l.b16 %v256
        %v2189 = vunpack.c.l.b16 %v257
        %v2190 = vunpack.c.l.b16 %v258
        %v2191 = vunpack.c.l.b16 %v259
        %v2192 = vunpack.c.l.b16 %v260
        %v2193 = vunpack.c.l.b16 %v261
        %v2194 = vunpack.c.l.b16 %v262
        %v2195 = vunpack.c.l.b16 %v263
        %v2196 = vunpack.c.l.b16 %v264
        %v2197 = vunpack.c.l.b16 %v265
        %v2198 = vunpack.c.l.b16 %v266
        %v2199 = vunpack.c.l.b16 %v267
        %v2200 = vunpack.c.l.b16 %v268
        %v2201 = vunpack.c.l.b16 %v269
        %v2202 = vunpack.c.l.b16 %v270
        %v2203 = vunpack.c.l.b16 %v271
        %v2204 = vunpack.c.l.b16 %v272
        %v2205 = vunpack.c.l.b16 %v273
        %v2206 = vunpack.c.l.b16 %v274
        %v2207 = vunpack.c.l.b16 %v275
        %v2208 = vunpack.c.l.b16 %v276
        %v2209 = vunpack.c.l.b16 %v277
        %v2210 = vunpack.c.l.b16 %v278
        %v2211 = vunpack.c.l.b16 %v279
        %v2212 = vunpack.c.l.b16 %v280
        %v2213 = vunpack.c.l.b16 %v281
        %v2214 = vunpack.c.l.b16 %v282
        %v2215 = vunpack.c.l.b16 %v283
        %v2216 = vunpack.c.l.b16 %v284
        %v2217 = vunpack.c.l.b16 %v285
        %v2218 = vunpack.c.l.b16 %v286
        %v2219 = vunpack.c.l.b16 %v287
        %v2220 = vunpack.c.l.b16 %v288
        %v2221 = vunpack.c.l.b16 %v289
        %v2222 = vunpack.c.l.b16 %v290
        %v2223 = vunpack.c.l.b16 %v291
        %v2224 = vunpack.c.l.b16 %v292
        %v2225 = vunpack.c.l.b16 %v293
        %v2226 = vunpack.c.l.b16 %v294
        %v2227 = vunpack.c.l.b16 %v295
        %v2228 = vunpack.c.l.b16 %v296
        %v2229 = vunpack.c.l.b16 %v297
        %v2230 = vunpack.c.l.b16 %v298
        %v2231 = vunpack.c.l.b16 %v299
        %v2232 = vunpack.c.l.b16 %v300
        %v2233 = vunpack.c.l.b16 %v301
        %v2234 = vunpack.c.l.b16 %v302
        %v2235 = vunpack.c.l.b16 %v303
        %v2236 = vunpack.c.l.b16 %v304
        %v2237 = vunpack.c.l.b16 %v305
        %v2238 = vunpack.c.l.b16 %v306
        %v2239 = vunpack.c.l.b16 %v307
        %v2240 = vunpack.c.l.b16 %v308
        %v2241 = vunpack.c.l.b16 %v309
        %v2242 = vunpack.c.l.b16 %v310
        %v2243 = vunpack.c.l.b16 %v311
        %v2244 = vunpack.c.l.b16 %v312
        %v2245 = vunpack.c.l.b16 %v313
        %v2246 = vunpack.c.l.b16 %v314
        %v2247 = vunpack.c.l.b16 %v315
        %v2248 = vunpack.c.l.b16 %v316
        %v2249 = vunpack.c.l.b16 %v317
        %v2250 = vunpack.c.l.b16 %v318
        %v2251 = vunpack.c.l.b16 %v319
        %v2252 = vunpack.c.l.b16 %v320
        %v2253 = vunpack.c.l.b16 %v321
        %v2254 = vunpack.c.l.b16 %v322
        %v2255 = vunpack.c.l.b16 %v323
        %v2256 = vunpack.c.l.b16 %v324
        %v2257 = vunpack.c.l.b16 %v325
        %v2258 = vunpack.c.l.b16 %v326
        %v2259 = vunpack.c.l.b16 %v327
        %v2260 = vunpack.c.l.b16 %v328
        %v2261 = vunpack.c.l.b16 %v329
        %v2262 = vunpack.c.l.b16 %v330
        %v2263 = vunpack.c.l.b16 %v331
        %v2264 = vunpack.c.l.b16 %v332
        %v2265 = vunpack.c.l.b16 %v333
        %v2266 = vunpack.c.l.b16 %v334
        %v2267 = vunpack.c.l.b16 %v335
        %v2268 = vunpack.c.l.b16 %v336
        %v2269 = vunpack.c.l.b16 %v337
        %v2270 = vunpack.c.l.b16 %v338
        %v2271 = vunpack.c.l.b16 %v339
        %v2272 = vunpack.c.l.b16 %v340
        %v2273 = vunpack.c.l.b16 %v341
        %v2274 = vunpack.c.l.b16 %v342
        %v2275 = vunpack.c.l.b16 %v343
        %v2276 = vunpack.c.l.b16 %v344
        %v2277 = vunpack.c.l.b16 %v345
        %v2278 = vunpack.c.l.b16 %v346
        %v2279 = vunpack.c.l.b16 %v347
        %v2280 = vunpack.c.l.b16 %v348
        %v2281 = vunpack.c.l.b16 %v349
        %v2282 = vunpack.c.l.b16 %v350
        %v2283 = vunpack.c.l.b16 %v351
        %v2284 = vunpack.c.l.b16 %v352
        %v2285 = vunpack.c.l.b16 %v353
        %v2286 = vunpack.c.l.b16 %v354
        %v2287 = vunpack.c.l.b16 %v355
        %v2288 = vunpack.c.l.b16 %v356
        %v2289 = vunpack.c.l.b16 %v357
        %v2290 = vunpack.c.l.b16 %v358
        %v2291 = vunpack.c.l.b16 %v359
        %v2292 = vunpack.c.l.b16 %v360
        %v2293 = vunpack.c.l.b16 %v361
        %v2294 = vunpack.c.l.b16 %v362
        %v2295 = vunpack.c.l.b16 %v363
        %v2296 = vunpack.c.l.b16 %v364
        %v2297 = vunpack.c.l.b16 %v365
        %v2298 = vunpack.c.l.b16 %v366
        %v2299 = vunpack.c.l.b16 %v367
        %v2300 = vunpack.c.l.b16 %v368
        %v2301 = vunpack.c.l.b16 %v369
        %v2302 = vunpack.c.l.b16 %v370
        %v2303 = vunpack.c.l.b16 %v371
        %v2304 = vunpack.c.l.b16 %v372
        %v2305 = vunpack.c.l.b16 %v373
        %v2306 = vunpack.c.l.b16 %v374
        %v2307 = vunpack.c.l.b16 %v375
        %v2308 = vunpack.c.l.b16 %v376
        %v2309 = vunpack.c.l.b16 %v377
        %v2310 = vunpack.c.l.b16 %v378
        %v2311 = vunpack.c.l.b16 %v379
        %v2312 = vunpack.c.l.b16 %v380
        %v2313 = vunpack.c.l.b16 %v381
        %v2314 = vunpack.c.l.b16 %v382
        %v2315 = vunpack.c.l.b16 %v383
        %v2316 = vunpack.c.l.b16 %v384
        %v2317 = vunpack.c.l.b16 %v385
        %v2318 = vunpack.c.l.b16 %v386
        %v2319 = vunpack.c.l.b16 %v387
        %v2320 = vunpack.c.l.b16 %v388
        %v2321 = vunpack.c.l.b16 %v389
        %v2322 = vunpack.c.l.b16 %v390
        %v2323 = vunpack.c.l.b16 %v391
        %v2324 = vunpack.c.l.b16 %v392
        %v2325 = vunpack.c.l.b16 %v393
        %v2326 = vunpack.c.l.b16 %v394
        %v2327 = vunpack.c.l.b16 %v395
        %v2328 = vunpack.c.l.b16 %v396
        %v2329 = vunpack.c.l.b16 %v397
        %v2330 = vunpack.c.l.b16 %v398
        %v2331 = vunpack.c.l.b16 %v399
        %v2332 = vunpack.c.l.b16 %v400
        %v2333 = vunpack.c.l.b16 %v401
        %v2334 = vunpack.c.l.b16 %v402
        %v2335 = vunpack.c.l.b16 %v403
        %v2336 = vunpack.c.l.b16 %v404
        %v2337 = vunpack.c.l.b16 %v405
        %v2338 = vunpack.c.l.b16 %v406
        %v2339 = vunpack.c.l.b16 %v407
        %v2340 = vunpack.c.l.b16 %v408
        %v2341 = vunpack.c.l.b16 %v409
        %v2342 = vunpack.c.l.b16 %v410
        %v2343 = vunpack.c.l.b16 %v411
        %v2344 = vunpack.c.l.b16 %v412
        %v2345 = vunpack.c.l.b16 %v413
        %v2346 = vunpack.c.l.b16 %v414
        %v2347 = vunpack.c.l.b16 %v415
        %v2348 = vunpack.c.l.b16 %v416
        %v2349 = vunpack.c.l.b16 %v417
        %v2350 = vunpack.c.l.b16 %v418
        %v2351 = vunpack.c.l.b16 %v419
        %v2352 = vunpack.c.l.b16 %v420
        %v2353 = vunpack.c.l.b16 %v421
        %v2354 = vunpack.c.l.b16 %v422
        %v2355 = vunpack.c.l.b16 %v423
        %v2356 = vunpack.c.l.b16 %v424
        %v2357 = vunpack.c.l.b16 %v425
        %v2358 = vunpack.c.l.b16 %v426
        %v2359 = vunpack.c.l.b16 %v427
        %v2360 = vunpack.c.l.b16 %v428
        %v2361 = vunpack.c.l.b16 %v429
        %v2362 = vunpack.c.l.b16 %v430
        %v2363 = vunpack.c.l.b16 %v431
        %v2364 = vunpack.c.l.b16 %v432
        %v2365 = vunpack.c.l.b16 %v433
        %v2366 = vunpack.c.l.b16 %v434
        %v2367 = vunpack.c.l.b16 %v435
        %v2368 = vunpack.c.l.b16 %v436
        %v2369 = vunpack.c.l.b16 %v437
        %v2370 = vunpack.c.l.b16 %v438
        %v2371 = vunpack.c.l.b16 %v439
        %v2372 = vunpack.c.l.b16 %v440
        %v2373 = vunpack.c.l.b16 %v441
        %v2374 = vunpack.c.l.b16 %v442
        %v2375 = vunpack.c.l.b16 %v443
        %v2376 = vunpack.c.l.b16 %v444
        %v2377 = vunpack.c.l.b16 %v445
        %v2378 = vunpack.c.l.b16 %v446
        %v2379 = vunpack.c.l.b16 %v447
        %v2380 = vunpack.c.l.b16 %v448
        %v2381 = vunpack.c.l.b16 %v449
        %v2382 = vunpack.c.l.b16 %v450
        %v2383 = vunpack.c.l.b16 %v451
        %v2384 = vunpack.c.l.b16 %v452
        %v2385 = vunpack.c.l.b16 %v453
        %v2386 = vunpack.c.l.b16 %v454
        %v2387 = vunpack.c.l.b16 %v455
        %v2388 = vunpack.c.l.b16 %v456
        %v2389 = vunpack.c.l.b16 %v457
        %v2390 = vunpack.c.l.b16 %v458
        %v2391 = vunpack.c.l.b16 %v459
        %v2392 = vunpack.c.l.b16 %v460
        %v2393 = vunpack.c.l.b16 %v461
        %v2394 = vunpack.c.l.b16 %v462
        %v2395 = vunpack.c.l.b16 %v463
        %v2396 = vunpack.c.l.b16 %v464
        %v2397 = vunpack.c.l.b16 %v465
        %v2398 = vunpack.c.l.b16 %v466
        %v2399 = vunpack.c.l.b16 %v467
        %v2400 = vunpack.c.l.b16 %v468
        %v2401 = vunpack.c.l.b16 %v469
        %v2402 = vunpack.c.l.b16 %v470
        %v2403 = vunpack.c.l.b16 %v471
        %v2404 = vunpack.c.l.b16 %v472
        %v2405 = vunpack.c.l.b16 %v473
        %v2406 = vunpack.c.l.b16 %v474
        %v2407 = vunpack.c.l.b16 %v475
        %v2408 = vunpack.c.l.b16 %v476
        %v2409 = vunpack.c.l.b16 %v477
        %v2410 = vunpack.c.l.b16 %v478
        %v2411 = vunpack.c.l.b16 %v479
        %v2412 = vunpack.c.l.b16 %v480
        %v2413 = vunpack.c.l.b16 %v481
        %v2414 = vunpack.c.l.b16 %v482
        %v2415 = vunpack.c.l.b16 %v483
        %v2416 = vunpack.c.l.b16 %v484
        %v2417 = vunpack.c.l.b16 %v485
        %v2418 = vunpack.c.l.b16 %v486
        %v2419 = vunpack.c.l.b16 %v487
        %v2420 = vunpack.c.l.b16 %v488
        %v2421 = vunpack.c.l.b16 %v489
        %v2422 = vunpack.c.l.b16 %v490
        %v2423 = vunpack.c.l.b16 %v491
        %v2424 = vunpack.c.l.b16 %v492
        %v2425 = vunpack.c.l.b16 %v493
        %v2426 = vunpack.c.l.b16 %v494
        %v2427 = vunpack.c.l.b16 %v495
        %v2428 = vunpack.c.l.b16 %v496
        %v2429 = vunpack.c.l.b16 %v497
        %v2430 = vunpack.c.l.b16 %v498
        %v2431 = vunpack.c.l.b16 %v499
        %v2432 = vunpack.c.l.b16 %v500
        %v2433 = vunpack.c.l.b16 %v501
        %v2434 = vunpack.c.l.b16 %v502
        %v2435 = vunpack.c.l.b16 %v503
        %v2436 = vunpack.c.l.b16 %v504
        %v2437 = vunpack.c.l.b16 %v505
        %v2438 = vunpack.c.l.b16 %v506
        %v2439 = vunpack.c.l.b16 %v507
        %v2440 = vunpack.c.l.b16 %v508
        %v2441 = vunpack.c.l.b16 %v509
        %v2442 = vunpack.c.l.b16 %v510
        %v2443 = vunpack.c.l.b16 %v511
        %v2444 = vunpack.c.l.b16 %v512
        %v2445 = vunpack.c.l.b16 %v513
        %v2446 = vunpack.c.l.b16 %v514
        %v2447 = vunpack.c.l.b16 %v515
        %v2448 = vunpack.c.l.b16 %v516
        %v2449 = vunpack.c.l.b16 %v517
        %v2450 = vunpack.c.l.b16 %v518
        %v2451 = vunpack.c.l.b16 %v519
        %v2452 = vunpack.c.l.b16 %v520
        %v2453 = vunpack.c.l.b16 %v521
        %v2454 = vunpack.c.l.b16 %v522
        %v2455 = vunpack.c.l.b16 %v523
        %v2456 = vunpack.c.l.b16 %v524
        %v2457 = vunpack.c.l.b16 %v525
        %v2458 = vunpack.c.l.b16 %v526
        %v2459 = vunpack.c.l.b16 %v527
        %v2460 = vunpack.c.l.b16 %v528
        %v2461 = vunpack.c.l.b16 %v529
        %v2462 = vunpack.c.l.b16 %v530
        %v2463 = vunpack.c.l.b16 %v531
        %v2464 = vunpack.c.l.b16 %v532
        %v2465 = vunpack.c.l.b16 %v533
        %v2466 = vunpack.c.l.b16 %v534
        %v2467 = vunpack.c.l.b16 %v535
        %v2468 = vunpack.c.l.b16 %v536
        %v2469 = vunpack.c.l.b16 %v537
        %v2470 = vunpack.c.l.b16 %v538
        %v2471 = vunpack.c.l.b16 %v539
        %v2472 = vunpack.c.l.b16 %v540
        %v2473 = vunpack.c.l.b16 %v541
        %v2474 = vunpack.c.l.b16 %v542
        %v2475 = vunpack.c.l.b16 %v543
        %v2476 = vunpack.c.l.b16 %v544
        %v2477 = vunpack.c.l.b16 %v545
        %v2478 = vunpack.c.l.b16 %v546
        %v2479 = vunpack.c.l.b16 %v547
        %v2480 = vunpack.c.l.b16 %v548
        %v2481 = vunpack.c.l.b16 %v549
        %v2482 = vunpack.c.l.b16 %v550
        %v2483 = vunpack.c.l.b16 %v551
        %v2484 = vunpack.c.l.b16 %v552
        %v2485 = vunpack.c.l.b16 %v553
        %v2486 = vunpack.c.l.b16 %v554
        %v2487 = vunpack.c.l.b16 %v555
        %v2488 = vunpack.c.l.b16 %v556
        %v2489 = vunpack.c.l.b16 %v557
        %v2490 = vunpack.c.l.b16 %v558
        %v2491 = vunpack.c.l.b16 %v559
        %v2492 = vunpack.c.l.b16 %v560
        %v2493 = vunpack.c.l.b16 %v561
        %v2494 = vunpack.c.l.b16 %v562
        %v2495 = vunpack.c.l.b16 %v563
        %v2496 = vunpack.c.l.b16 %v564
        %v2497 = vunpack.c.l.b16 %v565
        %v2498 = vunpack.c.l.b16 %v566
        %v2499 = vunpack.c.l.b16 %v567
        %v2500 = vunpack.c.l.b16 %v568
        %v2501 = vunpack.c.l.b16 %v569
        %v2502 = vunpack.c.l.b16 %v570
        %v2503 = vunpack.c.l.b16 %v571
        %v2504 = vunpack.c.l.b16 %v572
        %v2505 = vunpack.c.l.b16 %v573
        %v2506 = vunpack.c.l.b16 %v574
        %v2507 = vunpack.c.l.b16 %v575
        %v2508 = vunpack.c.l.b16 %v576
        %v2509 = vunpack.c.l.b16 %v577
        %v2510 = vunpack.c.l.b16 %v578
        %v2511 = vunpack.c.l.b16 %v579
        %v2512 = vunpack.c.l.b16 %v580
        %v2513 = vunpack.c.l.b16 %v581
        %v2514 = vunpack.c.l.b16 %v582
        %v2515 = vunpack.c.l.b16 %v583
        %v2516 = vunpack.c.l.b16 %v584
        %v2517 = vunpack.c.l.b16 %v585
        %v2518 = vunpack.c.l.b16 %v586
        %v2519 = vunpack.c.l.b16 %v587
        %v2520 = vunpack.c.l.b16 %v588
        %v2521 = vunpack.c.l.b16 %v589
        %v2522 = vunpack.c.l.b16 %v590
        %v2523 = vunpack.c.l.b16 %v591
        %v2524 = vunpack.c.l.b16 %v592
        %v2525 = vunpack.c.l.b16 %v593
        %v2526 = vunpack.c.l.b16 %v594
        %v2527 = vunpack.c.l.b16 %v595
        %v2528 = vunpack.c.l.b16 %v596
        %v2529 = vunpack.c.l.b16 %v597
        %v2530 = vunpack.c.l.b16 %v598
        %v2531 = vunpack.c.l.b16 %v599
        %v2532 = vunpack.c.l.b16 %v600
        %v2533 = vunpack.c.l.b16 %v601
        %v2534 = vunpack.c.l.b16 %v602
        %v2535 = vunpack.c.l.b16 %v603
        %v2536 = vunpack.c.l.b16 %v604
        %v2537 = vunpack.c.l.b16 %v605
        %v2538 = vunpack.c.l.b16 %v606
        %v2539 = vunpack.c.l.b16 %v607
        %v2540 = vunpack.c.l.b16 %v608
        %v2541 = vunpack.c.l.b16 %v609
        %v2542 = vunpack.c.l.b16 %v610
        %v2543 = vunpack.c.l.b16 %v611
        %v2544 = vunpack.c.l.b16 %v612
        %v2545 = vunpack.c.l.b16 %v613
        %v2546 = vunpack.c.l.b16 %v614
        %v2547 = vunpack.c.l.b16 %v615
        %v2548 = vunpack.c.l.b16 %v616
        %v2549 = vunpack.c.l.b16 %v617
        %v2550 = vunpack.c.l.b16 %v618
        %v2551 = vunpack.c.l.b16 %v619
        %v2552 = vunpack.c.l.b16 %v620
        %v2553 = vunpack.c.l.b16 %v621
        %v2554 = vunpack.c.l.b16 %v622
        %v2555 = vunpack.c.l.b16 %v623
        %v2556 = vunpack.c.l.b16 %v624
        %v2557 = vunpack.c.l.b16 %v625
        %v2558 = vunpack.c.l.b16 %v626
        %v2559 = vunpack.c.l.b16 %v627
        %v2560 = vunpack.c.l.b16 %v628
        %v2561 = vunpack.c.l.b16 %v629
        %v2562 = vunpack.c.l.b16 %v630
        %v2563 = vunpack.c.l.b16 %v631
        %v2564 = vunpack.c.l.b16 %v632
        %v2565 = vunpack.c.l.b16 %v633
        %v2566 = vunpack.c.l.b16 %v634
        %v2567 = vunpack.c.l.b16 %v635
        %v2568 = vunpack.c.l.b16 %v636
        %v2569 = vunpack.c.l.b16 %v637
        %v2570 = vunpack.c.l.b16 %v638
        %v2571 = vunpack.c.l.b16 %v639
        %v2572 = vunpack.c.l.b16 %v640
        %v2573 = vunpack.c.l.b16 %v641
        %v2574 = vunpack.c.l.b16 %v642
        %v2575 = vunpack.c.l.b16 %v643
        %v2576 = vunpack.c.l.b16 %v644
        %v2577 = vunpack.c.l.b16 %v645
        %v2578 = vunpack.c.l.b16 %v646
        %v2579 = vunpack.c.l.b16 %v647
        %v2580 = vunpack.c.l.b16 %v648
        %v2581 = vunpack.c.l.b16 %v649
        %v2582 = vunpack.c.l.b16 %v650
        %v2583 = vunpack.c.l.b16 %v651
        %v2584 = vunpack.c.l.b16 %v652
        %v2585 = vunpack.c.l.b16 %v653
        %v2586 = vunpack.c.l.b16 %v654
        %v2587 = vunpack.c.l.b16 %v655
        %v2588 = vunpack.c.l.b16 %v656
        %v2589 = vunpack.c.l.b16 %v657
        %v2590 = vunpack.c.l.b16 %v658
        %v2591 = vunpack.c.l.b16 %v659
        %v2592 = vunpack.c.l.b16 %v660
        %v2593 = vunpack.c.l.b16 %v661
        %v2594 = vunpack.c.l.b16 %v662
        %v2595 = vunpack.c.l.b16 %v663
        %v2596 = vunpack.c.l.b16 %v664
        %v2597 = vunpack.c.l.b16 %v665
        %v2598 = vunpack.c.l.b16 %v666
        %v2599 = vunpack.c.l.b16 %v667
        %v2600 = vunpack.c.l.b16 %v668
        %v2601 = vunpack.c.l.b16 %v669
        %v2602 = vunpack.c.l.b16 %v670
        %v2603 = vunpack.c.l.b16 %v671
        %v2604 = vunpack.c.l.b16 %v672
        %v2605 = vunpack.c.l.b16 %v673
        %v2606 = vunpack.c.l.b16 %v674
        %v2607 = vunpack.c.l.b16 %v675
        %v2608 = vunpack.c.l.b16 %v676
        %v2609 = vunpack.c.l.b16 %v677
        %v2610 = vunpack.c.l.b16 %v678
        %v2611 = vunpack.c.l.b16 %v679
        %v2612 = vunpack.c.l.b16 %v680
        %v2613 = vunpack.c.l.b16 %v681
        %v2614 = vunpack.c.l.b16 %v682
        %v2615 = vunpack.c.l.b16 %v683
        %v2616 = vunpack.c.l.b16 %v684
        %v2617 = vunpack.c.l.b16 %v685
        %v2618 = vunpack.c.l.b16 %v686
        %v2619 = vunpack.c.l.b16 %v687
        %v2620 = vunpack.c.l.b16 %v688
        %v2621 = vunpack.c.l.b16 %v689
        %v2622 = vunpack.c.l.b16 %v690
        %v2623 = vunpack.c.l.b16 %v691
        %v2624 = vunpack.c.l.b16 %v692
        %v2625 = vunpack.c.l.b16 %v693
        %v2626 = vunpack.c.l.b16 %v694
        %v2627 = vunpack.c.l.b16 %v695
        %v2628 = vunpack.c.l.b16 %v696
        %v2629 = vunpack.c.l.b16 %v697
        %v2630 = vunpack.c.l.b16 %v698
        %v2631 = vunpack.c.l.b16 %v699
        %v2632 = vunpack.c.l.b16 %v700
        %v2633 = vunpack.c.l.b16 %v701
        %v2634 = vunpack.c.l.b16 %v702
        %v2635 = vunpack.c.l.b16 %v703
        %v2636 = vunpack.c.l.b16 %v704
        %v2637 = vunpack.c.l.b16 %v705
        %v2638 = vunpack.c.l.b16 %v706
        %v2639 = vunpack.c.l.b16 %v707
        %v2640 = vunpack.c.l.b16 %v708
        %v2641 = vunpack.c.l.b16 %v709
        %v2642 = vunpack.c.l.b16 %v710
        %v2643 = vunpack.c.l.b16 %v711
        %v2644 = vunpack.c.l.b16 %v712
        %v2645 = vunpack.c.l.b16 %v713
        %v2646 = vunpack.c.l.b16 %v714
        %v2647 = vunpack.c.l.b16 %v715
        %v2648 = vunpack.c.l.b16 %v716
        %v2649 = vunpack.c.l.b16 %v717
        %v2650 = vunpack.c.l.b16 %v718
        %v2651 = vunpack.c.l.b16 %v719
        %v2652 = vunpack.c.l.b16 %v720
        %v2653 = vunpack.c.l.b16 %v721
        %v2654 = vunpack.c.l.b16 %v722
        %v2655 = vunpack.c.l.b16 %v723
        %v2656 = vunpack.c.l.b16 %v724
        %v2657 = vunpack.c.l.b16 %v725
        %v2658 = vunpack.c.l.b16 %v726
        %v2659 = vunpack.c.l.b16 %v727
        %v2660 = vunpack.c.l.b16 %v728
        %v2661 = vunpack.c.l.b16 %v729
        %v2662 = vunpack.c.l.b16 %v730
        %v2663 = vunpack.c.l.b16 %v731
        %v2664 = vunpack.c.l.b16 %v732
        %v2665 = vunpack.c.l.b16 %v733
        %v2666 = vunpack.c.l.b16 %v734
        %v2667 = vunpack.c.l.b16 %v735
        %v2668 = vunpack.c.l.b16 %v736
        %v2669 = vunpack.c.l.b16 %v737
        %v2670 = vunpack.c.l.b16 %v738
        %v2671 = vunpack.c.l.b16 %v739
        %v2672 = vunpack.c.l.b16 %v740
        %v2673 = vunpack.c.l.b16 %v741
        %v2674 = vunpack.c.l.b16 %v742
        %v2675 = vunpack.c.l.b16 %v743
        %v2676 = vunpack.c.l.b16 %v744
        %v2677 = vunpack.c.l.b16 %v745
        %v2678 = vunpack.c.l.b16 %v746
        %v2679 = vunpack.c.l.b16 %v747
        %v2680 = vunpack.c.l.b16 %v748
        %v2681 = vunpack.c.l.b16 %v749
        %v2682 = vunpack.c.l.b16 %v750
        %v2683 = vunpack.c.l.b16 %v751
        %v2684 = vunpack.c.l.b16 %v752
        %v2685 = vunpack.c.l.b16 %v753
        %v2686 = vunpack.c.l.b16 %v754
        %v2687 = vunpack.c.l.b16 %v755
        %v2688 = vunpack.c.l.b16 %v756
        %v2689 = vunpack.c.l.b16 %v757
        %v2690 = vunpack.c.l.b16 %v758
        %v2691 = vunpack.c.l.b16 %v759
        %v2692 = vunpack.c.l.b16 %v760
        %v2693 = vunpack.c.l.b16 %v761
        %v2694 = vunpack.c.l.b16 %v762
        %v2695 = vunpack.c.l.b16 %v763
        %v2696 = vunpack.c.l.b16 %v764
        %v2697 = vunpack.c.l.b16 %v765
        %v2698 = vunpack.c.l.b16 %v766
        %v2699 = vunpack.c.l.b16 %v767
        %v2700 = vunpack.c.l.b16 %v768
        %v2701 = vunpack.c.l.b16 %v769
        %v2702 = vunpack.c.l.b16 %v770
        %v2703 = vunpack.c.l.b16 %v771
        %v2704 = vunpack.c.l.b16 %v772
        %v2705 = vunpack.c.l.b16 %v773
        %v2706 = vunpack.c.l.b16 %v774
        %v2707 = vunpack.c.l.b16 %v775
        %v2708 = vunpack.c.l.b16 %v776
        %v2709 = vunpack.c.l.b16 %v777
        %v2710 = vunpack.c.l.b16 %v778
        %v2711 = vunpack.c.l.b16 %v779
        %v2712 = vunpack.c.l.b16 %v780
        %v2713 = vunpack.c.l.b16 %v781
        %v2714 = vunpack.c.l.b16 %v782
        %v2715 = vunpack.c.l.b16 %v783
        %v2716 = vunpack.c.l.b16 %v784
        %v2717 = vunpack.c.l.b16 %v785
        %v2718 = vunpack.c.l.b16 %v786
        %v2719 = vunpack.c.l.b16 %v787
        %v2720 = vunpack.c.l.b16 %v788
        %v2721 = vunpack.c.l.b16 %v789
        %v2722 = vunpack.c.l.b16 %v790
        %v2723 = vunpack.c.l.b16 %v791
        %v2724 = vunpack.c.l.b16 %v792
        %v2725 = vunpack.c.l.b16 %v793
        %v2726 = vunpack.c.l.b16 %v794
        %v2727 = vunpack.c.l.b16 %v795
        %v2728 = vunpack.c.l.b16 %v796
        %v2729 = vunpack.c.l.b16 %v797
        %v2730 = vunpack.c.l.b16 %v798
        %v2731 = vunpack.c.l.b16 %v799
        %v2732 = vunpack.c.l.b16 %v800
        %v2733 = vunpack.c.l.b16 %v801
        %v2734 = vunpack.c.l.b16 %v802
        %v2735 = vunpack.c.l.b16 %v803
        %v2736 = vunpack.c.l.b16 %v804
        %v2737 = vunpack.c.l.b16 %v805
        %v2738 = vunpack.c.l.b16 %v806
        %v2739 = vunpack.c.l.b16 %v807
        %v2740 = vunpack.c.l.b16 %v808
        %v2741 = vunpack.c.l.b16 %v809
        %v2742 = vunpack.c.l.b16 %v810
        %v2743 = vunpack.c.l.b16 %v811
        %v2744 = vunpack.c.l.b16 %v812
        %v2745 = vunpack.c.l.b16 %v813
        %v2746 = vunpack.c.l.b16 %v814
        %v2747 = vunpack.c.l.b16 %v815
        %v2748 = vunpack.c.l.b16 %v816
        %v2749 = vunpack.c.l.b16 %v817
        %v2750 = vunpack.c.l.b16 %v818
        %v2751 = vunpack.c.l.b16 %v819
        %v2752 = vunpack.c.l.b16 %v820
        %v2753 = vunpack.c.l.b16 %v821
        %v2754 = vunpack.c.l.b16 %v822
        %v2755 = vunpack.c.l.b16 %v823
        %v2756 = vunpack.c.l.b16 %v824
        %v2757 = vunpack.c.l.b16 %v825
        %v2758 = vunpack.c.l.b16 %v826
        %v2759 = vunpack.c.l.b16 %v827
        %v2760 = vunpack.c.l.b16 %v828
        %v2761 = vunpack.c.l.b16 %v829
        %v2762 = vunpack.c.l.b16 %v830
        %v2763 = vunpack.c.l.b16 %v831
        %v2764 = vunpack.c.l.b16 %v832
        %v2765 = vunpack.c.l.b16 %v833
        %v2766 = vunpack.c.l.b16 %v834
        %v2767 = vunpack.c.l.b16 %v835
        %v2768 = vunpack.c.l.b16 %v836
        %v2769 = vunpack.c.l.b16 %v837
        %v2770 = vunpack.c.l.b16 %v838
        %v2771 = vunpack.c.l.b16 %v839
        %v2772 = vunpack.c.l.b16 %v840
        %v2773 = vunpack.c.l.b16 %v841
        %v2774 = vunpack.c.l.b16 %v842
        %v2775 = vunpack.c.l.b16 %v843
        %v2776 = vunpack.c.l.b16 %v844
        %v2777 = vunpack.c.l.b16 %v845
        %v2778 = vunpack.c.l.b16 %v846
        %v2779 = vunpack.c.l.b16 %v847
        %v2780 = vunpack.c.l.b16 %v848
        %v2781 = vunpack.c.l.b16 %v849
        %v2782 = vunpack.c.l.b16 %v850
        %v2783 = vunpack.c.l.b16 %v851
        %v2784 = vunpack.c.l.b16 %v852
        %v2785 = vunpack.c.l.b16 %v853
        %v2786 = vunpack.c.l.b16 %v854
        %v2787 = vunpack.c.l.b16 %v855
        %v2788 = vunpack.c.l.b16 %v856
        %v2789 = vunpack.c.l.b16 %v857
        %v2790 = vunpack.c.l.b16 %v858
        %v2791 = vunpack.c.l.b16 %v859
        %v2792 = vunpack.c.l.b16 %v860
        %v2793 = vunpack.c.l.b16 %v861
        %v2794 = vunpack.c.l.b16 %v862
        %v2795 = vunpack.c.l.b16 %v863
        %v2796 = vunpack.c.l.b16 %v864
        %v2797 = vunpack.c.l.b16 %v865
        %v2798 = vunpack.c.l.b16 %v866
        %v2799 = vunpack.c.l.b16 %v867
        %v2800 = vunpack.c.l.b16 %v868
        %v2801 = vunpack.c.l.b16 %v869
        %v2802 = vunpack.c.l.b16 %v870
        %v2803 = vunpack.c.l.b16 %v871
        %v2804 = vunpack.c.l.b16 %v872
        %v2805 = vunpack.c.l.b16 %v873
        %v2806 = vunpack.c.l.b16 %v874
        %v2807 = vunpack.c.l.b16 %v875
        %v2808 = vunpack.c.l.b16 %v876
        %v2809 = vunpack.c.l.b16 %v877
        %v2810 = vunpack.c.l.b16 %v878
        %v2811 = vunpack.c.l.b16 %v879
        %v2812 = vunpack.c.l.b16 %v880
        %v2813 = vunpack.c.l.b16 %v881
        %v2814 = vunpack.c.l.b16 %v882
        %v2815 = vunpack.c.l.b16 %v883
        %v2816 = vunpack.c.l.b16 %v884
        %v2817 = vunpack.c.l.b16 %v885
        %v2818 = vunpack.c.l.b16 %v886
        %v2819 = vunpack.c.l.b16 %v887
        %v2820 = vunpack.c.l.b16 %v888
        %v2821 = vunpack.c.l.b16 %v889
        %v2822 = vunpack.c.l.b16 %v890
        %v2823 = vunpack.c.l.b16 %v891
        %v2824 = vunpack.c.l.b16 %v892
        %v2825 = vunpack.c.l.b16 %v893
        %v2826 = vunpack.c.l.b16 %v894
        %v2827 = vunpack.c.l.b16 %v895
        %v2828 = vunpack.c.l.b16 %v896
        %v2829 = vunpack.c.l.b16 %v897
        %v2830 = vunpack.c.l.b16 %v898
        %v2831 = vunpack.c.l.b16 %v899
        %v2832 = vunpack.c.l.b16 %v900
        %v2833 = vunpack.c.l.b16 %v901
        %v2834 = vunpack.c.l.b16 %v902
        %v2835 = vunpack.c.l.b16 %v903
        %v2836 = vunpack.c.l.b16 %v904
        %v2837 = vunpack.c.l.b16 %v905
        %v2838 = vunpack.c.l.b16 %v906
        %v2839 = vunpack.c.l.b16 %v907
        %v2840 = vunpack.c.l.b16 %v908
        %v2841 = vunpack.c.l.b16 %v909
        %v2842 = vunpack.c.l.b16 %v910
        %v2843 = vunpack.c.l.b16 %v911
        %v2844 = vunpack.c.l.b16 %v912
        %v2845 = vunpack.c.l.b16 %v913
        %v2846 = vunpack.c.l.b16 %v914
        %v2847 = vunpack.c.l.b16 %v915
        %v2848 = vunpack.c.l.b16 %v916
        %v2849 = vunpack.c.l.b16 %v917
        %v2850 = vunpack.c.l.b16 %v918
        %v2851 = vunpack.c.l.b16 %v919
        %v2852 = vunpack.c.l.b16 %v920
        %v2853 = vunpack.c.l.b16 %v921
        %v2854 = vunpack.c.l.b16 %v922
        %v2855 = vunpack.c.l.b16 %v923
        %v2856 = vunpack.c.l.b16 %v924
        %v2857 = vunpack.c.l.b16 %v925
        %v2858 = vunpack.c.l.b16 %v926
        %v2859 = vunpack.c.l.b16 %v927
        %v2860 = vunpack.c.l.b16 %v928
        %v2861 = vunpack.c.l.b16 %v929
        %v2862 = vunpack.c.l.b16 %v930
        %v2863 = vunpack.c.l.b16 %v931
        %v2864 = vunpack.c.l.b16 %v932
        %v2865 = vunpack.c.l.b16 %v933
        %v2866 = vunpack.c.l.b16 %v934
        %v2867 = vunpack.c.l.b16 %v935
        %v2868 = vunpack.c.l.b16 %v936
        %v2869 = vunpack.c.l.b16 %v937
        %v2870 = vunpack.c.l.b16 %v938
        %v2871 = vunpack.c.l.b16 %v939
        %v2872 = vunpack.c.l.b16 %v940
        %v2873 = vunpack.c.l.b16 %v941
        %v2874 = vunpack.c.l.b16 %v942
        %v2875 = vunpack.c.l.b16 %v943
        %v2876 = vunpack.c.l.b16 %v944
        %v2877 = vunpack.c.l.b16 %v945
        %v2878 = vunpack.c.l.b16 %v946
        %v2879 = vunpack.c.l.b16 %v947
        %v2880 = vunpack.c.l.b16 %v948
        %v2881 = vunpack.c.l.b16 %v949
        %v2882 = vunpack.c.l.b16 %v950
        %v2883 = vunpack.c.l.b16 %v951
        %v2884 = vunpack.c.l.b16 %v952
        %v2885 = vunpack.c.l.b16 %v953
        %v2886 = vunpack.c.l.b16 %v954
        %v2887 = vunpack.c.l.b16 %v955
        %v2888 = vunpack.c.l.b16 %v956
        %v2889 = vunpack.c.l.b16 %v957
        %v2890 = vunpack.c.l.b16 %v958
        %v2891 = vunpack.c.l.b16 %v959
        %v2892 = vunpack.c.l.b16 %v960
        %v2893 = vunpack.c.l.b16 %v961
        %v2894 = vunpack.c.l.b16 %v962
        %v2895 = vunpack.c.l.b16 %v963
        %v2896 = vunpack.c.l.b16 %v964
        %v2897 = vunpack.c.l.b16 %v965
        %v2898 = vunpack.c.l.b16 %v966
        %v2899 = vunpack.c.l.b16 %v967
        %v2900 = vunpack.c.l.b16 %v968
        %v2901 = vunpack.c.l.b16 %v969
        %v2902 = vunpack.c.l.b16 %v970
        %v2903 = vunpack.c.l.b16 %v971
        %v2904 = vunpack.c.l.b16 %v972
        %v2905 = vunpack.c.l.b16 %v973
        %v2906 = vunpack.c.l.b16 %v974
        %v2907 = vunpack.c.l.b16 %v975
        %v2908 = vunpack.c.l.b16 %v976
        %v2909 = vunpack.c.l.b16 %v977
        %v2910 = vunpack.c.l.b16 %v978
        %v2911 = vunpack.c.l.b16 %v979
        %v2912 = vunpack.c.l.b16 %v980
        %v2913 = vunpack.c.l.b16 %v981
        %v2914 = vunpack.c.l.b16 %v982
        %v2915 = vunpack.c.l.b16 %v983
        %v2916 = vunpack.c.l.b16 %v984
        %v2917 = vunpack.c.l.b16 %v985
        %v2918 = vunpack.c.l.b16 %v986
        %v2919 = vunpack.c.l.b16 %v987
        %v2920 = vunpack.c.l.b16 %v988
        %v2921 = vunpack.c.l.b16 %v989
        %v2922 = vunpack.c.l.b16 %v990
        %v2923 = vunpack.c.l.b16 %v991
        %v2924 = vunpack.c.l.b16 %v992
        %v2925 = vunpack.c.l.b16 %v993
        %v2926 = vunpack.c.l.b16 %v994
        %v2927 = vunpack.c.l.b16 %v995
        %v2928 = vunpack.c.l.b16 %v996
        %v2929 = vunpack.c.l.b16 %v997
        %v2930 = vunpack.c.l.b16 %v998
        %v2931 = vunpack.c.l.b16 %v999
        %v2932 = vunpack.c.l.b16 %v1000
        %v2933 = vunpack.c.l.b16 %v1001
        %v2934 = vunpack.c.l.b16 %v1002
        %v2935 = vunpack.c.l.b16 %v1003
        %v2936 = vunpack.c.l.b16 %v1004
        %v2937 = vunpack.c.l.b16 %v1005
        %v2938 = vunpack.c.l.b16 %v1006
        %v2939 = vunpack.c.l.b16 %v1007
        %v2940 = vunpack.c.l.b16 %v1008
        %v2941 = vunpack.c.l.b16 %v1009
        %v2942 = vunpack.c.l.b16 %v1010
        %v2943 = vunpack.c.l.b16 %v1011
        %v2944 = vunpack.c.l.b16 %v1012
        %v2945 = vunpack.c.l.b16 %v1013
        %v2946 = vunpack.c.l.b16 %v1014
        %v2947 = vunpack.c.l.b16 %v1015
        %v2948 = vunpack.c.l.b16 %v1016
        %v2949 = vunpack.c.l.b16 %v1017
        %v2950 = vunpack.c.l.b16 %v1018
        %v2951 = vunpack.c.l.b16 %v1019
        %v2952 = vunpack.c.l.b16 %v1020
        %v2953 = vunpack.c.l.b16 %v1021
        %v2954 = vunpack.c.l.b16 %v1022
        %v2955 = vunpack.c.l.b16 %v1023
        %v2956 = vunpack.c.l.b16 %v1024
        %v2957 = vunpack.c.l.b16 %v1025
        %v2958 = vunpack.c.l.b16 %v1026
        %v2959 = vunpack.c.l.b16 %v1027
        %v2960 = vunpack.c.l.b16 %v1028
        %v2961 = vunpack.c.l.b16 %v1029
        %v2962 = vunpack.c.l.b16 %v1030
        %v2963 = vpack.c.b16 %v2180, %v2179
        %v2964 = vpack.c.b16 %v2182, %v2181
        %v2965 = vpack.c.b16 %v2184, %v2183
        %v2966 = vpack.c.b16 %v2186, %v2185
        %v2967 = vpack.c.b16 %v2188, %v2187
        %v2968 = vpack.c.b16 %v2190, %v2189
        %v2969 = vpack.c.b16 %v2192, %v2191
        %v2970 = vpack.c.b16 %v2194, %v2193
        %v2971 = vpack.c.b16 %v2196, %v2195
        %v2972 = vpack.c.b16 %v2198, %v2197
        %v2973 = vpack.c.b16 %v2200, %v2199
        %v2974 = vpack.c.b16 %v2202, %v2201
        %v2975 = vpack.c.b16 %v2204, %v2203
        %v2976 = vpack.c.b16 %v2206, %v2205
        %v2977 = vpack.c.b16 %v2208, %v2207
        %v2978 = vpack.c.b16 %v2210, %v2209
        %v2979 = vpack.c.b16 %v2212, %v2211
        %v2980 = vpack.c.b16 %v2214, %v2213
        %v2981 = vpack.c.b16 %v2216, %v2215
        %v2982 = vpack.c.b16 %v2218, %v2217
        %v2983 = vpack.c.b16 %v2220, %v2219
        %v2984 = vpack.c.b16 %v2222, %v2221
        %v2985 = vpack.c.b16 %v2224, %v2223
        %v2986 = vpack.c.b16 %v2226, %v2225
        %v2987 = vpack.c.b16 %v2228, %v2227
        %v2988 = vpack.c.b16 %v2230, %v2229
        %v2989 = vpack.c.b16 %v2232, %v2231
        %v2990 = vpack.c.b16 %v2234, %v2233
        %v2991 = vpack.c.b16 %v2236, %v2235
        %v2992 = vpack.c.b16 %v2238, %v2237
        %v2993 = vpack.c.b16 %v2240, %v2239
        %v2994 = vpack.c.b16 %v2242, %v2241
        %v2995 = vpack.c.b16 %v2244, %v2243
        %v2996 = vpack.c.b16 %v2246, %v2245
        %v2997 = vpack.c.b16 %v2248, %v2247
        %v2998 = vpack.c.b16 %v2250, %v2249
        %v2999 = vpack.c.b16 %v2252, %v2251
        %v3000 = vpack.c.b16 %v2254, %v2253
        %v3001 = vpack.c.b16 %v2256, %v2255
        %v3002 = vpack.c.b16 %v2258, %v2257
        %v3003 = vpack.c.b16 %v2260, %v2259
        %v3004 = vpack.c.b16 %v2262, %v2261
        %v3005 = vpack.c.b16 %v2264, %v2263
        %v3006 = vpack.c.b16 %v2266, %v2265
        %v3007 = vpack.c.b16 %v2268, %v2267
        %v3008 = vpack.c.b16 %v2270, %v2269
        %v3009 = vpack.c.b16 %v2272, %v2271
        %v3010 = vpack.c.b16 %v2274, %v2273
        %v3011 = vpack.c.b16 %v2276, %v2275
        %v3012 = vpack.c.b16 %v2278, %v2277
        %v3013 = vpack.c.b16 %v2280, %v2279
        %v3014 = vpack.c.b16 %v2282, %v2281
        %v3015 = vpack.c.b16 %v2284, %v2283
        %v3016 = vpack.c.b16 %v2286, %v2285
        %v3017 = vpack.c.b16 %v2288, %v2287
        %v3018 = vpack.c.b16 %v2290, %v2289
        %v3019 = vpack.c.b16 %v2292, %v2291
        %v3020 = vpack.c.b16 %v2294, %v2293
        %v3021 = vpack.c.b16 %v2296, %v2295
        %v3022 = vpack.c.b16 %v2298, %v2297
        %v3023 = vpack.c.b16 %v2300, %v2299
        %v3024 = vpack.c.b16 %v2302, %v2301
        %v3025 = vpack.c.b16 %v2304, %v2303
        %v3026 = vpack.c.b16 %v2306, %v2305
        %v3027 = vpack.c.b16 %v2308, %v2307
        %v3028 = vpack.c.b16 %v2310, %v2309
        %v3029 = vpack.c.b16 %v2312, %v2311
        %v3030 = vpack.c.b16 %v2314, %v2313
        %v3031 = vpack.c.b16 %v2316, %v2315
        %v3032 = vpack.c.b16 %v2318, %v2317
        %v3033 = vpack.c.b16 %v2320, %v2319
        %v3034 = vpack.c.b16 %v2322, %v2321
        %v3035 = vpack.c.b16 %v2324, %v2323
        %v3036 = vpack.c.b16 %v2326, %v2325
        %v3037 = vpack.c.b16 %v2328, %v2327
        %v3038 = vpack.c.b16 %v2330, %v2329
        %v3039 = vpack.c.b16 %v2332, %v2331
        %v3040 = vpack.c.b16 %v2334, %v2333
        %v3041 = vpack.c.b16 %v2336, %v2335
        %v3042 = vpack.c.b16 %v2338, %v2337
        %v3043 = vpack.c.b16 %v2340, %v2339
        %v3044 = vpack.c.b16 %v2342, %v2341
        %v3045 = vpack.c.b16 %v2344, %v2343
        %v3046 = vpack.c.b16 %v2346, %v2345
        %v3047 = vpack.c.b16 %v2348, %v2347
        %v3048 = vpack.c.b16 %v2350, %v2349
        %v3049 = vpack.c.b16 %v2352, %v2351
        %v3050 = vpack.c.b16 %v2354, %v2353
        %v3051 = vpack.c.b16 %v2356, %v2355
        %v3052 = vpack.c.b16 %v2358, %v2357
        %v3053 = vpack.c.b16 %v2360, %v2359
        %v3054 = vpack.c.b16 %v2362, %v2361
        %v3055 = vpack.c.b16 %v2364, %v2363
        %v3056 = vpack.c.b16 %v2366, %v2365
        %v3057 = vpack.c.b16 %v2368, %v2367
        %v3058 = vpack.c.b16 %v2370, %v2369
        %v3059 = vpack.c.b16 %v2372, %v2371
        %v3060 = vpack.c.b16 %v2374, %v2373
        %v3061 = vpack.c.b16 %v2376, %v2375
        %v3062 = vpack.c.b16 %v2378, %v2377
        %v3063 = vpack.c.b16 %v2380, %v2379
        %v3064 = vpack.c.b16 %v2382, %v2381
        %v3065 = vpack.c.b16 %v2384, %v2383
        %v3066 = vpack.c.b16 %v2386, %v2385
        %v3067 = vpack.c.b16 %v2388, %v2387
        %v3068 = vpack.c.b16 %v2390, %v2389
        %v3069 = vpack.c.b16 %v2392, %v2391
        %v3070 = vpack.c.b16 %v2394, %v2393
        %v3071 = vpack.c.b16 %v2396, %v2395
        %v3072 = vpack.c.b16 %v2398, %v2397
        %v3073 = vpack.c.b16 %v2400, %v2399
        %v3074 = vpack.c.b16 %v2402, %v2401
        %v3075 = vpack.c.b16 %v2404, %v2403
        %v3076 = vpack.c.b16 %v2406, %v2405
        %v3077 = vpack.c.b16 %v2408, %v2407
        %v3078 = vpack.c.b16 %v2410, %v2409
        %v3079 = vpack.c.b16 %v2412, %v2411
        %v3080 = vpack.c.b16 %v2414, %v2413
        %v3081 = vpack.c.b16 %v2416, %v2415
        %v3082 = vpack.c.b16 %v2418, %v2417
        %v3083 = vpack.c.b16 %v2420, %v2419
        %v3084 = vpack.c.b16 %v2422, %v2421
        %v3085 = vpack.c.b16 %v2424, %v2423
        %v3086 = vpack.c.b16 %v2426, %v2425
        %v3087 = vpack.c.b16 %v2428, %v2427
        %v3088 = vpack.c.b16 %v2430, %v2429
        %v3089 = vpack.c.b16 %v2432, %v2431
        %v3090 = vpack.c.b16 %v2434, %v2433
        %v3091 = vpack.c.b16 %v2436, %v2435
        %v3092 = vpack.c.b16 %v2438, %v2437
        %v3093 = vpack.c.b16 %v2440, %v2439
        %v3094 = vpack.c.b16 %v2442, %v2441
        %v3095 = vpack.c.b16 %v2444, %v2443
        %v3096 = vpack.c.b16 %v2446, %v2445
        %v3097 = vpack.c.b16 %v2448, %v2447
        %v3098 = vpack.c.b16 %v2450, %v2449
        %v3099 = vpack.c.b16 %v2452, %v2451
        %v3100 = vpack.c.b16 %v2454, %v2453
        %v3101 = vpack.c.b16 %v2456, %v2455
        %v3102 = vpack.c.b16 %v2458, %v2457
        %v3103 = vpack.c.b16 %v2460, %v2459
        %v3104 = vpack.c.b16 %v2462, %v2461
        %v3105 = vpack.c.b16 %v2464, %v2463
        %v3106 = vpack.c.b16 %v2466, %v2465
        %v3107 = vpack.c.b16 %v2468, %v2467
        %v3108 = vpack.c.b16 %v2470, %v2469
        %v3109 = vpack.c.b16 %v2472, %v2471
        %v3110 = vpack.c.b16 %v2474, %v2473
        %v3111 = vpack.c.b16 %v2476, %v2475
        %v3112 = vpack.c.b16 %v2478, %v2477
        %v3113 = vpack.c.b16 %v2480, %v2479
        %v3114 = vpack.c.b16 %v2482, %v2481
        %v3115 = vpack.c.b16 %v2484, %v2483
        %v3116 = vpack.c.b16 %v2486, %v2485
        %v3117 = vpack.c.b16 %v2488, %v2487
        %v3118 = vpack.c.b16 %v2490, %v2489
        %v3119 = vpack.c.b16 %v2492, %v2491
        %v3120 = vpack.c.b16 %v2494, %v2493
        %v3121 = vpack.c.b16 %v2496, %v2495
        %v3122 = vpack.c.b16 %v2498, %v2497
        %v3123 = vpack.c.b16 %v2500, %v2499
        %v3124 = vpack.c.b16 %v2502, %v2501
        %v3125 = vpack.c.b16 %v2504, %v2503
        %v3126 = vpack.c.b16 %v2506, %v2505
        %v3127 = vpack.c.b16 %v2508, %v2507
        %v3128 = vpack.c.b16 %v2510, %v2509
        %v3129 = vpack.c.b16 %v2512, %v2511
        %v3130 = vpack.c.b16 %v2514, %v2513
        %v3131 = vpack.c.b16 %v2516, %v2515
        %v3132 = vpack.c.b16 %v2518, %v2517
        %v3133 = vpack.c.b16 %v2520, %v2519
        %v3134 = vpack.c.b16 %v2522, %v2521
        %v3135 = vpack.c.b16 %v2524, %v2523
        %v3136 = vpack.c.b16 %v2526, %v2525
        %v3137 = vpack.c.b16 %v2528, %v2527
        %v3138 = vpack.c.b16 %v2530, %v2529
        %v3139 = vpack.c.b16 %v2532, %v2531
        %v3140 = vpack.c.b16 %v2534, %v2533
        %v3141 = vpack.c.b16 %v2536, %v2535
        %v3142 = vpack.c.b16 %v2538, %v2537
        %v3143 = vpack.c.b16 %v2540, %v2539
        %v3144 = vpack.c.b16 %v2542, %v2541
        %v3145 = vpack.c.b16 %v2544, %v2543
        %v3146 = vpack.c.b16 %v2546, %v2545
        %v3147 = vpack.c.b16 %v2548, %v2547
        %v3148 = vpack.c.b16 %v2550, %v2549
        %v3149 = vpack.c.b16 %v2552, %v2551
        %v3150 = vpack.c.b16 %v2554, %v2553
        %v3151 = vpack.c.b16 %v2556, %v2555
        %v3152 = vpack.c.b16 %v2558, %v2557
        %v3153 = vpack.c.b16 %v2560, %v2559
        %v3154 = vpack.c.b16 %v2562, %v2561
        %v3155 = vpack.c.b16 %v2564, %v2563
        %v3156 = vpack.c.b16 %v2566, %v2565
        %v3157 = vpack.c.b16 %v2568, %v2567
        %v3158 = vpack.c.b16 %v2570, %v2569
        %v3159 = vpack.c.b16 %v2572, %v2571
        %v3160 = vpack.c.b16 %v2574, %v2573
        %v3161 = vpack.c.b16 %v2576, %v2575
        %v3162 = vpack.c.b16 %v2578, %v2577
        %v3163 = vpack.c.b16 %v2580, %v2579
        %v3164 = vpack.c.b16 %v2582, %v2581
        %v3165 = vpack.c.b16 %v2584, %v2583
        %v3166 = vpack.c.b16 %v2586, %v2585
        %v3167 = vpack.c.b16 %v2588, %v2587
        %v3168 = vpack.c.b16 %v2590, %v2589
        %v3169 = vpack.c.b16 %v2592, %v2591
        %v3170 = vpack.c.b16 %v2594, %v2593
        %v3171 = vpack.c.b16 %v2596, %v2595
        %v3172 = vpack.c.b16 %v2598, %v2597
        %v3173 = vpack.c.b16 %v2600, %v2599
        %v3174 = vpack.c.b16 %v2602, %v2601
        %v3175 = vpack.c.b16 %v2604, %v2603
        %v3176 = vpack.c.b16 %v2606, %v2605
        %v3177 = vpack.c.b16 %v2608, %v2607
        %v3178 = vpack.c.b16 %v2610, %v2609
        %v3179 = vpack.c.b16 %v2612, %v2611
        %v3180 = vpack.c.b16 %v2614, %v2613
        %v3181 = vpack.c.b16 %v2616, %v2615
        %v3182 = vpack.c.b16 %v2618, %v2617
        %v3183 = vpack.c.b16 %v2620, %v2619
        %v3184 = vpack.c.b16 %v2622, %v2621
        %v3185 = vpack.c.b16 %v2624, %v2623
        %v3186 = vpack.c.b16 %v2626, %v2625
        %v3187 = vpack.c.b16 %v2628, %v2627
        %v3188 = vpack.c.b16 %v2630, %v2629
        %v3189 = vpack.c.b16 %v2632, %v2631
        %v3190 = vpack.c.b16 %v2634, %v2633
        %v3191 = vpack.c.b16 %v2636, %v2635
        %v3192 = vpack.c.b16 %v2638, %v2637
        %v3193 = vpack.c.b16 %v2640, %v2639
        %v3194 = vpack.c.b16 %v2642, %v2641
        %v3195 = vpack.c.b16 %v2644, %v2643
        %v3196 = vpack.c.b16 %v2646, %v2645
        %v3197 = vpack.c.b16 %v2648, %v2647
        %v3198 = vpack.c.b16 %v2650, %v2649
        %v3199 = vpack.c.b16 %v2652, %v2651
        %v3200 = vpack.c.b16 %v2654, %v2653
        %v3201 = vpack.c.b16 %v2656, %v2655
        %v3202 = vpack.c.b16 %v2658, %v2657
        %v3203 = vpack.c.b16 %v2660, %v2659
        %v3204 = vpack.c.b16 %v2662, %v2661
        %v3205 = vpack.c.b16 %v2664, %v2663
        %v3206 = vpack.c.b16 %v2666, %v2665
        %v3207 = vpack.c.b16 %v2668, %v2667
        %v3208 = vpack.c.b16 %v2670, %v2669
        %v3209 = vpack.c.b16 %v2672, %v2671
        %v3210 = vpack.c.b16 %v2674, %v2673
        %v3211 = vpack.c.b16 %v2676, %v2675
        %v3212 = vpack.c.b16 %v2678, %v2677
        %v3213 = vpack.c.b16 %v2680, %v2679
        %v3214 = vpack.c.b16 %v2682, %v2681
        %v3215 = vpack.c.b16 %v2684, %v2683
        %v3216 = vpack.c.b16 %v2686, %v2685
        %v3217 = vpack.c.b16 %v2688, %v2687
        %v3218 = vpack.c.b16 %v2690, %v2689
        %v3219 = vpack.c.b16 %v2692, %v2691
        %v3220 = vpack.c.b16 %v2694, %v2693
        %v3221 = vpack.c.b16 %v2696, %v2695
        %v3222 = vpack.c.b16 %v2698, %v2697
        %v3223 = vpack.c.b16 %v2700, %v2699
        %v3224 = vpack.c.b16 %v2702, %v2701
        %v3225 = vpack.c.b16 %v2704, %v2703
        %v3226 = vpack.c.b16 %v2706, %v2705
        %v3227 = vpack.c.b16 %v2708, %v2707
        %v3228 = vpack.c.b16 %v2710, %v2709
        %v3229 = vpack.c.b16 %v2712, %v2711
        %v3230 = vpack.c.b16 %v2714, %v2713
        %v3231 = vpack.c.b16 %v2716, %v2715
        %v3232 = vpack.c.b16 %v2718, %v2717
        %v3233 = vpack.c.b16 %v2720, %v2719
        %v3234 = vpack.c.b16 %v2722, %v2721
        %v3235 = vpack.c.b16 %v2724, %v2723
        %v3236 = vpack.c.b16 %v2726, %v2725
        %v3237 = vpack.c.b16 %v2728, %v2727
        %v3238 = vpack.c.b16 %v2730, %v2729
        %v3239 = vpack.c.b16 %v2732, %v2731
        %v3240 = vpack.c.b16 %v2734, %v2733
        %v3241 = vpack.c.b16 %v2736, %v2735
        %v3242 = vpack.c.b16 %v2738, %v2737
        %v3243 = vpack.c.b16 %v2740, %v2739
        %v3244 = vpack.c.b16 %v2742, %v2741
        %v3245 = vpack.c.b16 %v2744, %v2743
        %v3246 = vpack.c.b16 %v2746, %v2745
        %v3247 = vpack.c.b16 %v2748, %v2747
        %v3248 = vpack.c.b16 %v2750, %v2749
        %v3249 = vpack.c.b16 %v2752, %v2751
        %v3250 = vpack.c.b16 %v2754, %v2753
        %v3251 = vpack.c.b16 %v2756, %v2755
        %v3252 = vpack.c.b16 %v2758, %v2757
        %v3253 = vpack.c.b16 %v2760, %v2759
        %v3254 = vpack.c.b16 %v2762, %v2761
        %v3255 = vpack.c.b16 %v2764, %v2763
        %v3256 = vpack.c.b16 %v2766, %v2765
        %v3257 = vpack.c.b16 %v2768, %v2767
        %v3258 = vpack.c.b16 %v2770, %v2769
        %v3259 = vpack.c.b16 %v2772, %v2771
        %v3260 = vpack.c.b16 %v2774, %v2773
        %v3261 = vpack.c.b16 %v2776, %v2775
        %v3262 = vpack.c.b16 %v2778, %v2777
        %v3263 = vpack.c.b16 %v2780, %v2779
        %v3264 = vpack.c.b16 %v2782, %v2781
        %v3265 = vpack.c.b16 %v2784, %v2783
        %v3266 = vpack.c.b16 %v2786, %v2785
        %v3267 = vpack.c.b16 %v2788, %v2787
        %v3268 = vpack.c.b16 %v2790, %v2789
        %v3269 = vpack.c.b16 %v2792, %v2791
        %v3270 = vpack.c.b16 %v2794, %v2793
        %v3271 = vpack.c.b16 %v2796, %v2795
        %v3272 = vpack.c.b16 %v2798, %v2797
        %v3273 = vpack.c.b16 %v2800, %v2799
        %v3274 = vpack.c.b16 %v2802, %v2801
        %v3275 = vpack.c.b16 %v2804, %v2803
        %v3276 = vpack.c.b16 %v2806, %v2805
        %v3277 = vpack.c.b16 %v2808, %v2807
        %v3278 = vpack.c.b16 %v2810, %v2809
        %v3279 = vpack.c.b16 %v2812, %v2811
        %v3280 = vpack.c.b16 %v2814, %v2813
        %v3281 = vpack.c.b16 %v2816, %v2815
        %v3282 = vpack.c.b16 %v2818, %v2817
        %v3283 = vpack.c.b16 %v2820, %v2819
        %v3284 = vpack.c.b16 %v2822, %v2821
        %v3285 = vpack.c.b16 %v2824, %v2823
        %v3286 = vpack.c.b16 %v2826, %v2825
        %v3287 = vpack.c.b16 %v2828, %v2827
        %v3288 = vpack.c.b16 %v2830, %v2829
        %v3289 = vpack.c.b16 %v2832, %v2831
        %v3290 = vpack.c.b16 %v2834, %v2833
        %v3291 = vpack.c.b16 %v2836, %v2835
        %v3292 = vpack.c.b16 %v2838, %v2837
        %v3293 = vpack.c.b16 %v2840, %v2839
        %v3294 = vpack.c.b16 %v2842, %v2841
        %v3295 = vpack.c.b16 %v2844, %v2843
        %v3296 = vpack.c.b16 %v2846, %v2845
        %v3297 = vpack.c.b16 %v2848, %v2847
        %v3298 = vpack.c.b16 %v2850, %v2849
        %v3299 = vpack.c.b16 %v2852, %v2851
        %v3300 = vpack.c.b16 %v2854, %v2853
        %v3301 = vpack.c.b16 %v2856, %v2855
        %v3302 = vpack.c.b16 %v2858, %v2857
        %v3303 = vpack.c.b16 %v2860, %v2859
        %v3304 = vpack.c.b16 %v2862, %v2861
        %v3305 = vpack.c.b16 %v2864, %v2863
        %v3306 = vpack.c.b16 %v2866, %v2865
        %v3307 = vpack.c.b16 %v2868, %v2867
        %v3308 = vpack.c.b16 %v2870, %v2869
        %v3309 = vpack.c.b16 %v2872, %v2871
        %v3310 = vpack.c.b16 %v2874, %v2873
        %v3311 = vpack.c.b16 %v2876, %v2875
        %v3312 = vpack.c.b16 %v2878, %v2877
        %v3313 = vpack.c.b16 %v2880, %v2879
        %v3314 = vpack.c.b16 %v2882, %v2881
        %v3315 = vpack.c.b16 %v2884, %v2883
        %v3316 = vpack.c.b16 %v2886, %v2885
        %v3317 = vpack.c.b16 %v2888, %v2887
        %v3318 = vpack.c.b16 %v2890, %v2889
        %v3319 = vpack.c.b16 %v2892, %v2891
        %v3320 = vpack.c.b16 %v2894, %v2893
        %v3321 = vpack.c.b16 %v2896, %v2895
        %v3322 = vpack.c.b16 %v2898, %v2897
        %v3323 = vpack.c.b16 %v2900, %v2899
        %v3324 = vpack.c.b16 %v2902, %v2901
        %v3325 = vpack.c.b16 %v2904, %v2903
        %v3326 = vpack.c.b16 %v2906, %v2905
        %v3327 = vpack.c.b16 %v2908, %v2907
        %v3328 = vpack.c.b16 %v2910, %v2909
        %v3329 = vpack.c.b16 %v2912, %v2911
        %v3330 = vpack.c.b16 %v2914, %v2913
        %v3331 = vpack.c.b16 %v2916, %v2915
        %v3332 = vpack.c.b16 %v2918, %v2917
        %v3333 = vpack.c.b16 %v2920, %v2919
        %v3334 = vpack.c.b16 %v2922, %v2921
        %v3335 = vpack.c.b16 %v2924, %v2923
        %v3336 = vpack.c.b16 %v2926, %v2925
        %v3337 = vpack.c.b16 %v2928, %v2927
        %v3338 = vpack.c.b16 %v2930, %v2929
        %v3339 = vpack.c.b16 %v2932, %v2931
        %v3340 = vpack.c.b16 %v2934, %v2933
        %v3341 = vpack.c.b16 %v2936, %v2935
        %v3342 = vpack.c.b16 %v2938, %v2937
        %v3343 = vpack.c.b16 %v2940, %v2939
        %v3344 = vpack.c.b16 %v2942, %v2941
        %v3345 = vpack.c.b16 %v2944, %v2943
        %v3346 = vpack.c.b16 %v2946, %v2945
        %v3347 = vpack.c.b16 %v2948, %v2947
        %v3348 = vpack.c.b16 %v2950, %v2949
        %v3349 = vpack.c.b16 %v2952, %v2951
        %v3350 = vpack.c.b16 %v2954, %v2953
        %v3351 = vpack.c.b16 %v2956, %v2955
        %v3352 = vpack.c.b16 %v2958, %v2957
        %v3353 = vpack.c.b16 %v2960, %v2959
        %v3354 = vpack.c.b16 %v2962, %v2961
        %3747 = vmatprep.subr.bf16.mxu0 0
        %3748 = vmatpush1.bf16.msra.mxu0 %v2970
        %3749 = vmatprep.subr.bf16.mxu0 0
        %3750 = vmatpush1.bf16.msra.mxu0 %v2969
        %3751 = vmatprep.subr.bf16.mxu0 0
        %3752 = vmatpush1.bf16.msra.mxu0 %v2968
        %3753 = vmatprep.subr.bf16.mxu0 0
        %3754 = vmatpush1.bf16.msra.mxu0 %v2967
        %3755 = vmatprep.subr.bf16.mxu0 0
        %3756 = vmatpush1.bf16.msra.mxu0 %v2966
        %3757 = vmatprep.subr.bf16.mxu0 0
        %3758 = vmatpush1.bf16.msra.mxu0 %v2965
        %3759 = vmatprep.subr.bf16.mxu0 0
        %3760 = vmatpush1.bf16.msra.mxu0 %v2964
        %3761 = vmatprep.subr.bf16.mxu0 0
        %3762 = vmatpush1.bf16.msra.mxu0 %v2963
        %3763 = vmatprep.subr.bf16.mxu0 0
        %3764 = vmatpush2.bf16.msra.mxu0 %v2978
        %3765 = vmatprep.subr.bf16.mxu0 0
        %3766 = vmatpush2.bf16.msra.mxu0 %v2977
        %3767 = vmatprep.subr.bf16.mxu0 0
        %3768 = vmatpush2.bf16.msra.mxu0 %v2976
        %3769 = vmatprep.subr.bf16.mxu0 0
        %3770 = vmatpush2.bf16.msra.mxu0 %v2975
        %3771 = vmatprep.subr.bf16.mxu0 0
        %3772 = vmatpush2.bf16.msra.mxu0 %v2974
        %3773 = vmatprep.subr.bf16.mxu0 0
        %3774 = vmatpush2.bf16.msra.mxu0 %v2973
        %3775 = vmatprep.subr.bf16.mxu0 0
        %3776 = vmatpush2.bf16.msra.mxu0 %v2972
        %3777 = vmatprep.subr.bf16.mxu0 0
        %3778 = vmatpush2.bf16.msra.mxu0 %v2971
        %3779 = vmatprep.mubr.bf16.mxu0 %v1075
        %3780 = vmatmul.mubr.bf16.gmra.mxu0 %v1061
        %v3781 = vpop.f32.mrf.mxu0
        %v3782 = vadd.f32 0.0, %v3781
        %v3783 = vpop.f32.mrf.mxu0
        %v3784 = vpop.f32.mrf.mxu0
        %v3785 = vpop.f32.mrf.mxu0
        %3786 = vdwg.mxu0
        %3787 = vmatprep.subr.bf16.mxu0 0
        %3788 = vmatpush1.bf16.msra.mxu0 %v2986
        %3789 = vmatprep.subr.bf16.mxu0 0
        %3790 = vmatpush1.bf16.msra.mxu0 %v2985
        %3791 = vmatprep.subr.bf16.mxu0 0
        %3792 = vmatpush1.bf16.msra.mxu0 %v2984
        %3793 = vmatprep.subr.bf16.mxu0 0
        %3794 = vmatpush1.bf16.msra.mxu0 %v2983
        %3795 = vmatprep.subr.bf16.mxu0 0
        %3796 = vmatpush1.bf16.msra.mxu0 %v2982
        %3797 = vmatprep.subr.bf16.mxu0 0
        %3798 = vmatpush1.bf16.msra.mxu0 %v2981
        %3799 = vmatprep.subr.bf16.mxu0 0
        %3800 = vmatpush1.bf16.msra.mxu0 %v2980
        %3801 = vmatprep.subr.bf16.mxu0 0
        %3802 = vmatpush1.bf16.msra.mxu0 %v2979
        %3803 = vmatprep.subr.bf16.mxu0 0
        %3804 = vmatpush2.bf16.msra.mxu0 %v2994
        %3805 = vmatprep.subr.bf16.mxu0 0
        %3806 = vmatpush2.bf16.msra.mxu0 %v2993
        %3807 = vmatprep.subr.bf16.mxu0 0
        %3808 = vmatpush2.bf16.msra.mxu0 %v2992
        %3809 = vmatprep.subr.bf16.mxu0 0
        %3810 = vmatpush2.bf16.msra.mxu0 %v2991
        %3811 = vmatprep.subr.bf16.mxu0 0
        %3812 = vmatpush2.bf16.msra.mxu0 %v2990
        %3813 = vmatprep.subr.bf16.mxu0 0
        %3814 = vmatpush2.bf16.msra.mxu0 %v2989
        %3815 = vmatprep.subr.bf16.mxu0 0
        %3816 = vmatpush2.bf16.msra.mxu0 %v2988
        %3817 = vmatprep.subr.bf16.mxu0 0
        %3818 = vmatpush2.bf16.msra.mxu0 %v2987
        %3819 = vmatprep.mubr.bf16.mxu0 %v1085
        %3820 = vmatmul.mubr.bf16.gmra.mxu0 %v1083
        %v3821 = vpop.f32.mrf.mxu0
        %v3822 = vadd.f32 %v3782, %v3821
        %v3823 = vpop.f32.mrf.mxu0
        %v3824 = vpop.f32.mrf.mxu0
        %v3825 = vpop.f32.mrf.mxu0
        %3826 = vdwg.mxu0
        %3827 = vmatprep.subr.bf16.mxu0 0
        %3828 = vmatpush1.bf16.msra.mxu0 %v3002
        %3829 = vmatprep.subr.bf16.mxu0 0
        %3830 = vmatpush1.bf16.msra.mxu0 %v3001
        %3831 = vmatprep.subr.bf16.mxu0 0
        %3832 = vmatpush1.bf16.msra.mxu0 %v3000
        %3833 = vmatprep.subr.bf16.mxu0 0
        %3834 = vmatpush1.bf16.msra.mxu0 %v2999
        %3835 = vmatprep.subr.bf16.mxu0 0
        %3836 = vmatpush1.bf16.msra.mxu0 %v2998
        %3837 = vmatprep.subr.bf16.mxu0 0
        %3838 = vmatpush1.bf16.msra.mxu0 %v2997
        %3839 = vmatprep.subr.bf16.mxu0 0
        %3840 = vmatpush1.bf16.msra.mxu0 %v2996
        %3841 = vmatprep.subr.bf16.mxu0 0
        %3842 = vmatpush1.bf16.msra.mxu0 %v2995
        %3843 = vmatprep.subr.bf16.mxu0 0
        %3844 = vmatpush2.bf16.msra.mxu0 %v3010
        %3845 = vmatprep.subr.bf16.mxu0 0
        %3846 = vmatpush2.bf16.msra.mxu0 %v3009
        %3847 = vmatprep.subr.bf16.mxu0 0
        %3848 = vmatpush2.bf16.msra.mxu0 %v3008
        %3849 = vmatprep.subr.bf16.mxu0 0
        %3850 = vmatpush2.bf16.msra.mxu0 %v3007
        %3851 = vmatprep.subr.bf16.mxu0 0
        %3852 = vmatpush2.bf16.msra.mxu0 %v3006
        %3853 = vmatprep.subr.bf16.mxu0 0
        %3854 = vmatpush2.bf16.msra.mxu0 %v3005
        %3855 = vmatprep.subr.bf16.mxu0 0
        %3856 = vmatpush2.bf16.msra.mxu0 %v3004
        %3857 = vmatprep.subr.bf16.mxu0 0
        %3858 = vmatpush2.bf16.msra.mxu0 %v3003
        %3859 = vmatprep.mubr.bf16.mxu0 %v1082
        %3860 = vmatmul.mubr.bf16.gmra.mxu0 %v1068
        %v3861 = vpop.f32.mrf.mxu0
        %v3862 = vadd.f32 %v3822, %v3861
        %v3863 = vpop.f32.mrf.mxu0
        %v3864 = vpop.f32.mrf.mxu0
        %v3865 = vpop.f32.mrf.mxu0
        %3866 = vdwg.mxu0
        %3867 = vmatprep.subr.bf16.mxu0 0
        %3868 = vmatpush1.bf16.msra.mxu0 %v3018
        %3869 = vmatprep.subr.bf16.mxu0 0
        %3870 = vmatpush1.bf16.msra.mxu0 %v3017
        %3871 = vmatprep.subr.bf16.mxu0 0
        %3872 = vmatpush1.bf16.msra.mxu0 %v3016
        %3873 = vmatprep.subr.bf16.mxu0 0
        %3874 = vmatpush1.bf16.msra.mxu0 %v3015
        %3875 = vmatprep.subr.bf16.mxu0 0
        %3876 = vmatpush1.bf16.msra.mxu0 %v3014
        %3877 = vmatprep.subr.bf16.mxu0 0
        %3878 = vmatpush1.bf16.msra.mxu0 %v3013
        %3879 = vmatprep.subr.bf16.mxu0 0
        %3880 = vmatpush1.bf16.msra.mxu0 %v3012
        %3881 = vmatprep.subr.bf16.mxu0 0
        %3882 = vmatpush1.bf16.msra.mxu0 %v3011
        %3883 = vmatprep.subr.bf16.mxu0 0
        %3884 = vmatpush2.bf16.msra.mxu0 %v3026
        %3885 = vmatprep.subr.bf16.mxu0 0
        %3886 = vmatpush2.bf16.msra.mxu0 %v3025
        %3887 = vmatprep.subr.bf16.mxu0 0
        %3888 = vmatpush2.bf16.msra.mxu0 %v3024
        %3889 = vmatprep.subr.bf16.mxu0 0
        %3890 = vmatpush2.bf16.msra.mxu0 %v3023
        %3891 = vmatprep.subr.bf16.mxu0 0
        %3892 = vmatpush2.bf16.msra.mxu0 %v3022
        %3893 = vmatprep.subr.bf16.mxu0 0
        %3894 = vmatpush2.bf16.msra.mxu0 %v3021
        %3895 = vmatprep.subr.bf16.mxu0 0
        %3896 = vmatpush2.bf16.msra.mxu0 %v3020
        %3897 = vmatprep.subr.bf16.mxu0 0
        %3898 = vmatpush2.bf16.msra.mxu0 %v3019
        %3899 = vmatprep.mubr.bf16.mxu0 %v1086
        %3900 = vmatmul.mubr.bf16.gmra.mxu0 %v1084
        %v3901 = vpop.f32.mrf.mxu0
        %v3902 = vadd.f32 %v3862, %v3901
        %v3903 = vpop.f32.mrf.mxu0
        %v3904 = vpop.f32.mrf.mxu0
        %v3905 = vpop.f32.mrf.mxu0
        %3906 = vdwg.mxu0
        %3907 = vmatprep.subr.bf16.mxu0 0
        %3908 = vmatpush1.bf16.msra.mxu0 %v3034
        %3909 = vmatprep.subr.bf16.mxu0 0
        %3910 = vmatpush1.bf16.msra.mxu0 %v3033
        %3911 = vmatprep.subr.bf16.mxu0 0
        %3912 = vmatpush1.bf16.msra.mxu0 %v3032
        %3913 = vmatprep.subr.bf16.mxu0 0
        %3914 = vmatpush1.bf16.msra.mxu0 %v3031
        %3915 = vmatprep.subr.bf16.mxu0 0
        %3916 = vmatpush1.bf16.msra.mxu0 %v3030
        %3917 = vmatprep.subr.bf16.mxu0 0
        %3918 = vmatpush1.bf16.msra.mxu0 %v3029
        %3919 = vmatprep.subr.bf16.mxu0 0
        %3920 = vmatpush1.bf16.msra.mxu0 %v3028
        %3921 = vmatprep.subr.bf16.mxu0 0
        %3922 = vmatpush1.bf16.msra.mxu0 %v3027
        %3923 = vmatprep.subr.bf16.mxu0 0
        %3924 = vmatpush2.bf16.msra.mxu0 %v3042
        %3925 = vmatprep.subr.bf16.mxu0 0
        %3926 = vmatpush2.bf16.msra.mxu0 %v3041
        %3927 = vmatprep.subr.bf16.mxu0 0
        %3928 = vmatpush2.bf16.msra.mxu0 %v3040
        %3929 = vmatprep.subr.bf16.mxu0 0
        %3930 = vmatpush2.bf16.msra.mxu0 %v3039
        %3931 = vmatprep.subr.bf16.mxu0 0
        %3932 = vmatpush2.bf16.msra.mxu0 %v3038
        %3933 = vmatprep.subr.bf16.mxu0 0
        %3934 = vmatpush2.bf16.msra.mxu0 %v3037
        %3935 = vmatprep.subr.bf16.mxu0 0
        %3936 = vmatpush2.bf16.msra.mxu0 %v3036
        %3937 = vmatprep.subr.bf16.mxu0 0
        %3938 = vmatpush2.bf16.msra.mxu0 %v3035
        %3939 = vmatprep.mubr.bf16.mxu0 %v1124
        %3940 = vmatmul.mubr.bf16.gmra.mxu0 %v1110
        %v3941 = vpop.f32.mrf.mxu0
        %v3942 = vadd.f32 %v3902, %v3941
        %v3943 = vpop.f32.mrf.mxu0
        %v3944 = vpop.f32.mrf.mxu0
        %v3945 = vpop.f32.mrf.mxu0
        %3946 = vdwg.mxu0
        %3947 = vmatprep.subr.bf16.mxu0 0
        %3948 = vmatpush1.bf16.msra.mxu0 %v3050
        %3949 = vmatprep.subr.bf16.mxu0 0
        %3950 = vmatpush1.bf16.msra.mxu0 %v3049
        %3951 = vmatprep.subr.bf16.mxu0 0
        %3952 = vmatpush1.bf16.msra.mxu0 %v3048
        %3953 = vmatprep.subr.bf16.mxu0 0
        %3954 = vmatpush1.bf16.msra.mxu0 %v3047
        %3955 = vmatprep.subr.bf16.mxu0 0
        %3956 = vmatpush1.bf16.msra.mxu0 %v3046
        %3957 = vmatprep.subr.bf16.mxu0 0
        %3958 = vmatpush1.bf16.msra.mxu0 %v3045
        %3959 = vmatprep.subr.bf16.mxu0 0
        %3960 = vmatpush1.bf16.msra.mxu0 %v3044
        %3961 = vmatprep.subr.bf16.mxu0 0
        %3962 = vmatpush1.bf16.msra.mxu0 %v3043
        %3963 = vmatprep.subr.bf16.mxu0 0
        %3964 = vmatpush2.bf16.msra.mxu0 %v3058
        %3965 = vmatprep.subr.bf16.mxu0 0
        %3966 = vmatpush2.bf16.msra.mxu0 %v3057
        %3967 = vmatprep.subr.bf16.mxu0 0
        %3968 = vmatpush2.bf16.msra.mxu0 %v3056
        %3969 = vmatprep.subr.bf16.mxu0 0
        %3970 = vmatpush2.bf16.msra.mxu0 %v3055
        %3971 = vmatprep.subr.bf16.mxu0 0
        %3972 = vmatpush2.bf16.msra.mxu0 %v3054
        %3973 = vmatprep.subr.bf16.mxu0 0
        %3974 = vmatpush2.bf16.msra.mxu0 %v3053
        %3975 = vmatprep.subr.bf16.mxu0 0
        %3976 = vmatpush2.bf16.msra.mxu0 %v3052
        %3977 = vmatprep.subr.bf16.mxu0 0
        %3978 = vmatpush2.bf16.msra.mxu0 %v3051
        %3979 = vmatprep.mubr.bf16.mxu0 %v1134
        %3980 = vmatmul.mubr.bf16.gmra.mxu0 %v1132
        %v3981 = vpop.f32.mrf.mxu0
        %v3982 = vadd.f32 %v3942, %v3981
        %v3983 = vpop.f32.mrf.mxu0
        %v3984 = vpop.f32.mrf.mxu0
        %v3985 = vpop.f32.mrf.mxu0
        %3986 = vdwg.mxu0
        %3987 = vmatprep.subr.bf16.mxu0 0
        %3988 = vmatpush1.bf16.msra.mxu0 %v3066
        %3989 = vmatprep.subr.bf16.mxu0 0
        %3990 = vmatpush1.bf16.msra.mxu0 %v3065
        %3991 = vmatprep.subr.bf16.mxu0 0
        %3992 = vmatpush1.bf16.msra.mxu0 %v3064
        %3993 = vmatprep.subr.bf16.mxu0 0
        %3994 = vmatpush1.bf16.msra.mxu0 %v3063
        %3995 = vmatprep.subr.bf16.mxu0 0
        %3996 = vmatpush1.bf16.msra.mxu0 %v3062
        %3997 = vmatprep.subr.bf16.mxu0 0
        %3998 = vmatpush1.bf16.msra.mxu0 %v3061
        %3999 = vmatprep.subr.bf16.mxu0 0
        %4000 = vmatpush1.bf16.msra.mxu0 %v3060
        %4001 = vmatprep.subr.bf16.mxu0 0
        %4002 = vmatpush1.bf16.msra.mxu0 %v3059
        %4003 = vmatprep.subr.bf16.mxu0 0
        %4004 = vmatpush2.bf16.msra.mxu0 %v3074
        %4005 = vmatprep.subr.bf16.mxu0 0
        %4006 = vmatpush2.bf16.msra.mxu0 %v3073
        %4007 = vmatprep.subr.bf16.mxu0 0
        %4008 = vmatpush2.bf16.msra.mxu0 %v3072
        %4009 = vmatprep.subr.bf16.mxu0 0
        %4010 = vmatpush2.bf16.msra.mxu0 %v3071
        %4011 = vmatprep.subr.bf16.mxu0 0
        %4012 = vmatpush2.bf16.msra.mxu0 %v3070
        %4013 = vmatprep.subr.bf16.mxu0 0
        %4014 = vmatpush2.bf16.msra.mxu0 %v3069
        %4015 = vmatprep.subr.bf16.mxu0 0
        %4016 = vmatpush2.bf16.msra.mxu0 %v3068
        %4017 = vmatprep.subr.bf16.mxu0 0
        %4018 = vmatpush2.bf16.msra.mxu0 %v3067
        %4019 = vmatprep.mubr.bf16.mxu0 %v1131
        %4020 = vmatmul.mubr.bf16.gmra.mxu0 %v1117
        %v4021 = vpop.f32.mrf.mxu0
        %v4022 = vadd.f32 %v3982, %v4021
        %v4023 = vpop.f32.mrf.mxu0
        %v4024 = vpop.f32.mrf.mxu0
        %v4025 = vpop.f32.mrf.mxu0
        %4026 = vdwg.mxu0
        %4027 = vmatprep.subr.bf16.mxu0 0
        %4028 = vmatpush1.bf16.msra.mxu0 %v3082
        %4029 = vmatprep.subr.bf16.mxu0 0
        %4030 = vmatpush1.bf16.msra.mxu0 %v3081
        %4031 = vmatprep.subr.bf16.mxu0 0
        %4032 = vmatpush1.bf16.msra.mxu0 %v3080
        %4033 = vmatprep.subr.bf16.mxu0 0
        %4034 = vmatpush1.bf16.msra.mxu0 %v3079
        %4035 = vmatprep.subr.bf16.mxu0 0
        %4036 = vmatpush1.bf16.msra.mxu0 %v3078
        %4037 = vmatprep.subr.bf16.mxu0 0
        %4038 = vmatpush1.bf16.msra.mxu0 %v3077
        %4039 = vmatprep.subr.bf16.mxu0 0
        %4040 = vmatpush1.bf16.msra.mxu0 %v3076
        %4041 = vmatprep.subr.bf16.mxu0 0
        %4042 = vmatpush1.bf16.msra.mxu0 %v3075
        %4043 = vmatprep.subr.bf16.mxu0 0
        %4044 = vmatpush2.bf16.msra.mxu0 %v3090
        %4045 = vmatprep.subr.bf16.mxu0 0
        %4046 = vmatpush2.bf16.msra.mxu0 %v3089
        %4047 = vmatprep.subr.bf16.mxu0 0
        %4048 = vmatpush2.bf16.msra.mxu0 %v3088
        %4049 = vmatprep.subr.bf16.mxu0 0
        %4050 = vmatpush2.bf16.msra.mxu0 %v3087
        %4051 = vmatprep.subr.bf16.mxu0 0
        %4052 = vmatpush2.bf16.msra.mxu0 %v3086
        %4053 = vmatprep.subr.bf16.mxu0 0
        %4054 = vmatpush2.bf16.msra.mxu0 %v3085
        %4055 = vmatprep.subr.bf16.mxu0 0
        %4056 = vmatpush2.bf16.msra.mxu0 %v3084
        %4057 = vmatprep.subr.bf16.mxu0 0
        %4058 = vmatpush2.bf16.msra.mxu0 %v3083
        %4059 = vmatprep.mubr.bf16.mxu0 %v1135
        %4060 = vmatmul.mubr.bf16.gmra.mxu0 %v1133
        %v4061 = vpop.f32.mrf.mxu0
        %v4062 = vadd.f32 %v4022, %v4061
        %v4063 = vpop.f32.mrf.mxu0
        %v4064 = vpop.f32.mrf.mxu0
        %v4065 = vpop.f32.mrf.mxu0
        %4066 = vdwg.mxu0
        %4067 = vmatprep.subr.bf16.mxu0 0
        %4068 = vmatpush1.bf16.msra.mxu0 %v3098
        %4069 = vmatprep.subr.bf16.mxu0 0
        %4070 = vmatpush1.bf16.msra.mxu0 %v3097
        %4071 = vmatprep.subr.bf16.mxu0 0
        %4072 = vmatpush1.bf16.msra.mxu0 %v3096
        %4073 = vmatprep.subr.bf16.mxu0 0
        %4074 = vmatpush1.bf16.msra.mxu0 %v3095
        %4075 = vmatprep.subr.bf16.mxu0 0
        %4076 = vmatpush1.bf16.msra.mxu0 %v3094
        %4077 = vmatprep.subr.bf16.mxu0 0
        %4078 = vmatpush1.bf16.msra.mxu0 %v3093
        %4079 = vmatprep.subr.bf16.mxu0 0
        %4080 = vmatpush1.bf16.msra.mxu0 %v3092
        %4081 = vmatprep.subr.bf16.mxu0 0
        %4082 = vmatpush1.bf16.msra.mxu0 %v3091
        %4083 = vmatprep.subr.bf16.mxu0 0
        %4084 = vmatpush2.bf16.msra.mxu0 %v3106
        %4085 = vmatprep.subr.bf16.mxu0 0
        %4086 = vmatpush2.bf16.msra.mxu0 %v3105
        %4087 = vmatprep.subr.bf16.mxu0 0
        %4088 = vmatpush2.bf16.msra.mxu0 %v3104
        %4089 = vmatprep.subr.bf16.mxu0 0
        %4090 = vmatpush2.bf16.msra.mxu0 %v3103
        %4091 = vmatprep.subr.bf16.mxu0 0
        %4092 = vmatpush2.bf16.msra.mxu0 %v3102
        %4093 = vmatprep.subr.bf16.mxu0 0
        %4094 = vmatpush2.bf16.msra.mxu0 %v3101
        %4095 = vmatprep.subr.bf16.mxu0 0
        %4096 = vmatpush2.bf16.msra.mxu0 %v3100
        %4097 = vmatprep.subr.bf16.mxu0 0
        %4098 = vmatpush2.bf16.msra.mxu0 %v3099
        %4099 = vmatprep.mubr.bf16.mxu0 %v1173
        %4100 = vmatmul.mubr.bf16.gmra.mxu0 %v1159
        %v4101 = vpop.f32.mrf.mxu0
        %v4102 = vadd.f32 %v4062, %v4101
        %v4103 = vpop.f32.mrf.mxu0
        %v4104 = vpop.f32.mrf.mxu0
        %v4105 = vpop.f32.mrf.mxu0
        %4106 = vdwg.mxu0
        %4107 = vmatprep.subr.bf16.mxu0 0
        %4108 = vmatpush1.bf16.msra.mxu0 %v3114
        %4109 = vmatprep.subr.bf16.mxu0 0
        %4110 = vmatpush1.bf16.msra.mxu0 %v3113
        %4111 = vmatprep.subr.bf16.mxu0 0
        %4112 = vmatpush1.bf16.msra.mxu0 %v3112
        %4113 = vmatprep.subr.bf16.mxu0 0
        %4114 = vmatpush1.bf16.msra.mxu0 %v3111
        %4115 = vmatprep.subr.bf16.mxu0 0
        %4116 = vmatpush1.bf16.msra.mxu0 %v3110
        %4117 = vmatprep.subr.bf16.mxu0 0
        %4118 = vmatpush1.bf16.msra.mxu0 %v3109
        %4119 = vmatprep.subr.bf16.mxu0 0
        %4120 = vmatpush1.bf16.msra.mxu0 %v3108
        %4121 = vmatprep.subr.bf16.mxu0 0
        %4122 = vmatpush1.bf16.msra.mxu0 %v3107
        %4123 = vmatprep.subr.bf16.mxu0 0
        %4124 = vmatpush2.bf16.msra.mxu0 %v3122
        %4125 = vmatprep.subr.bf16.mxu0 0
        %4126 = vmatpush2.bf16.msra.mxu0 %v3121
        %4127 = vmatprep.subr.bf16.mxu0 0
        %4128 = vmatpush2.bf16.msra.mxu0 %v3120
        %4129 = vmatprep.subr.bf16.mxu0 0
        %4130 = vmatpush2.bf16.msra.mxu0 %v3119
        %4131 = vmatprep.subr.bf16.mxu0 0
        %4132 = vmatpush2.bf16.msra.mxu0 %v3118
        %4133 = vmatprep.subr.bf16.mxu0 0
        %4134 = vmatpush2.bf16.msra.mxu0 %v3117
        %4135 = vmatprep.subr.bf16.mxu0 0
        %4136 = vmatpush2.bf16.msra.mxu0 %v3116
        %4137 = vmatprep.subr.bf16.mxu0 0
        %4138 = vmatpush2.bf16.msra.mxu0 %v3115
        %4139 = vmatprep.mubr.bf16.mxu0 %v1183
        %4140 = vmatmul.mubr.bf16.gmra.mxu0 %v1181
        %v4141 = vpop.f32.mrf.mxu0
        %v4142 = vadd.f32 %v4102, %v4141
        %v4143 = vpop.f32.mrf.mxu0
        %v4144 = vpop.f32.mrf.mxu0
        %v4145 = vpop.f32.mrf.mxu0
        %4146 = vdwg.mxu0
        %4147 = vmatprep.subr.bf16.mxu0 0
        %4148 = vmatpush1.bf16.msra.mxu0 %v3130
        %4149 = vmatprep.subr.bf16.mxu0 0
        %4150 = vmatpush1.bf16.msra.mxu0 %v3129
        %4151 = vmatprep.subr.bf16.mxu0 0
        %4152 = vmatpush1.bf16.msra.mxu0 %v3128
        %4153 = vmatprep.subr.bf16.mxu0 0
        %4154 = vmatpush1.bf16.msra.mxu0 %v3127
        %4155 = vmatprep.subr.bf16.mxu0 0
        %4156 = vmatpush1.bf16.msra.mxu0 %v3126
        %4157 = vmatprep.subr.bf16.mxu0 0
        %4158 = vmatpush1.bf16.msra.mxu0 %v3125
        %4159 = vmatprep.subr.bf16.mxu0 0
        %4160 = vmatpush1.bf16.msra.mxu0 %v3124
        %4161 = vmatprep.subr.bf16.mxu0 0
        %4162 = vmatpush1.bf16.msra.mxu0 %v3123
        %4163 = vmatprep.subr.bf16.mxu0 0
        %4164 = vmatpush2.bf16.msra.mxu0 %v3138
        %4165 = vmatprep.subr.bf16.mxu0 0
        %4166 = vmatpush2.bf16.msra.mxu0 %v3137
        %4167 = vmatprep.subr.bf16.mxu0 0
        %4168 = vmatpush2.bf16.msra.mxu0 %v3136
        %4169 = vmatprep.subr.bf16.mxu0 0
        %4170 = vmatpush2.bf16.msra.mxu0 %v3135
        %4171 = vmatprep.subr.bf16.mxu0 0
        %4172 = vmatpush2.bf16.msra.mxu0 %v3134
        %4173 = vmatprep.subr.bf16.mxu0 0
        %4174 = vmatpush2.bf16.msra.mxu0 %v3133
        %4175 = vmatprep.subr.bf16.mxu0 0
        %4176 = vmatpush2.bf16.msra.mxu0 %v3132
        %4177 = vmatprep.subr.bf16.mxu0 0
        %4178 = vmatpush2.bf16.msra.mxu0 %v3131
        %4179 = vmatprep.mubr.bf16.mxu0 %v1180
        %4180 = vmatmul.mubr.bf16.gmra.mxu0 %v1166
        %v4181 = vpop.f32.mrf.mxu0
        %v4182 = vadd.f32 %v4142, %v4181
        %v4183 = vpop.f32.mrf.mxu0
        %v4184 = vpop.f32.mrf.mxu0
        %v4185 = vpop.f32.mrf.mxu0
        %4186 = vdwg.mxu0
        %4187 = vmatprep.subr.bf16.mxu0 0
        %4188 = vmatpush1.bf16.msra.mxu0 %v3146
        %4189 = vmatprep.subr.bf16.mxu0 0
        %4190 = vmatpush1.bf16.msra.mxu0 %v3145
        %4191 = vmatprep.subr.bf16.mxu0 0
        %4192 = vmatpush1.bf16.msra.mxu0 %v3144
        %4193 = vmatprep.subr.bf16.mxu0 0
        %4194 = vmatpush1.bf16.msra.mxu0 %v3143
        %4195 = vmatprep.subr.bf16.mxu0 0
        %4196 = vmatpush1.bf16.msra.mxu0 %v3142
        %4197 = vmatprep.subr.bf16.mxu0 0
        %4198 = vmatpush1.bf16.msra.mxu0 %v3141
        %4199 = vmatprep.subr.bf16.mxu0 0
        %4200 = vmatpush1.bf16.msra.mxu0 %v3140
        %4201 = vmatprep.subr.bf16.mxu0 0
        %4202 = vmatpush1.bf16.msra.mxu0 %v3139
        %4203 = vmatprep.subr.bf16.mxu0 0
        %4204 = vmatpush2.bf16.msra.mxu0 %v3154
        %4205 = vmatprep.subr.bf16.mxu0 0
        %4206 = vmatpush2.bf16.msra.mxu0 %v3153
        %4207 = vmatprep.subr.bf16.mxu0 0
        %4208 = vmatpush2.bf16.msra.mxu0 %v3152
        %4209 = vmatprep.subr.bf16.mxu0 0
        %4210 = vmatpush2.bf16.msra.mxu0 %v3151
        %4211 = vmatprep.subr.bf16.mxu0 0
        %4212 = vmatpush2.bf16.msra.mxu0 %v3150
        %4213 = vmatprep.subr.bf16.mxu0 0
        %4214 = vmatpush2.bf16.msra.mxu0 %v3149
        %4215 = vmatprep.subr.bf16.mxu0 0
        %4216 = vmatpush2.bf16.msra.mxu0 %v3148
        %4217 = vmatprep.subr.bf16.mxu0 0
        %4218 = vmatpush2.bf16.msra.mxu0 %v3147
        %4219 = vmatprep.mubr.bf16.mxu0 %v1184
        %4220 = vmatmul.mubr.bf16.gmra.mxu0 %v1182
        %v4221 = vpop.f32.mrf.mxu0
        %v4222 = vadd.f32 %v4182, %v4221
        %v4223 = vpop.f32.mrf.mxu0
        %v4224 = vpop.f32.mrf.mxu0
        %v4225 = vpop.f32.mrf.mxu0
        %4226 = vdwg.mxu0
        %4227 = vmatprep.subr.bf16.mxu0 0
        %4228 = vmatpush1.bf16.msra.mxu0 %v3162
        %4229 = vmatprep.subr.bf16.mxu0 0
        %4230 = vmatpush1.bf16.msra.mxu0 %v3161
        %4231 = vmatprep.subr.bf16.mxu0 0
        %4232 = vmatpush1.bf16.msra.mxu0 %v3160
        %4233 = vmatprep.subr.bf16.mxu0 0
        %4234 = vmatpush1.bf16.msra.mxu0 %v3159
        %4235 = vmatprep.subr.bf16.mxu0 0
        %4236 = vmatpush1.bf16.msra.mxu0 %v3158
        %4237 = vmatprep.subr.bf16.mxu0 0
        %4238 = vmatpush1.bf16.msra.mxu0 %v3157
        %4239 = vmatprep.subr.bf16.mxu0 0
        %4240 = vmatpush1.bf16.msra.mxu0 %v3156
        %4241 = vmatprep.subr.bf16.mxu0 0
        %4242 = vmatpush1.bf16.msra.mxu0 %v3155
        %4243 = vmatprep.subr.bf16.mxu0 0
        %4244 = vmatpush2.bf16.msra.mxu0 %v3170
        %4245 = vmatprep.subr.bf16.mxu0 0
        %4246 = vmatpush2.bf16.msra.mxu0 %v3169
        %4247 = vmatprep.subr.bf16.mxu0 0
        %4248 = vmatpush2.bf16.msra.mxu0 %v3168
        %4249 = vmatprep.subr.bf16.mxu0 0
        %4250 = vmatpush2.bf16.msra.mxu0 %v3167
        %4251 = vmatprep.subr.bf16.mxu0 0
        %4252 = vmatpush2.bf16.msra.mxu0 %v3166
        %4253 = vmatprep.subr.bf16.mxu0 0
        %4254 = vmatpush2.bf16.msra.mxu0 %v3165
        %4255 = vmatprep.subr.bf16.mxu0 0
        %4256 = vmatpush2.bf16.msra.mxu0 %v3164
        %4257 = vmatprep.subr.bf16.mxu0 0
        %4258 = vmatpush2.bf16.msra.mxu0 %v3163
        %4259 = vmatprep.mubr.bf16.mxu0 %v1222
        %4260 = vmatmul.mubr.bf16.gmra.mxu0 %v1208
        %v4261 = vpop.f32.mrf.mxu0
        %v4262 = vadd.f32 %v4222, %v4261
        %v4263 = vpop.f32.mrf.mxu0
        %v4264 = vpop.f32.mrf.mxu0
        %v4265 = vpop.f32.mrf.mxu0
        %4266 = vdwg.mxu0
        %4267 = vmatprep.subr.bf16.mxu0 0
        %4268 = vmatpush1.bf16.msra.mxu0 %v3178
        %4269 = vmatprep.subr.bf16.mxu0 0
        %4270 = vmatpush1.bf16.msra.mxu0 %v3177
        %4271 = vmatprep.subr.bf16.mxu0 0
        %4272 = vmatpush1.bf16.msra.mxu0 %v3176
        %4273 = vmatprep.subr.bf16.mxu0 0
        %4274 = vmatpush1.bf16.msra.mxu0 %v3175
        %4275 = vmatprep.subr.bf16.mxu0 0
        %4276 = vmatpush1.bf16.msra.mxu0 %v3174
        %4277 = vmatprep.subr.bf16.mxu0 0
        %4278 = vmatpush1.bf16.msra.mxu0 %v3173
        %4279 = vmatprep.subr.bf16.mxu0 0
        %4280 = vmatpush1.bf16.msra.mxu0 %v3172
        %4281 = vmatprep.subr.bf16.mxu0 0
        %4282 = vmatpush1.bf16.msra.mxu0 %v3171
        %4283 = vmatprep.subr.bf16.mxu0 0
        %4284 = vmatpush2.bf16.msra.mxu0 %v3186
        %4285 = vmatprep.subr.bf16.mxu0 0
        %4286 = vmatpush2.bf16.msra.mxu0 %v3185
        %4287 = vmatprep.subr.bf16.mxu0 0
        %4288 = vmatpush2.bf16.msra.mxu0 %v3184
        %4289 = vmatprep.subr.bf16.mxu0 0
        %4290 = vmatpush2.bf16.msra.mxu0 %v3183
        %4291 = vmatprep.subr.bf16.mxu0 0
        %4292 = vmatpush2.bf16.msra.mxu0 %v3182
        %4293 = vmatprep.subr.bf16.mxu0 0
        %4294 = vmatpush2.bf16.msra.mxu0 %v3181
        %4295 = vmatprep.subr.bf16.mxu0 0
        %4296 = vmatpush2.bf16.msra.mxu0 %v3180
        %4297 = vmatprep.subr.bf16.mxu0 0
        %4298 = vmatpush2.bf16.msra.mxu0 %v3179
        %4299 = vmatprep.mubr.bf16.mxu0 %v1232
        %4300 = vmatmul.mubr.bf16.gmra.mxu0 %v1230
        %v4301 = vpop.f32.mrf.mxu0
        %v4302 = vadd.f32 %v4262, %v4301
        %v4303 = vpop.f32.mrf.mxu0
        %v4304 = vpop.f32.mrf.mxu0
        %v4305 = vpop.f32.mrf.mxu0
        %4306 = vdwg.mxu0
        %4307 = vmatprep.subr.bf16.mxu0 0
        %4308 = vmatpush1.bf16.msra.mxu0 %v3194
        %4309 = vmatprep.subr.bf16.mxu0 0
        %4310 = vmatpush1.bf16.msra.mxu0 %v3193
        %4311 = vmatprep.subr.bf16.mxu0 0
        %4312 = vmatpush1.bf16.msra.mxu0 %v3192
        %4313 = vmatprep.subr.bf16.mxu0 0
        %4314 = vmatpush1.bf16.msra.mxu0 %v3191
        %4315 = vmatprep.subr.bf16.mxu0 0
        %4316 = vmatpush1.bf16.msra.mxu0 %v3190
        %4317 = vmatprep.subr.bf16.mxu0 0
        %4318 = vmatpush1.bf16.msra.mxu0 %v3189
        %4319 = vmatprep.subr.bf16.mxu0 0
        %4320 = vmatpush1.bf16.msra.mxu0 %v3188
        %4321 = vmatprep.subr.bf16.mxu0 0
        %4322 = vmatpush1.bf16.msra.mxu0 %v3187
        %4323 = vmatprep.subr.bf16.mxu0 0
        %4324 = vmatpush2.bf16.msra.mxu0 %v3202
        %4325 = vmatprep.subr.bf16.mxu0 0
        %4326 = vmatpush2.bf16.msra.mxu0 %v3201
        %4327 = vmatprep.subr.bf16.mxu0 0
        %4328 = vmatpush2.bf16.msra.mxu0 %v3200
        %4329 = vmatprep.subr.bf16.mxu0 0
        %4330 = vmatpush2.bf16.msra.mxu0 %v3199
        %4331 = vmatprep.subr.bf16.mxu0 0
        %4332 = vmatpush2.bf16.msra.mxu0 %v3198
        %4333 = vmatprep.subr.bf16.mxu0 0
        %4334 = vmatpush2.bf16.msra.mxu0 %v3197
        %4335 = vmatprep.subr.bf16.mxu0 0
        %4336 = vmatpush2.bf16.msra.mxu0 %v3196
        %4337 = vmatprep.subr.bf16.mxu0 0
        %4338 = vmatpush2.bf16.msra.mxu0 %v3195
        %4339 = vmatprep.mubr.bf16.mxu0 %v1229
        %4340 = vmatmul.mubr.bf16.gmra.mxu0 %v1215
        %v4341 = vpop.f32.mrf.mxu0
        %v4342 = vadd.f32 %v4302, %v4341
        %v4343 = vpop.f32.mrf.mxu0
        %v4344 = vpop.f32.mrf.mxu0
        %v4345 = vpop.f32.mrf.mxu0
        %4346 = vdwg.mxu0
        %4347 = vmatprep.subr.bf16.mxu0 0
        %4348 = vmatpush1.bf16.msra.mxu0 %v3210
        %4349 = vmatprep.subr.bf16.mxu0 0
        %4350 = vmatpush1.bf16.msra.mxu0 %v3209
        %4351 = vmatprep.subr.bf16.mxu0 0
        %4352 = vmatpush1.bf16.msra.mxu0 %v3208
        %4353 = vmatprep.subr.bf16.mxu0 0
        %4354 = vmatpush1.bf16.msra.mxu0 %v3207
        %4355 = vmatprep.subr.bf16.mxu0 0
        %4356 = vmatpush1.bf16.msra.mxu0 %v3206
        %4357 = vmatprep.subr.bf16.mxu0 0
        %4358 = vmatpush1.bf16.msra.mxu0 %v3205
        %4359 = vmatprep.subr.bf16.mxu0 0
        %4360 = vmatpush1.bf16.msra.mxu0 %v3204
        %4361 = vmatprep.subr.bf16.mxu0 0
        %4362 = vmatpush1.bf16.msra.mxu0 %v3203
        %4363 = vmatprep.subr.bf16.mxu0 0
        %4364 = vmatpush2.bf16.msra.mxu0 %v3218
        %4365 = vmatprep.subr.bf16.mxu0 0
        %4366 = vmatpush2.bf16.msra.mxu0 %v3217
        %4367 = vmatprep.subr.bf16.mxu0 0
        %4368 = vmatpush2.bf16.msra.mxu0 %v3216
        %4369 = vmatprep.subr.bf16.mxu0 0
        %4370 = vmatpush2.bf16.msra.mxu0 %v3215
        %4371 = vmatprep.subr.bf16.mxu0 0
        %4372 = vmatpush2.bf16.msra.mxu0 %v3214
        %4373 = vmatprep.subr.bf16.mxu0 0
        %4374 = vmatpush2.bf16.msra.mxu0 %v3213
        %4375 = vmatprep.subr.bf16.mxu0 0
        %4376 = vmatpush2.bf16.msra.mxu0 %v3212
        %4377 = vmatprep.subr.bf16.mxu0 0
        %4378 = vmatpush2.bf16.msra.mxu0 %v3211
        %4379 = vmatprep.mubr.bf16.mxu0 %v1233
        %4380 = vmatmul.mubr.bf16.gmra.mxu0 %v1231
        %v4381 = vpop.f32.mrf.mxu0
        %v4382 = vadd.f32 %v4342, %v4381
        %v4383 = vpop.f32.mrf.mxu0
        %v4384 = vpop.f32.mrf.mxu0
        %v4385 = vpop.f32.mrf.mxu0
        %4386 = vdwg.mxu0
        %4387 = vmatprep.subr.bf16.mxu0 0
        %4388 = vmatpush1.bf16.msra.mxu0 %v3226
        %4389 = vmatprep.subr.bf16.mxu0 0
        %4390 = vmatpush1.bf16.msra.mxu0 %v3225
        %4391 = vmatprep.subr.bf16.mxu0 0
        %4392 = vmatpush1.bf16.msra.mxu0 %v3224
        %4393 = vmatprep.subr.bf16.mxu0 0
        %4394 = vmatpush1.bf16.msra.mxu0 %v3223
        %4395 = vmatprep.subr.bf16.mxu0 0
        %4396 = vmatpush1.bf16.msra.mxu0 %v3222
        %4397 = vmatprep.subr.bf16.mxu0 0
        %4398 = vmatpush1.bf16.msra.mxu0 %v3221
        %4399 = vmatprep.subr.bf16.mxu0 0
        %4400 = vmatpush1.bf16.msra.mxu0 %v3220
        %4401 = vmatprep.subr.bf16.mxu0 0
        %4402 = vmatpush1.bf16.msra.mxu0 %v3219
        %4403 = vmatprep.subr.bf16.mxu0 0
        %4404 = vmatpush2.bf16.msra.mxu0 %v3234
        %4405 = vmatprep.subr.bf16.mxu0 0
        %4406 = vmatpush2.bf16.msra.mxu0 %v3233
        %4407 = vmatprep.subr.bf16.mxu0 0
        %4408 = vmatpush2.bf16.msra.mxu0 %v3232
        %4409 = vmatprep.subr.bf16.mxu0 0
        %4410 = vmatpush2.bf16.msra.mxu0 %v3231
        %4411 = vmatprep.subr.bf16.mxu0 0
        %4412 = vmatpush2.bf16.msra.mxu0 %v3230
        %4413 = vmatprep.subr.bf16.mxu0 0
        %4414 = vmatpush2.bf16.msra.mxu0 %v3229
        %4415 = vmatprep.subr.bf16.mxu0 0
        %4416 = vmatpush2.bf16.msra.mxu0 %v3228
        %4417 = vmatprep.subr.bf16.mxu0 0
        %4418 = vmatpush2.bf16.msra.mxu0 %v3227
        %4419 = vmatprep.mubr.bf16.mxu0 %v1271
        %4420 = vmatmul.mubr.bf16.gmra.mxu0 %v1257
        %v4421 = vpop.f32.mrf.mxu0
        %v4422 = vadd.f32 %v4382, %v4421
        %v4423 = vpop.f32.mrf.mxu0
        %v4424 = vpop.f32.mrf.mxu0
        %v4425 = vpop.f32.mrf.mxu0
        %4426 = vdwg.mxu0
        %4427 = vmatprep.subr.bf16.mxu0 0
        %4428 = vmatpush1.bf16.msra.mxu0 %v3242
        %4429 = vmatprep.subr.bf16.mxu0 0
        %4430 = vmatpush1.bf16.msra.mxu0 %v3241
        %4431 = vmatprep.subr.bf16.mxu0 0
        %4432 = vmatpush1.bf16.msra.mxu0 %v3240
        %4433 = vmatprep.subr.bf16.mxu0 0
        %4434 = vmatpush1.bf16.msra.mxu0 %v3239
        %4435 = vmatprep.subr.bf16.mxu0 0
        %4436 = vmatpush1.bf16.msra.mxu0 %v3238
        %4437 = vmatprep.subr.bf16.mxu0 0
        %4438 = vmatpush1.bf16.msra.mxu0 %v3237
        %4439 = vmatprep.subr.bf16.mxu0 0
        %4440 = vmatpush1.bf16.msra.mxu0 %v3236
        %4441 = vmatprep.subr.bf16.mxu0 0
        %4442 = vmatpush1.bf16.msra.mxu0 %v3235
        %4443 = vmatprep.subr.bf16.mxu0 0
        %4444 = vmatpush2.bf16.msra.mxu0 %v3250
        %4445 = vmatprep.subr.bf16.mxu0 0
        %4446 = vmatpush2.bf16.msra.mxu0 %v3249
        %4447 = vmatprep.subr.bf16.mxu0 0
        %4448 = vmatpush2.bf16.msra.mxu0 %v3248
        %4449 = vmatprep.subr.bf16.mxu0 0
        %4450 = vmatpush2.bf16.msra.mxu0 %v3247
        %4451 = vmatprep.subr.bf16.mxu0 0
        %4452 = vmatpush2.bf16.msra.mxu0 %v3246
        %4453 = vmatprep.subr.bf16.mxu0 0
        %4454 = vmatpush2.bf16.msra.mxu0 %v3245
        %4455 = vmatprep.subr.bf16.mxu0 0
        %4456 = vmatpush2.bf16.msra.mxu0 %v3244
        %4457 = vmatprep.subr.bf16.mxu0 0
        %4458 = vmatpush2.bf16.msra.mxu0 %v3243
        %4459 = vmatprep.mubr.bf16.mxu0 %v1281
        %4460 = vmatmul.mubr.bf16.gmra.mxu0 %v1279
        %v4461 = vpop.f32.mrf.mxu0
        %v4462 = vadd.f32 %v4422, %v4461
        %v4463 = vpop.f32.mrf.mxu0
        %v4464 = vpop.f32.mrf.mxu0
        %v4465 = vpop.f32.mrf.mxu0
        %4466 = vdwg.mxu0
        %4467 = vmatprep.subr.bf16.mxu0 0
        %4468 = vmatpush1.bf16.msra.mxu0 %v3258
        %4469 = vmatprep.subr.bf16.mxu0 0
        %4470 = vmatpush1.bf16.msra.mxu0 %v3257
        %4471 = vmatprep.subr.bf16.mxu0 0
        %4472 = vmatpush1.bf16.msra.mxu0 %v3256
        %4473 = vmatprep.subr.bf16.mxu0 0
        %4474 = vmatpush1.bf16.msra.mxu0 %v3255
        %4475 = vmatprep.subr.bf16.mxu0 0
        %4476 = vmatpush1.bf16.msra.mxu0 %v3254
        %4477 = vmatprep.subr.bf16.mxu0 0
        %4478 = vmatpush1.bf16.msra.mxu0 %v3253
        %4479 = vmatprep.subr.bf16.mxu0 0
        %4480 = vmatpush1.bf16.msra.mxu0 %v3252
        %4481 = vmatprep.subr.bf16.mxu0 0
        %4482 = vmatpush1.bf16.msra.mxu0 %v3251
        %4483 = vmatprep.subr.bf16.mxu0 0
        %4484 = vmatpush2.bf16.msra.mxu0 %v3266
        %4485 = vmatprep.subr.bf16.mxu0 0
        %4486 = vmatpush2.bf16.msra.mxu0 %v3265
        %4487 = vmatprep.subr.bf16.mxu0 0
        %4488 = vmatpush2.bf16.msra.mxu0 %v3264
        %4489 = vmatprep.subr.bf16.mxu0 0
        %4490 = vmatpush2.bf16.msra.mxu0 %v3263
        %4491 = vmatprep.subr.bf16.mxu0 0
        %4492 = vmatpush2.bf16.msra.mxu0 %v3262
        %4493 = vmatprep.subr.bf16.mxu0 0
        %4494 = vmatpush2.bf16.msra.mxu0 %v3261
        %4495 = vmatprep.subr.bf16.mxu0 0
        %4496 = vmatpush2.bf16.msra.mxu0 %v3260
        %4497 = vmatprep.subr.bf16.mxu0 0
        %4498 = vmatpush2.bf16.msra.mxu0 %v3259
        %4499 = vmatprep.mubr.bf16.mxu0 %v1278
        %4500 = vmatmul.mubr.bf16.gmra.mxu0 %v1264
        %v4501 = vpop.f32.mrf.mxu0
        %v4502 = vadd.f32 %v4462, %v4501
        %v4503 = vpop.f32.mrf.mxu0
        %v4504 = vpop.f32.mrf.mxu0
        %v4505 = vpop.f32.mrf.mxu0
        %4506 = vdwg.mxu0
        %4507 = vmatprep.subr.bf16.mxu0 0
        %4508 = vmatpush1.bf16.msra.mxu0 %v3274
        %4509 = vmatprep.subr.bf16.mxu0 0
        %4510 = vmatpush1.bf16.msra.mxu0 %v3273
        %4511 = vmatprep.subr.bf16.mxu0 0
        %4512 = vmatpush1.bf16.msra.mxu0 %v3272
        %4513 = vmatprep.subr.bf16.mxu0 0
        %4514 = vmatpush1.bf16.msra.mxu0 %v3271
        %4515 = vmatprep.subr.bf16.mxu0 0
        %4516 = vmatpush1.bf16.msra.mxu0 %v3270
        %4517 = vmatprep.subr.bf16.mxu0 0
        %4518 = vmatpush1.bf16.msra.mxu0 %v3269
        %4519 = vmatprep.subr.bf16.mxu0 0
        %4520 = vmatpush1.bf16.msra.mxu0 %v3268
        %4521 = vmatprep.subr.bf16.mxu0 0
        %4522 = vmatpush1.bf16.msra.mxu0 %v3267
        %4523 = vmatprep.subr.bf16.mxu0 0
        %4524 = vmatpush2.bf16.msra.mxu0 %v3282
        %4525 = vmatprep.subr.bf16.mxu0 0
        %4526 = vmatpush2.bf16.msra.mxu0 %v3281
        %4527 = vmatprep.subr.bf16.mxu0 0
        %4528 = vmatpush2.bf16.msra.mxu0 %v3280
        %4529 = vmatprep.subr.bf16.mxu0 0
        %4530 = vmatpush2.bf16.msra.mxu0 %v3279
        %4531 = vmatprep.subr.bf16.mxu0 0
        %4532 = vmatpush2.bf16.msra.mxu0 %v3278
        %4533 = vmatprep.subr.bf16.mxu0 0
        %4534 = vmatpush2.bf16.msra.mxu0 %v3277
        %4535 = vmatprep.subr.bf16.mxu0 0
        %4536 = vmatpush2.bf16.msra.mxu0 %v3276
        %4537 = vmatprep.subr.bf16.mxu0 0
        %4538 = vmatpush2.bf16.msra.mxu0 %v3275
        %4539 = vmatprep.mubr.bf16.mxu0 %v1282
        %4540 = vmatmul.mubr.bf16.gmra.mxu0 %v1280
        %v4541 = vpop.f32.mrf.mxu0
        %v4542 = vadd.f32 %v4502, %v4541
        %v4543 = vpop.f32.mrf.mxu0
        %v4544 = vpop.f32.mrf.mxu0
        %v4545 = vpop.f32.mrf.mxu0
        %4546 = vdwg.mxu0
        %4547 = vmatprep.subr.bf16.mxu0 0
        %4548 = vmatpush1.bf16.msra.mxu0 %v3290
        %4549 = vmatprep.subr.bf16.mxu0 0
        %4550 = vmatpush1.bf16.msra.mxu0 %v3289
        %4551 = vmatprep.subr.bf16.mxu0 0
        %4552 = vmatpush1.bf16.msra.mxu0 %v3288
        %4553 = vmatprep.subr.bf16.mxu0 0
        %4554 = vmatpush1.bf16.msra.mxu0 %v3287
        %4555 = vmatprep.subr.bf16.mxu0 0
        %4556 = vmatpush1.bf16.msra.mxu0 %v3286
        %4557 = vmatprep.subr.bf16.mxu0 0
        %4558 = vmatpush1.bf16.msra.mxu0 %v3285
        %4559 = vmatprep.subr.bf16.mxu0 0
        %4560 = vmatpush1.bf16.msra.mxu0 %v3284
        %4561 = vmatprep.subr.bf16.mxu0 0
        %4562 = vmatpush1.bf16.msra.mxu0 %v3283
        %4563 = vmatprep.subr.bf16.mxu0 0
        %4564 = vmatpush2.bf16.msra.mxu0 %v3298
        %4565 = vmatprep.subr.bf16.mxu0 0
        %4566 = vmatpush2.bf16.msra.mxu0 %v3297
        %4567 = vmatprep.subr.bf16.mxu0 0
        %4568 = vmatpush2.bf16.msra.mxu0 %v3296
        %4569 = vmatprep.subr.bf16.mxu0 0
        %4570 = vmatpush2.bf16.msra.mxu0 %v3295
        %4571 = vmatprep.subr.bf16.mxu0 0
        %4572 = vmatpush2.bf16.msra.mxu0 %v3294
        %4573 = vmatprep.subr.bf16.mxu0 0
        %4574 = vmatpush2.bf16.msra.mxu0 %v3293
        %4575 = vmatprep.subr.bf16.mxu0 0
        %4576 = vmatpush2.bf16.msra.mxu0 %v3292
        %4577 = vmatprep.subr.bf16.mxu0 0
        %4578 = vmatpush2.bf16.msra.mxu0 %v3291
        %4579 = vmatprep.mubr.bf16.mxu0 %v1320
        %4580 = vmatmul.mubr.bf16.gmra.mxu0 %v1306
        %v4581 = vpop.f32.mrf.mxu0
        %v4582 = vadd.f32 %v4542, %v4581
        %v4583 = vpop.f32.mrf.mxu0
        %v4584 = vpop.f32.mrf.mxu0
        %v4585 = vpop.f32.mrf.mxu0
        %4586 = vdwg.mxu0
        %4587 = vmatprep.subr.bf16.mxu0 0
        %4588 = vmatpush1.bf16.msra.mxu0 %v3306
        %4589 = vmatprep.subr.bf16.mxu0 0
        %4590 = vmatpush1.bf16.msra.mxu0 %v3305
        %4591 = vmatprep.subr.bf16.mxu0 0
        %4592 = vmatpush1.bf16.msra.mxu0 %v3304
        %4593 = vmatprep.subr.bf16.mxu0 0
        %4594 = vmatpush1.bf16.msra.mxu0 %v3303
        %4595 = vmatprep.subr.bf16.mxu0 0
        %4596 = vmatpush1.bf16.msra.mxu0 %v3302
        %4597 = vmatprep.subr.bf16.mxu0 0
        %4598 = vmatpush1.bf16.msra.mxu0 %v3301
        %4599 = vmatprep.subr.bf16.mxu0 0
        %4600 = vmatpush1.bf16.msra.mxu0 %v3300
        %4601 = vmatprep.subr.bf16.mxu0 0
        %4602 = vmatpush1.bf16.msra.mxu0 %v3299
        %4603 = vmatprep.subr.bf16.mxu0 0
        %4604 = vmatpush2.bf16.msra.mxu0 %v3314
        %4605 = vmatprep.subr.bf16.mxu0 0
        %4606 = vmatpush2.bf16.msra.mxu0 %v3313
        %4607 = vmatprep.subr.bf16.mxu0 0
        %4608 = vmatpush2.bf16.msra.mxu0 %v3312
        %4609 = vmatprep.subr.bf16.mxu0 0
        %4610 = vmatpush2.bf16.msra.mxu0 %v3311
        %4611 = vmatprep.subr.bf16.mxu0 0
        %4612 = vmatpush2.bf16.msra.mxu0 %v3310
        %4613 = vmatprep.subr.bf16.mxu0 0
        %4614 = vmatpush2.bf16.msra.mxu0 %v3309
        %4615 = vmatprep.subr.bf16.mxu0 0
        %4616 = vmatpush2.bf16.msra.mxu0 %v3308
        %4617 = vmatprep.subr.bf16.mxu0 0
        %4618 = vmatpush2.bf16.msra.mxu0 %v3307
        %4619 = vmatprep.mubr.bf16.mxu0 %v1330
        %4620 = vmatmul.mubr.bf16.gmra.mxu0 %v1328
        %v4621 = vpop.f32.mrf.mxu0
        %v4622 = vadd.f32 %v4582, %v4621
        %v4623 = vpop.f32.mrf.mxu0
        %v4624 = vpop.f32.mrf.mxu0
        %v4625 = vpop.f32.mrf.mxu0
        %4626 = vdwg.mxu0
        %4627 = vmatprep.subr.bf16.mxu0 0
        %4628 = vmatpush1.bf16.msra.mxu0 %v3322
        %4629 = vmatprep.subr.bf16.mxu0 0
        %4630 = vmatpush1.bf16.msra.mxu0 %v3321
        %4631 = vmatprep.subr.bf16.mxu0 0
        %4632 = vmatpush1.bf16.msra.mxu0 %v3320
        %4633 = vmatprep.subr.bf16.mxu0 0
        %4634 = vmatpush1.bf16.msra.mxu0 %v3319
        %4635 = vmatprep.subr.bf16.mxu0 0
        %4636 = vmatpush1.bf16.msra.mxu0 %v3318
        %4637 = vmatprep.subr.bf16.mxu0 0
        %4638 = vmatpush1.bf16.msra.mxu0 %v3317
        %4639 = vmatprep.subr.bf16.mxu0 0
        %4640 = vmatpush1.bf16.msra.mxu0 %v3316
        %4641 = vmatprep.subr.bf16.mxu0 0
        %4642 = vmatpush1.bf16.msra.mxu0 %v3315
        %4643 = vmatprep.subr.bf16.mxu0 0
        %4644 = vmatpush2.bf16.msra.mxu0 %v3330
        %4645 = vmatprep.subr.bf16.mxu0 0
        %4646 = vmatpush2.bf16.msra.mxu0 %v3329
        %4647 = vmatprep.subr.bf16.mxu0 0
        %4648 = vmatpush2.bf16.msra.mxu0 %v3328
        %4649 = vmatprep.subr.bf16.mxu0 0
        %4650 = vmatpush2.bf16.msra.mxu0 %v3327
        %4651 = vmatprep.subr.bf16.mxu0 0
        %4652 = vmatpush2.bf16.msra.mxu0 %v3326
        %4653 = vmatprep.subr.bf16.mxu0 0
        %4654 = vmatpush2.bf16.msra.mxu0 %v3325
        %4655 = vmatprep.subr.bf16.mxu0 0
        %4656 = vmatpush2.bf16.msra.mxu0 %v3324
        %4657 = vmatprep.subr.bf16.mxu0 0
        %4658 = vmatpush2.bf16.msra.mxu0 %v3323
        %4659 = vmatprep.mubr.bf16.mxu0 %v1327
        %4660 = vmatmul.mubr.bf16.gmra.mxu0 %v1313
        %v4661 = vpop.f32.mrf.mxu0
        %v4662 = vadd.f32 %v4622, %v4661
        %v4663 = vpop.f32.mrf.mxu0
        %v4664 = vpop.f32.mrf.mxu0
        %v4665 = vpop.f32.mrf.mxu0
        %4666 = vdwg.mxu0
        %4667 = vmatprep.subr.bf16.mxu0 0
        %4668 = vmatpush1.bf16.msra.mxu0 %v3338
        %4669 = vmatprep.subr.bf16.mxu0 0
        %4670 = vmatpush1.bf16.msra.mxu0 %v3337
        %4671 = vmatprep.subr.bf16.mxu0 0
        %4672 = vmatpush1.bf16.msra.mxu0 %v3336
        %4673 = vmatprep.subr.bf16.mxu0 0
        %4674 = vmatpush1.bf16.msra.mxu0 %v3335
        %4675 = vmatprep.subr.bf16.mxu0 0
        %4676 = vmatpush1.bf16.msra.mxu0 %v3334
        %4677 = vmatprep.subr.bf16.mxu0 0
        %4678 = vmatpush1.bf16.msra.mxu0 %v3333
        %4679 = vmatprep.subr.bf16.mxu0 0
        %4680 = vmatpush1.bf16.msra.mxu0 %v3332
        %4681 = vmatprep.subr.bf16.mxu0 0
        %4682 = vmatpush1.bf16.msra.mxu0 %v3331
        %4683 = vmatprep.subr.bf16.mxu0 0
        %4684 = vmatpush2.bf16.msra.mxu0 %v3346
        %4685 = vmatprep.subr.bf16.mxu0 0
        %4686 = vmatpush2.bf16.msra.mxu0 %v3345
        %4687 = vmatprep.subr.bf16.mxu0 0
        %4688 = vmatpush2.bf16.msra.mxu0 %v3344
        %4689 = vmatprep.subr.bf16.mxu0 0
        %4690 = vmatpush2.bf16.msra.mxu0 %v3343
        %4691 = vmatprep.subr.bf16.mxu0 0
        %4692 = vmatpush2.bf16.msra.mxu0 %v3342
        %4693 = vmatprep.subr.bf16.mxu0 0
        %4694 = vmatpush2.bf16.msra.mxu0 %v3341
        %4695 = vmatprep.subr.bf16.mxu0 0
        %4696 = vmatpush2.bf16.msra.mxu0 %v3340
        %4697 = vmatprep.subr.bf16.mxu0 0
        %4698 = vmatpush2.bf16.msra.mxu0 %v3339
        %4699 = vmatprep.mubr.bf16.mxu0 %v1331
        %4700 = vmatmul.mubr.bf16.gmra.mxu0 %v1329
        %v4701 = vpop.f32.mrf.mxu0
        %v4702 = vadd.f32 %v4662, %v4701
        %v4703 = vpop.f32.mrf.mxu0
        %v4704 = vpop.f32.mrf.mxu0
        %v4705 = vpop.f32.mrf.mxu0
        %4706 = vdwg.mxu0
        %4707 = vmatprep.subr.bf16.mxu0 0
        %4708 = vmatpush1.bf16.msra.mxu0 %v3354
        %4709 = vmatprep.subr.bf16.mxu0 0
        %4710 = vmatpush1.bf16.msra.mxu0 %v3353
        %4711 = vmatprep.subr.bf16.mxu0 0
        %4712 = vmatpush1.bf16.msra.mxu0 %v3352
        %4713 = vmatprep.subr.bf16.mxu0 0
        %4714 = vmatpush1.bf16.msra.mxu0 %v3351
        %4715 = vmatprep.subr.bf16.mxu0 0
        %4716 = vmatpush1.bf16.msra.mxu0 %v3350
        %4717 = vmatprep.subr.bf16.mxu0 0
        %4718 = vmatpush1.bf16.msra.mxu0 %v3349
        %4719 = vmatprep.subr.bf16.mxu0 0
        %4720 = vmatpush1.bf16.msra.mxu0 %v3348
        %4721 = vmatprep.subr.bf16.mxu0 0
        %4722 = vmatpush1.bf16.msra.mxu0 %v3347
        %4723 = vmatprep.subr.bf16.mxu0 0
        %4724 = vmatpush2.bf16.msra.mxu0 0
        %4725 = vmatprep.subr.bf16.mxu0 0
        %4726 = vmatpush2.bf16.msra.mxu0 0
        %4727 = vmatprep.subr.bf16.mxu0 0
        %4728 = vmatpush2.bf16.msra.mxu0 0
        %4729 = vmatprep.subr.bf16.mxu0 0
        %4730 = vmatpush2.bf16.msra.mxu0 0
        %4731 = vmatprep.subr.bf16.mxu0 0
        %4732 = vmatpush2.bf16.msra.mxu0 0
        %4733 = vmatprep.subr.bf16.mxu0 0
        %4734 = vmatpush2.bf16.msra.mxu0 0
        %4735 = vmatprep.subr.bf16.mxu0 0
        %4736 = vmatpush2.bf16.msra.mxu0 0
        %4737 = vmatprep.subr.bf16.mxu0 0
        %4738 = vmatpush2.bf16.msra.mxu0 0
        %4739 = vmatprep.mubr.bf16.mxu0 0
        %4740 = vmatmul.mubr.bf16.gmra.mxu0 %v1345
        %v4741 = vpop.f32.mrf.mxu0
        %v4742 = vadd.f32 %v4702, %v4741
        %v4743 = vpop.f32.mrf.mxu0
        %v4744 = vpop.f32.mrf.mxu0
        %v4745 = vpop.f32.mrf.mxu0
        %4746 = vdwg.mxu0
        %v4747 = vadd.f32 %v239, %v4742
        %vm4748 = vcmask 730112
        %4749 = vst.msk [vmem:[#allocation2] sm:$0x3] %vm4748, %v4747
        %p4750 = scmp.eq.s32.totalorder %s17, 3
        // Predicated region
        $region45: #{cnn_forward.5} parent=39 // pred_check
          %p4751 = pneg %p4750
        $region46: #{cnn_forward.5} parent=39 // pred_check_branch
          %4753 = sbr.rel (%p4751) target = $region48
        $region47: #{cnn_forward.5} parent=39 // pred_region
          %v4754 = vld [vmem:[#allocation2] sm:$0x3]
          %v4755 = vld [vmem:[%s2] sm:$0x1]
          %v4757 = vlaneseq
          %v4758 = vshrl.u32 %v4757, 7
          %v4759 = vsub.s32 0, %v4758
          %v4760 = vrot.slane %v4755, %v4759
          %v4762 = vadd.f32 %v4754, %v4760
          %v4763 = vmax.f32 %v4762, 0.0
          %v4764 = vld [vmem:[%s3] sm:$0xff]
          %v4765 = vld [vmem:[%s3 + $0x8] sm:$0xff]
          %v4766 = vld [vmem:[%s3 + $0x10] sm:$0xff]
          %v4767 = vld [vmem:[%s3 + $0x18] sm:$0xff]
          %v4768 = vld [vmem:[%s3 + $0x20] sm:$0xff]
          %v4769 = vld [vmem:[%s3 + $0x28] sm:$0xff]
          %v4770 = vld [vmem:[%s3 + $0x30] sm:$0xff]
          %v4771 = vld [vmem:[%s3 + $0x38] sm:$0xff]
          %v4772 = vld [vmem:[%s3 + $0x40] sm:$0xff]
          %v4773 = vld [vmem:[%s3 + $0x48] sm:$0xff]
          %v4774 = vld [vmem:[%s3 + $0x50] sm:$0xff]
          %v4775 = vld [vmem:[%s3 + $0x58] sm:$0x3]
          %v4776 = vld [vmem:[%s4] sm:$0x1]
          %v4778 = vlaneseq
          %v4779 = vshrl.u32 %v4778, 7
          %v4780 = vsub.s32 0, %v4779
          %v4781 = vrot.slane %v4776, %v4780
          %vm4783 = vcmask 736256
          %v4785 = vsel %vm4783, %v4763, 0
          %vm4787 = vcmask 1041408
          %v4789 = vsel %vm4787, %v4775, 0
          %4791 = vmatprep.subr.mxu0 0.0
          %4792 = vmatpush1.msra.mxu0 0.0
          %4793 = vmatprep.subr.mxu0 0.0
          %4794 = vmatpush1.msra.mxu0 0.0
          %4795 = vmatprep.subr.mxu0 0.0
          %4796 = vmatpush1.msra.mxu0 0.0
          %4797 = vmatprep.subr.mxu0 0.0
          %4798 = vmatpush1.msra.mxu0 0.0
          %4799 = vmatprep.subr.mxu0 0.0
          %4800 = vmatpush1.msra.mxu0 %v4789
          %4801 = vmatprep.subr.mxu0 0.0
          %4802 = vmatpush1.msra.mxu0 %v4774
          %4803 = vmatprep.subr.mxu0 0.0
          %4804 = vmatpush1.msra.mxu0 %v4773
          %4805 = vmatprep.subr.mxu0 0.0
          %4806 = vmatpush1.msra.mxu0 %v4772
          %4807 = vmatprep.subr.mxu0 0.0
          %4808 = vmatpush1.msra.mxu0 %v4771
          %4809 = vmatprep.subr.mxu0 0.0
          %4810 = vmatpush1.msra.mxu0 %v4770
          %4811 = vmatprep.subr.mxu0 0.0
          %4812 = vmatpush1.msra.mxu0 %v4769
          %4813 = vmatprep.subr.mxu0 0.0
          %4814 = vmatpush1.msra.mxu0 %v4768
          %4815 = vmatprep.subr.mxu0 0.0
          %4816 = vmatpush1.msra.mxu0 %v4767
          %4817 = vmatprep.subr.mxu0 0.0
          %4818 = vmatpush1.msra.mxu0 %v4766
          %4819 = vmatprep.subr.mxu0 0.0
          %4820 = vmatpush1.msra.mxu0 %v4765
          %4821 = vmatprep.subr.mxu0 0.0
          %4822 = vmatpush1.msra.mxu0 %v4764
          %4823 = vmatprep.subr.mxu0 0.0
          %4824 = vmatpush2.msra.mxu0 0.0
          %4825 = vmatprep.subr.mxu0 0.0
          %4826 = vmatpush2.msra.mxu0 0.0
          %4827 = vmatprep.subr.mxu0 0.0
          %4828 = vmatpush2.msra.mxu0 0.0
          %4829 = vmatprep.subr.mxu0 0.0
          %4830 = vmatpush2.msra.mxu0 0.0
          %4831 = vmatprep.subr.mxu0 0.0
          %4832 = vmatpush2.msra.mxu0 0.0
          %4833 = vmatprep.subr.mxu0 0.0
          %4834 = vmatpush2.msra.mxu0 0.0
          %4835 = vmatprep.subr.mxu0 0.0
          %4836 = vmatpush2.msra.mxu0 0.0
          %4837 = vmatprep.subr.mxu0 0.0
          %4838 = vmatpush2.msra.mxu0 0.0
          %4839 = vmatprep.subr.mxu0 0.0
          %4840 = vmatpush2.msra.mxu0 0.0
          %4841 = vmatprep.subr.mxu0 0.0
          %4842 = vmatpush2.msra.mxu0 0.0
          %4843 = vmatprep.subr.mxu0 0.0
          %4844 = vmatpush2.msra.mxu0 0.0
          %4845 = vmatprep.subr.mxu0 0.0
          %4846 = vmatpush2.msra.mxu0 0.0
          %4847 = vmatprep.subr.mxu0 0.0
          %4848 = vmatpush2.msra.mxu0 0.0
          %4849 = vmatprep.subr.mxu0 0.0
          %4850 = vmatpush2.msra.mxu0 0.0
          %4851 = vmatprep.subr.mxu0 0.0
          %4852 = vmatpush2.msra.mxu0 0.0
          %4853 = vmatprep.subr.mxu0 0.0
          %4854 = vmatpush2.msra.mxu0 0.0
          %4855 = vmatprep.mubr.f32.mxu0 0.0
          %4856 = vmatmul.mubr.f32.gmra.mxu0 %v4785
          %v4857 = vpop.f32.mrf.mxu0
          %v4858 = vadd.f32 %v4781, %v4857
          %v4859 = vpop.f32.mrf.mxu0
          %4860 = vdwg.mxu0
          %vm4861 = vcmask 74752
          %4862 = vst.msk [vmem:[#allocation3] sm:$0x3] %vm4861, %v4858
        $region48: #{cnn_forward.5} parent=39 // pred_fallthru
          _
        // Predicated region
        $region49: #{cnn_forward.5} parent=39 // pred_check
          %p4863 = pneg %p145
        $region50: #{cnn_forward.5} parent=39 // pred_check_branch
          %4865 = sbr.rel (%p4863) target = $region52
        $region51: #{cnn_forward.5} parent=39 // pred_region
          %s4867 = ssub.s32 32, 32
          %4868 = vsyncadd [#allocation4], %s4867
          %s4870 = sshll.u32 [#allocation3], 4
          %s4871 = int_to_ptr.vmem [resolvable:$true] %s4870
          %4873 = dma.vmem_to_hbm [thread:$0]  %s4871, 32, %s5, [#allocation4]
        $region52: #{cnn_forward.5} parent=39 // pred_fallthru
          _
        // Predicated region
        $region53: #{cnn_forward.5} parent=39 // pred_check
          %p4874 = pneg %p145
        $region54: #{cnn_forward.5} parent=39 // pred_check_branch
          %4876 = sbr.rel (%p4874) target = $region56
        $region55: #{cnn_forward.5} parent=39 // pred_region
          %4877 = dma.done [#allocation4], 32
        $region56: #{cnn_forward.5} parent=39 // pred_fallthru
          _
      $region40: #{cnn_forward.5} parent=5 // pred_fallthru
        _
      %p4878 = scmp.le.s32.totalorder 2, %s12
      // Predicated region
      $region57: #{cnn_forward.5} parent=5 // pred_check
        %p4879 = pneg %p4878
      $region58: #{cnn_forward.5} parent=5 // pred_check_branch
        %4881 = sbr.rel (%p4879) target = $region60
      $region59: #{cnn_forward.5} parent=5 // pred_region
        %s4882 = ssub.s32 %s12, 2
      $region60: #{cnn_forward.5} parent=5 // pred_fallthru
        _
    $region6: #{cnn_forward.5} parent=1 // loop_footer
      %s16 = sadd.s32 1, %s12
    $region7: #{cnn_forward.5} parent=1 // loop_footer_branch
      %11 = sbr.rel target = $region3
    $region8: #{cnn_forward.5} parent=1 // loop_exit
      _
    %4883 = vsyncpa [#allocation4], 1
    %s4884 = scalar_lea.sflag [#allocation4], 1
    %4885 = vsyncpa %s4884, 1

</llo_original>
